<compile_context>
chip_gen: v7x
topology: tpu7x:2x2x1
jax: 0.10.0
libtpu: 0.0.40
codegen_flags: <defaults>
</compile_context>

<pallas_src>
import functools

import jax
import jax.numpy as jnp
import numpy as np
from jax.experimental import pallas as pl
from jax.experimental.pallas import tpu as pltpu


# ---------------------------------------------------------------------------
# Helpers
# ---------------------------------------------------------------------------

def _tap_masks(H, W):
    """(9, H*W) bf16 validity masks for the 3x3 taps (row-major (oy, ox) order)."""
    h = np.arange(H).reshape(H, 1)
    w = np.arange(W).reshape(1, W)
    rows = []
    for oy in (-1, 0, 1):
        for ox in (-1, 0, 1):
            valid = (h + oy >= 0) & (h + oy < H) & (w + ox >= 0) & (w + ox < W)
            rows.append(valid.reshape(H * W))
    return jnp.asarray(np.stack(rows).astype(np.float32), dtype=jnp.bfloat16)


def _pick_k_tile(F, cap):
    """Largest multiple-of-128 divisor of F that is <= cap (FC reduction tile)."""
    if F <= cap:
        return F
    if F % 128 != 0:
        raise ValueError(
            f"FC in-features {F} > block_k {cap} must be a multiple of 128 to tile."
        )
    t = (cap // 128) * 128
    while t >= 128 and F % t != 0:
        t -= 128
    return t  # always terminates at >=128 because F % 128 == 0


# ---------------------------------------------------------------------------
# Pallas kernels
# ---------------------------------------------------------------------------

def conv_pair_kernel(x_ref, m_ref, w1_ref, b1_ref, w2_ref, b2_ref, o_ref,
                     xpad1_ref, xpad2_ref, *, width):
    """Fused conv3x3+ReLU -> conv3x3+ReLU for ONE image.

    Layout: channels in sublanes, flattened H*W pixels in lanes.  Each tap is a
    static lane-shifted window of a zero-padded VMEM scratch, masked at the row
    boundaries, and contracted on the MXU with K=Cin.  Accumulation, bias and
    ReLU are f32; stores are bf16.

    x_ref : (1, C0, HW) f32     m_ref : (9, HW) bf16 tap masks
    w1_ref: (9, C1, C0) bf16    b1_ref: (C1, 1) f32
    w2_ref: (9, C2, C1) bf16    b2_ref: (C2, 1) f32
    o_ref : (1, C2, HW) bf16
    xpad1_ref: (C0, HW + 2*(W+1)) bf16 scratch   (conv1 input + halo)
    xpad2_ref: (C1, HW + 2*(W+1)) bf16 scratch   (conv2 input + halo)
    """
    HW = x_ref.shape[-1]
    pad = width + 1

    # In-kernel halo padding: zero the scratch once, drop the image into the
    # interior.  No jnp.pad HBM pass in the wrapper.
    xpad1_ref[...] = jnp.zeros_like(xpad1_ref)
    xpad2_ref[...] = jnp.zeros_like(xpad2_ref)
    xpad1_ref[:, pad:pad + HW] = x_ref[0].astype(jnp.bfloat16)

    def conv3x3(xp_ref, w_ref, b_ref):
        cout = w_ref.shape[1]
        acc = jnp.zeros((cout, HW), jnp.float32)
        t = 0
        for oy in (-1, 0, 1):
            for ox in (-1, 0, 1):
                start = pad + oy * width + ox
                xs = xp_ref[:, start:start + HW]          # lane-shifted (Cin, HW)
                xs = xs * m_ref[t:t + 1, :]               # zero invalid neighbors
                acc = acc + jnp.dot(w_ref[t], xs,
                                    preferred_element_type=jnp.float32)
                t += 1
        return jnp.maximum(acc + b_ref[...], 0.0)          # bias + ReLU in f32

    y1 = conv3x3(xpad1_ref, w1_ref, b1_ref)                # (C1, HW) f32
    xpad2_ref[:, pad:pad + HW] = y1.astype(jnp.bfloat16)   # stays in VMEM
    y2 = conv3x3(xpad2_ref, w2_ref, b2_ref)                # (C2, HW) f32
    o_ref[0] = y2.astype(jnp.bfloat16)                     # bf16 hand-off to FC


def fc_kernel(x_ref, w_ref, b_ref, o_ref):
    """o = x @ w + b, tiled over the reduction dim; accumulate into o_ref.

    x_ref: (B, TK) bf16, w_ref: (TK, N) bf16, b_ref: (1, N) f32, o_ref: (B, N) f32.
    o_ref has a constant index_map over k, so it stays VMEM-resident and acts as
    the accumulator (no separate scratch).
    """
    k = pl.program_id(0)

    @pl.when(k == 0)
    def _():
        o_ref[...] = jnp.broadcast_to(b_ref[...], o_ref.shape)

    o_ref[...] += jnp.dot(x_ref[...], w_ref[...],
                          preferred_element_type=jnp.float32)


# ---------------------------------------------------------------------------
# Wrappers
# ---------------------------------------------------------------------------

def conv_pair(x, w1, b1, w2, b2, H, W):
    """x: (B, C0, H*W) f32 -> (B, C2, H*W) bf16 (fused conv1+relu+conv2+relu)."""
    B, C0, HW = x.shape
    C1 = w1.shape[1]
    C2 = w2.shape[1]
    pad = W + 1
    masks = _tap_masks(H, W)

    return pl.pallas_call(
        functools.partial(conv_pair_kernel, width=W),
        out_shape=jax.ShapeDtypeStruct((B, C2, HW), jnp.bfloat16),
        grid=(B,),
        in_specs=[
            pl.BlockSpec((1, C0, HW), lambda n: (n, 0, 0)),
            pl.BlockSpec((9, HW), lambda n: (0, 0)),
            pl.BlockSpec((9, C1, C0), lambda n: (0, 0, 0)),
            pl.BlockSpec((C1, 1), lambda n: (0, 0)),
            pl.BlockSpec((9, C2, C1), lambda n: (0, 0, 0)),
            pl.BlockSpec((C2, 1), lambda n: (0, 0)),
        ],
        out_specs=pl.BlockSpec((1, C2, HW), lambda n: (n, 0, 0)),
        scratch_shapes=[
            pltpu.VMEM((C0, HW + 2 * pad), jnp.bfloat16),
            pltpu.VMEM((C1, HW + 2 * pad), jnp.bfloat16),
        ],
        compiler_params=pltpu.CompilerParams(
            dimension_semantics=("parallel",),       # one image per step, megacore-able
            vmem_limit_bytes=32 * 1024 * 1024,
        ),
    )(x, masks, w1, b1.reshape(C1, 1), w2, b2.reshape(C2, 1))


def linear(x, w, b, *, block_k=32768):
    """x: (B, F) bf16, w: (F, N) bf16, b: (N,) f32 -> (B, N) f32."""
    B, F = x.shape
    N = w.shape[1]
    tk = _pick_k_tile(F, block_k)
    cost = pl.CostEstimate(
        flops=2 * B * F * N,
        transcendentals=0,
        bytes_accessed=x.size * x.dtype.itemsize
        + w.size * w.dtype.itemsize
        + B * N * 4,
    )
    return pl.pallas_call(
        fc_kernel,
        out_shape=jax.ShapeDtypeStruct((B, N), jnp.float32),
        grid=(F // tk,),
        in_specs=[
            pl.BlockSpec((B, tk), lambda k: (0, k)),
            pl.BlockSpec((tk, N), lambda k: (k, 0)),
            pl.BlockSpec((1, N), lambda k: (0, 0)),
        ],
        out_specs=pl.BlockSpec((B, N), lambda k: (0, 0)),
        compiler_params=pltpu.CompilerParams(
            dimension_semantics=("arbitrary",),      # reduction axis
            vmem_limit_bytes=32 * 1024 * 1024,
        ),
        cost_estimate=cost,
    )(x, w, b.reshape(1, N))


def preprocess_params(params):
    """One-time conversion of PyTorch-convention params to kernel layout.

    Conv weights (Cout, Cin, 3, 3) -> (9, Cout, Cin) bf16 (tap index = kh*3+kw);
    FC weight (out, in) -> (in, out) bf16.  Because the conv output is emitted
    in NCHW-flatten order, the FC rows need NO permutation.
    """
    def conv_w(w):
        cout, cin = w.shape[0], w.shape[1]
        return jnp.transpose(w, (2, 3, 0, 1)).reshape(9, cout, cin).astype(jnp.bfloat16)

    return {
        "w1": conv_w(params["w1"]),
        "b1": params["b1"],
        "w2": conv_w(params["w2"]),
        "b2": params["b2"],
        "wfc": jnp.transpose(params["wfc"]).astype(jnp.bfloat16),
        "bfc": params["bfc"],
    }


@functools.partial(jax.jit, static_argnames=("fc_block_k",))
def ocrnet_forward(x_nchw, params, fc_block_k=32768):
    """Forward pass equivalent to OCRNet.forward (input NCHW, PyTorch convention).

    `params` must be the output of preprocess_params.
    """
    B, C0, H, W = x_nchw.shape
    x = x_nchw.reshape(B, C0, H * W)                       # free reshape, NCHW kept
    y = conv_pair(x, params["w1"], params["b1"],
                  params["w2"], params["b2"], H, W)        # (B, 32, H*W) bf16
    feats = y.reshape(B, -1)                               # NCHW flatten == x.view(B,-1)
    return linear(feats, params["wfc"], params["bfc"], block_k=fc_block_k)


# ---------------------------------------------------------------------------
# Pure-JAX reference (PyTorch semantics, mirroring the kernel's bf16 rounding)
# ---------------------------------------------------------------------------

def ocrnet_reference(x_nchw, params):
    def q(v):  # bf16 round-trip (the kernel feeds bf16 into the MXU, f32 accumulate)
        return v.astype(jnp.bfloat16).astype(jnp.float32)

    def conv(x, w, b):
        y = jax.lax.conv_general_dilated(
            q(x), q(w), window_strides=(1, 1), padding="SAME",
            dimension_numbers=("NCHW", "OIHW", "NCHW"),
            precision=jax.lax.Precision.HIGHEST)
        return jnp.maximum(y + b[None, :, None, None], 0.0)

    y = conv(x_nchw, params["w1"], params["b1"])
    y = conv(y, params["w2"], params["b2"])
    flat = y.reshape(y.shape[0], -1)                       # PyTorch x.view(B, -1)
    return jnp.dot(q(flat), q(params["wfc"].T),
                   precision=jax.lax.Precision.HIGHEST) + params["bfc"]


# ---------------------------------------------------------------------------
# Deterministic parameter init (PyTorch-convention shapes) + driver
# ---------------------------------------------------------------------------

def init_params(key, H, W):
    num_features = 32 * H * W
    k1, k2, k3, k4, k5, k6 = jax.random.split(key, 6)
    return {
        "w1": jax.random.normal(k1, (16, 3, 3, 3), jnp.float32) / np.sqrt(27.0),
        "b1": jax.random.normal(k2, (16,), jnp.float32) * 0.01,
        "w2": jax.random.normal(k3, (32, 16, 3, 3), jnp.float32) / np.sqrt(144.0),
        "b2": jax.random.normal(k4, (32,), jnp.float32) * 0.01,
        "wfc": jax.random.normal(k5, (86, num_features), jnp.float32)
        / np.sqrt(num_features),
        "bfc": jax.random.normal(k6, (86,), jnp.float32) * 0.01,
    }


if __name__ == "__main__":
    # Small shapes consistent with the module: input (B, 3, H, W); the FC layer's
    # in-features are 32*H*W (num_features = 32*64*64 in the original module).
    B, Cin, H, W = 2, 3, 16, 16
    key = jax.random.PRNGKey(0)
    kx, kp = jax.random.split(key)
    x = jax.random.normal(kx, (B, Cin, H, W), jnp.float32)
    params = init_params(kp, H, W)
    kernel_params = preprocess_params(params)

    # fc_block_k=2048 -> F=8192 splits into 4 reduction tiles, exercising the
    # pl.when init / accumulate path even at this small test size.
    out = jax.block_until_ready(ocrnet_forward(x, kernel_params, fc_block_k=2048))
    ref = jax.block_until_ready(ocrnet_reference(x, params))

    assert out.shape == (B, 86), out.shape
    err = float(np.max(np.abs(np.asarray(out) - np.asarray(ref))))
    assert np.allclose(np.asarray(out), np.asarray(ref), rtol=2e-2, atol=2e-2), err
    print("KERNEL_OK")
</pallas_src>

<mosaic_0001>
module attributes {stable_mosaic.version = 11 : i64} {
  func.func @fc_kernel(%arg0: i32, %arg1: memref<2x2048xbf16, #tpu.memory_space<vmem>>, %arg2: memref<2048x86xbf16, #tpu.memory_space<vmem>>, %arg3: memref<1x86xf32, #tpu.memory_space<vmem>>, %arg4: memref<2x86xf32, #tpu.memory_space<vmem>>) attributes {dimension_semantics = [#tpu.dimension_semantics<arbitrary>], iteration_bounds = array<i64: 4>, scalar_prefetch = 0 : i64, scratch_operands = 0 : i64, tpu.core_type = #tpu.core_type<tc>, window_params = [{transform_indices = @transform_0, window_bounds = array<i64: 2, 2048>}, {transform_indices = @transform_1, window_bounds = array<i64: 2048, 86>}, {pipeline_mode = #tpu.pipeline_mode<synchronous>, transform_indices = @transform_2, window_bounds = array<i64: 1, 86>}, {pipeline_mode = #tpu.pipeline_mode<synchronous>, transform_indices = @transform_3, window_bounds = array<i64: 2, 86>}]} {
    %c0_i32 = arith.constant 0 : i32
    %0 = arith.cmpi eq, %arg0, %c0_i32 : i32
    %1 = arith.extui %0 : i1 to i32
    %c0_i32_0 = arith.constant 0 : i32
    %2 = arith.cmpi ne, %1, %c0_i32_0 : i32
    scf.if %2 {
      %c0_8 = arith.constant 0 : index
      %c0_9 = arith.constant 0 : index
      %9 = vector.load %arg3[%c0_8, %c0_9] : memref<1x86xf32, #tpu.memory_space<vmem>>, vector<1x86xf32>
      %10 = vector.shape_cast %9 : vector<1x86xf32> to vector<1x86xf32>
      %11 = vector.broadcast %10 : vector<1x86xf32> to vector<2x86xf32>
      %c0_10 = arith.constant 0 : index
      %c0_11 = arith.constant 0 : index
      %12 = vector.load %arg4[%c0_10, %c0_11] : memref<2x86xf32, #tpu.memory_space<vmem>>, vector<2x86xf32>
      tpu.vector_store %arg4[%c0_10, %c0_11], %11 {strides = array<i32>} : memref<2x86xf32, #tpu.memory_space<vmem>>, vector<2x86xf32>,
    } else {
    }
    %c0 = arith.constant 0 : index
    %c0_1 = arith.constant 0 : index
    %3 = vector.load %arg4[%c0, %c0_1] : memref<2x86xf32, #tpu.memory_space<vmem>>, vector<2x86xf32>
    %c0_2 = arith.constant 0 : index
    %c0_3 = arith.constant 0 : index
    %4 = vector.load %arg1[%c0_2, %c0_3] : memref<2x2048xbf16, #tpu.memory_space<vmem>>, vector<2x2048xbf16>
    %c0_4 = arith.constant 0 : index
    %c0_5 = arith.constant 0 : index
    %5 = vector.load %arg2[%c0_4, %c0_5] : memref<2048x86xbf16, #tpu.memory_space<vmem>>, vector<2048x86xbf16>
    %cst = arith.constant dense<0.000000e+00> : vector<2x86xf32>
    %6 = tpu.matmul %4, %5, %cst {dimension_numbers = #tpu.dot_dimension_numbers<[1], [0], [0], [1], [0, 0, 1, 1], [], []>} : vector<2x2048xbf16>, vector<2048x86xbf16>, vector<2x86xf32> -> vector<2x86xf32>
    %7 = arith.addf %3, %6 : vector<2x86xf32>
    %c0_6 = arith.constant 0 : index
    %c0_7 = arith.constant 0 : index
    %8 = vector.load %arg4[%c0_6, %c0_7] : memref<2x86xf32, #tpu.memory_space<vmem>>, vector<2x86xf32>
    tpu.vector_store %arg4[%c0_6, %c0_7], %7 {strides = array<i32>} : memref<2x86xf32, #tpu.memory_space<vmem>>, vector<2x86xf32>,
    return
  }
  func.func @transform_0(%arg0: i32) -> (i32, i32) {
    %c0_i32 = arith.constant 0 : i32
    %c0_i32_0 = arith.constant 0 : i32
    return %c0_i32, %arg0 : i32, i32
  }
  func.func @transform_1(%arg0: i32) -> (i32, i32) {
    %c0_i32 = arith.constant 0 : i32
    %c0_i32_0 = arith.constant 0 : i32
    return %arg0, %c0_i32 : i32, i32
  }
  func.func @transform_2(%arg0: i32) -> (i32, i32) {
    %c0_i32 = arith.constant 0 : i32
    %c0_i32_0 = arith.constant 0 : i32
    %c0_i32_1 = arith.constant 0 : i32
    return %c0_i32, %c0_i32_0 : i32, i32
  }
  func.func @transform_3(%arg0: i32) -> (i32, i32) {
    %c0_i32 = arith.constant 0 : i32
    %c0_i32_0 = arith.constant 0 : i32
    %c0_i32_1 = arith.constant 0 : i32
    return %c0_i32, %c0_i32_0 : i32, i32
  }
}

module attributes {stable_mosaic.version = 11 : i64} {
  func.func @conv_pair_kernel(%arg0: i32, %arg1: memref<1x3x256xf32, #tpu.memory_space<vmem>>, %arg2: memref<9x256xbf16, #tpu.memory_space<vmem>>, %arg3: memref<9x16x3xbf16, #tpu.memory_space<vmem>>, %arg4: memref<16x1xf32, #tpu.memory_space<vmem>>, %arg5: memref<9x32x16xbf16, #tpu.memory_space<vmem>>, %arg6: memref<32x1xf32, #tpu.memory_space<vmem>>, %arg7: memref<1x32x256xbf16, #tpu.memory_space<vmem>>, %arg8: memref<3x290xbf16, #tpu.memory_space<vmem>>, %arg9: memref<16x290xbf16, #tpu.memory_space<vmem>>) attributes {dimension_semantics = [#tpu.dimension_semantics<parallel>], iteration_bounds = array<i64: 2>, scalar_prefetch = 0 : i64, scratch_operands = 2 : i64, tpu.core_type = #tpu.core_type<tc>, window_params = [{transform_indices = @transform_0, window_bounds = array<i64: 1, 3, 256>}, {pipeline_mode = #tpu.pipeline_mode<synchronous>, transform_indices = @transform_1, window_bounds = array<i64: 9, 256>}, {pipeline_mode = #tpu.pipeline_mode<synchronous>, transform_indices = @transform_2, window_bounds = array<i64: 9, 16, 3>}, {pipeline_mode = #tpu.pipeline_mode<synchronous>, transform_indices = @transform_3, window_bounds = array<i64: 16, 1>}, {pipeline_mode = #tpu.pipeline_mode<synchronous>, transform_indices = @transform_4, window_bounds = array<i64: 9, 32, 16>}, {pipeline_mode = #tpu.pipeline_mode<synchronous>, transform_indices = @transform_5, window_bounds = array<i64: 32, 1>}, {transform_indices = @transform_6, window_bounds = array<i64: 1, 32, 256>}]} {
    %cst = arith.constant 0.000000e+00 : bf16
    %0 = vector.broadcast %cst : bf16 to vector<3x290xbf16>
    %c0 = arith.constant 0 : index
    %c0_0 = arith.constant 0 : index
    %1 = vector.load %arg8[%c0, %c0_0] : memref<3x290xbf16, #tpu.memory_space<vmem>>, vector<3x290xbf16>
    tpu.vector_store %arg8[%c0, %c0_0], %0 {strides = array<i32>} : memref<3x290xbf16, #tpu.memory_space<vmem>>, vector<3x290xbf16>,
    %cst_1 = arith.constant 0.000000e+00 : bf16
    %2 = vector.broadcast %cst_1 : bf16 to vector<16x290xbf16>
    %c0_2 = arith.constant 0 : index
    %c0_3 = arith.constant 0 : index
    %3 = vector.load %arg9[%c0_2, %c0_3] : memref<16x290xbf16, #tpu.memory_space<vmem>>, vector<16x290xbf16>
    tpu.vector_store %arg9[%c0_2, %c0_3], %2 {strides = array<i32>} : memref<16x290xbf16, #tpu.memory_space<vmem>>, vector<16x290xbf16>,
    %c0_4 = arith.constant 0 : index
    %c0_5 = arith.constant 0 : index
    %c0_6 = arith.constant 0 : index
    %4 = vector.load %arg1[%c0_4, %c0_5, %c0_6] : memref<1x3x256xf32, #tpu.memory_space<vmem>>, vector<1x3x256xf32>
    %5 = vector.shape_cast %4 : vector<1x3x256xf32> to vector<3x256xf32>
    %6 = arith.truncf %5 : vector<3x256xf32> to vector<3x256xbf16>
    %c0_7 = arith.constant 0 : index
    %c17 = arith.constant 17 : index
    %7 = vector.load %arg8[%c0_7, %c17] : memref<3x290xbf16, #tpu.memory_space<vmem>>, vector<3x256xbf16>
    tpu.vector_store %arg8[%c0_7, %c17], %6 {strides = array<i32>} : memref<3x290xbf16, #tpu.memory_space<vmem>>, vector<3x256xbf16>,
    %cst_8 = arith.constant 0.000000e+00 : f32
    %8 = vector.broadcast %cst_8 : f32 to vector<16x256xf32>
    %c0_9 = arith.constant 0 : index
    %c0_10 = arith.constant 0 : index
    %9 = vector.load %arg8[%c0_9, %c0_10] : memref<3x290xbf16, #tpu.memory_space<vmem>>, vector<3x256xbf16>
    %c0_11 = arith.constant 0 : index
    %c0_12 = arith.constant 0 : index
    %10 = vector.load %arg2[%c0_11, %c0_12] : memref<9x256xbf16, #tpu.memory_space<vmem>>, vector<1x256xbf16>
    %11 = vector.broadcast %10 : vector<1x256xbf16> to vector<3x256xbf16>
    %12 = arith.mulf %9, %11 : vector<3x256xbf16>
    %c0_13 = arith.constant 0 : index
    %c0_14 = arith.constant 0 : index
    %c0_15 = arith.constant 0 : index
    %13 = vector.load %arg3[%c0_13, %c0_14, %c0_15] : memref<9x16x3xbf16, #tpu.memory_space<vmem>>, vector<1x16x3xbf16>
    %14 = vector.shape_cast %13 : vector<1x16x3xbf16> to vector<16x3xbf16>
    %cst_16 = arith.constant dense<0.000000e+00> : vector<16x256xf32>
    %15 = tpu.matmul %14, %12, %cst_16 {dimension_numbers = #tpu.dot_dimension_numbers<[1], [0], [0], [1], [0, 0, 1, 1], [], []>} : vector<16x3xbf16>, vector<3x256xbf16>, vector<16x256xf32> -> vector<16x256xf32>
    %16 = arith.addf %8, %15 : vector<16x256xf32>
    %c0_17 = arith.constant 0 : index
    %c1 = arith.constant 1 : index
    %17 = vector.load %arg8[%c0_17, %c1] : memref<3x290xbf16, #tpu.memory_space<vmem>>, vector<3x256xbf16>
    %c1_18 = arith.constant 1 : index
    %c0_19 = arith.constant 0 : index
    %18 = vector.load %arg2[%c1_18, %c0_19] : memref<9x256xbf16, #tpu.memory_space<vmem>>, vector<1x256xbf16>
    %19 = vector.broadcast %18 : vector<1x256xbf16> to vector<3x256xbf16>
    %20 = arith.mulf %17, %19 : vector<3x256xbf16>
    %c1_20 = arith.constant 1 : index
    %c0_21 = arith.constant 0 : index
    %c0_22 = arith.constant 0 : index
    %21 = vector.load %arg3[%c1_20, %c0_21, %c0_22] : memref<9x16x3xbf16, #tpu.memory_space<vmem>>, vector<1x16x3xbf16>
    %22 = vector.shape_cast %21 : vector<1x16x3xbf16> to vector<16x3xbf16>
    %cst_23 = arith.constant dense<0.000000e+00> : vector<16x256xf32>
    %23 = tpu.matmul %22, %20, %cst_23 {dimension_numbers = #tpu.dot_dimension_numbers<[1], [0], [0], [1], [0, 0, 1, 1], [], []>} : vector<16x3xbf16>, vector<3x256xbf16>, vector<16x256xf32> -> vector<16x256xf32>
    %24 = arith.addf %16, %23 : vector<16x256xf32>
    %c0_24 = arith.constant 0 : index
    %c2 = arith.constant 2 : index
    %25 = vector.load %arg8[%c0_24, %c2] : memref<3x290xbf16, #tpu.memory_space<vmem>>, vector<3x256xbf16>
    %c2_25 = arith.constant 2 : index
    %c0_26 = arith.constant 0 : index
    %26 = vector.load %arg2[%c2_25, %c0_26] : memref<9x256xbf16, #tpu.memory_space<vmem>>, vector<1x256xbf16>
    %27 = vector.broadcast %26 : vector<1x256xbf16> to vector<3x256xbf16>
    %28 = arith.mulf %25, %27 : vector<3x256xbf16>
    %c2_27 = arith.constant 2 : index
    %c0_28 = arith.constant 0 : index
    %c0_29 = arith.constant 0 : index
    %29 = vector.load %arg3[%c2_27, %c0_28, %c0_29] : memref<9x16x3xbf16, #tpu.memory_space<vmem>>, vector<1x16x3xbf16>
    %30 = vector.shape_cast %29 : vector<1x16x3xbf16> to vector<16x3xbf16>
    %cst_30 = arith.constant dense<0.000000e+00> : vector<16x256xf32>
    %31 = tpu.matmul %30, %28, %cst_30 {dimension_numbers = #tpu.dot_dimension_numbers<[1], [0], [0], [1], [0, 0, 1, 1], [], []>} : vector<16x3xbf16>, vector<3x256xbf16>, vector<16x256xf32> -> vector<16x256xf32>
    %32 = arith.addf %24, %31 : vector<16x256xf32>
    %c0_31 = arith.constant 0 : index
    %c16 = arith.constant 16 : index
    %33 = vector.load %arg8[%c0_31, %c16] : memref<3x290xbf16, #tpu.memory_space<vmem>>, vector<3x256xbf16>
    %c3 = arith.constant 3 : index
    %c0_32 = arith.constant 0 : index
    %34 = vector.load %arg2[%c3, %c0_32] : memref<9x256xbf16, #tpu.memory_space<vmem>>, vector<1x256xbf16>
    %35 = vector.broadcast %34 : vector<1x256xbf16> to vector<3x256xbf16>
    %36 = arith.mulf %33, %35 : vector<3x256xbf16>
    %c3_33 = arith.constant 3 : index
    %c0_34 = arith.constant 0 : index
    %c0_35 = arith.constant 0 : index
    %37 = vector.load %arg3[%c3_33, %c0_34, %c0_35] : memref<9x16x3xbf16, #tpu.memory_space<vmem>>, vector<1x16x3xbf16>
    %38 = vector.shape_cast %37 : vector<1x16x3xbf16> to vector<16x3xbf16>
    %cst_36 = arith.constant dense<0.000000e+00> : vector<16x256xf32>
    %39 = tpu.matmul %38, %36, %cst_36 {dimension_numbers = #tpu.dot_dimension_numbers<[1], [0], [0], [1], [0, 0, 1, 1], [], []>} : vector<16x3xbf16>, vector<3x256xbf16>, vector<16x256xf32> -> vector<16x256xf32>
    %40 = arith.addf %32, %39 : vector<16x256xf32>
    %c0_37 = arith.constant 0 : index
    %c17_38 = arith.constant 17 : index
    %41 = vector.load %arg8[%c0_37, %c17_38] : memref<3x290xbf16, #tpu.memory_space<vmem>>, vector<3x256xbf16>
    %c4 = arith.constant 4 : index
    %c0_39 = arith.constant 0 : index
    %42 = vector.load %arg2[%c4, %c0_39] : memref<9x256xbf16, #tpu.memory_space<vmem>>, vector<1x256xbf16>
    %43 = vector.broadcast %42 : vector<1x256xbf16> to vector<3x256xbf16>
    %44 = arith.mulf %41, %43 : vector<3x256xbf16>
    %c4_40 = arith.constant 4 : index
    %c0_41 = arith.constant 0 : index
    %c0_42 = arith.constant 0 : index
    %45 = vector.load %arg3[%c4_40, %c0_41, %c0_42] : memref<9x16x3xbf16, #tpu.memory_space<vmem>>, vector<1x16x3xbf16>
    %46 = vector.shape_cast %45 : vector<1x16x3xbf16> to vector<16x3xbf16>
    %cst_43 = arith.constant dense<0.000000e+00> : vector<16x256xf32>
    %47 = tpu.matmul %46, %44, %cst_43 {dimension_numbers = #tpu.dot_dimension_numbers<[1], [0], [0], [1], [0, 0, 1, 1], [], []>} : vector<16x3xbf16>, vector<3x256xbf16>, vector<16x256xf32> -> vector<16x256xf32>
    %48 = arith.addf %40, %47 : vector<16x256xf32>
    %c0_44 = arith.constant 0 : index
    %c18 = arith.constant 18 : index
    %49 = vector.load %arg8[%c0_44, %c18] : memref<3x290xbf16, #tpu.memory_space<vmem>>, vector<3x256xbf16>
    %c5 = arith.constant 5 : index
    %c0_45 = arith.constant 0 : index
    %50 = vector.load %arg2[%c5, %c0_45] : memref<9x256xbf16, #tpu.memory_space<vmem>>, vector<1x256xbf16>
    %51 = vector.broadcast %50 : vector<1x256xbf16> to vector<3x256xbf16>
    %52 = arith.mulf %49, %51 : vector<3x256xbf16>
    %c5_46 = arith.constant 5 : index
    %c0_47 = arith.constant 0 : index
    %c0_48 = arith.constant 0 : index
    %53 = vector.load %arg3[%c5_46, %c0_47, %c0_48] : memref<9x16x3xbf16, #tpu.memory_space<vmem>>, vector<1x16x3xbf16>
    %54 = vector.shape_cast %53 : vector<1x16x3xbf16> to vector<16x3xbf16>
    %cst_49 = arith.constant dense<0.000000e+00> : vector<16x256xf32>
    %55 = tpu.matmul %54, %52, %cst_49 {dimension_numbers = #tpu.dot_dimension_numbers<[1], [0], [0], [1], [0, 0, 1, 1], [], []>} : vector<16x3xbf16>, vector<3x256xbf16>, vector<16x256xf32> -> vector<16x256xf32>
    %56 = arith.addf %48, %55 : vector<16x256xf32>
    %c0_50 = arith.constant 0 : index
    %c32 = arith.constant 32 : index
    %57 = vector.load %arg8[%c0_50, %c32] : memref<3x290xbf16, #tpu.memory_space<vmem>>, vector<3x256xbf16>
    %c6 = arith.constant 6 : index
    %c0_51 = arith.constant 0 : index
    %58 = vector.load %arg2[%c6, %c0_51] : memref<9x256xbf16, #tpu.memory_space<vmem>>, vector<1x256xbf16>
    %59 = vector.broadcast %58 : vector<1x256xbf16> to vector<3x256xbf16>
    %60 = arith.mulf %57, %59 : vector<3x256xbf16>
    %c6_52 = arith.constant 6 : index
    %c0_53 = arith.constant 0 : index
    %c0_54 = arith.constant 0 : index
    %61 = vector.load %arg3[%c6_52, %c0_53, %c0_54] : memref<9x16x3xbf16, #tpu.memory_space<vmem>>, vector<1x16x3xbf16>
    %62 = vector.shape_cast %61 : vector<1x16x3xbf16> to vector<16x3xbf16>
    %cst_55 = arith.constant dense<0.000000e+00> : vector<16x256xf32>
    %63 = tpu.matmul %62, %60, %cst_55 {dimension_numbers = #tpu.dot_dimension_numbers<[1], [0], [0], [1], [0, 0, 1, 1], [], []>} : vector<16x3xbf16>, vector<3x256xbf16>, vector<16x256xf32> -> vector<16x256xf32>
    %64 = arith.addf %56, %63 : vector<16x256xf32>
    %c0_56 = arith.constant 0 : index
    %c33 = arith.constant 33 : index
    %65 = vector.load %arg8[%c0_56, %c33] : memref<3x290xbf16, #tpu.memory_space<vmem>>, vector<3x256xbf16>
    %c7 = arith.constant 7 : index
    %c0_57 = arith.constant 0 : index
    %66 = vector.load %arg2[%c7, %c0_57] : memref<9x256xbf16, #tpu.memory_space<vmem>>, vector<1x256xbf16>
    %67 = vector.broadcast %66 : vector<1x256xbf16> to vector<3x256xbf16>
    %68 = arith.mulf %65, %67 : vector<3x256xbf16>
    %c7_58 = arith.constant 7 : index
    %c0_59 = arith.constant 0 : index
    %c0_60 = arith.constant 0 : index
    %69 = vector.load %arg3[%c7_58, %c0_59, %c0_60] : memref<9x16x3xbf16, #tpu.memory_space<vmem>>, vector<1x16x3xbf16>
    %70 = vector.shape_cast %69 : vector<1x16x3xbf16> to vector<16x3xbf16>
    %cst_61 = arith.constant dense<0.000000e+00> : vector<16x256xf32>
    %71 = tpu.matmul %70, %68, %cst_61 {dimension_numbers = #tpu.dot_dimension_numbers<[1], [0], [0], [1], [0, 0, 1, 1], [], []>} : vector<16x3xbf16>, vector<3x256xbf16>, vector<16x256xf32> -> vector<16x256xf32>
    %72 = arith.addf %64, %71 : vector<16x256xf32>
    %c0_62 = arith.constant 0 : index
    %c34 = arith.constant 34 : index
    %73 = vector.load %arg8[%c0_62, %c34] : memref<3x290xbf16, #tpu.memory_space<vmem>>, vector<3x256xbf16>
    %c8 = arith.constant 8 : index
    %c0_63 = arith.constant 0 : index
    %74 = vector.load %arg2[%c8, %c0_63] : memref<9x256xbf16, #tpu.memory_space<vmem>>, vector<1x256xbf16>
    %75 = vector.broadcast %74 : vector<1x256xbf16> to vector<3x256xbf16>
    %76 = arith.mulf %73, %75 : vector<3x256xbf16>
    %c8_64 = arith.constant 8 : index
    %c0_65 = arith.constant 0 : index
    %c0_66 = arith.constant 0 : index
    %77 = vector.load %arg3[%c8_64, %c0_65, %c0_66] : memref<9x16x3xbf16, #tpu.memory_space<vmem>>, vector<1x16x3xbf16>
    %78 = vector.shape_cast %77 : vector<1x16x3xbf16> to vector<16x3xbf16>
    %cst_67 = arith.constant dense<0.000000e+00> : vector<16x256xf32>
    %79 = tpu.matmul %78, %76, %cst_67 {dimension_numbers = #tpu.dot_dimension_numbers<[1], [0], [0], [1], [0, 0, 1, 1], [], []>} : vector<16x3xbf16>, vector<3x256xbf16>, vector<16x256xf32> -> vector<16x256xf32>
    %80 = arith.addf %72, %79 : vector<16x256xf32>
    %c0_68 = arith.constant 0 : index
    %c0_69 = arith.constant 0 : index
    %81 = vector.load %arg4[%c0_68, %c0_69] : memref<16x1xf32, #tpu.memory_space<vmem>>, vector<16x1xf32>
    %82 = vector.broadcast %81 : vector<16x1xf32> to vector<16x256xf32>
    %83 = arith.addf %80, %82 : vector<16x256xf32>
    %cst_70 = arith.constant 0.000000e+00 : f32
    %84 = vector.broadcast %cst_70 : f32 to vector<16x256xf32>
    %85 = arith.maximumf %83, %84 : vector<16x256xf32>
    %86 = arith.truncf %85 : vector<16x256xf32> to vector<16x256xbf16>
    %c0_71 = arith.constant 0 : index
    %c17_72 = arith.constant 17 : index
    %87 = vector.load %arg9[%c0_71, %c17_72] : memref<16x290xbf16, #tpu.memory_space<vmem>>, vector<16x256xbf16>
    tpu.vector_store %arg9[%c0_71, %c17_72], %86 {strides = array<i32>} : memref<16x290xbf16, #tpu.memory_space<vmem>>, vector<16x256xbf16>,
    %cst_73 = arith.constant 0.000000e+00 : f32
    %88 = vector.broadcast %cst_73 : f32 to vector<32x256xf32>
    %c0_74 = arith.constant 0 : index
    %c0_75 = arith.constant 0 : index
    %89 = vector.load %arg9[%c0_74, %c0_75] : memref<16x290xbf16, #tpu.memory_space<vmem>>, vector<16x256xbf16>
    %c0_76 = arith.constant 0 : index
    %c0_77 = arith.constant 0 : index
    %90 = vector.load %arg2[%c0_76, %c0_77] : memref<9x256xbf16, #tpu.memory_space<vmem>>, vector<1x256xbf16>
    %91 = vector.broadcast %90 : vector<1x256xbf16> to vector<16x256xbf16>
    %92 = arith.mulf %89, %91 : vector<16x256xbf16>
    %c0_78 = arith.constant 0 : index
    %c0_79 = arith.constant 0 : index
    %c0_80 = arith.constant 0 : index
    %93 = vector.load %arg5[%c0_78, %c0_79, %c0_80] : memref<9x32x16xbf16, #tpu.memory_space<vmem>>, vector<1x32x16xbf16>
    %94 = vector.shape_cast %93 : vector<1x32x16xbf16> to vector<32x16xbf16>
    %cst_81 = arith.constant dense<0.000000e+00> : vector<32x256xf32>
    %95 = tpu.matmul %94, %92, %cst_81 {dimension_numbers = #tpu.dot_dimension_numbers<[1], [0], [0], [1], [0, 0, 1, 1], [], []>} : vector<32x16xbf16>, vector<16x256xbf16>, vector<32x256xf32> -> vector<32x256xf32>
    %96 = arith.addf %88, %95 : vector<32x256xf32>
    %c0_82 = arith.constant 0 : index
    %c1_83 = arith.constant 1 : index
    %97 = vector.load %arg9[%c0_82, %c1_83] : memref<16x290xbf16, #tpu.memory_space<vmem>>, vector<16x256xbf16>
    %c1_84 = arith.constant 1 : index
    %c0_85 = arith.constant 0 : index
    %98 = vector.load %arg2[%c1_84, %c0_85] : memref<9x256xbf16, #tpu.memory_space<vmem>>, vector<1x256xbf16>
    %99 = vector.broadcast %98 : vector<1x256xbf16> to vector<16x256xbf16>
    %100 = arith.mulf %97, %99 : vector<16x256xbf16>
    %c1_86 = arith.constant 1 : index
    %c0_87 = arith.constant 0 : index
    %c0_88 = arith.constant 0 : index
    %101 = vector.load %arg5[%c1_86, %c0_87, %c0_88] : memref<9x32x16xbf16, #tpu.memory_space<vmem>>, vector<1x32x16xbf16>
    %102 = vector.shape_cast %101 : vector<1x32x16xbf16> to vector<32x16xbf16>
    %cst_89 = arith.constant dense<0.000000e+00> : vector<32x256xf32>
    %103 = tpu.matmul %102, %100, %cst_89 {dimension_numbers = #tpu.dot_dimension_numbers<[1], [0], [0], [1], [0, 0, 1, 1], [], []>} : vector<32x16xbf16>, vector<16x256xbf16>, vector<32x256xf32> -> vector<32x256xf32>
    %104 = arith.addf %96, %103 : vector<32x256xf32>
    %c0_90 = arith.constant 0 : index
    %c2_91 = arith.constant 2 : index
    %105 = vector.load %arg9[%c0_90, %c2_91] : memref<16x290xbf16, #tpu.memory_space<vmem>>, vector<16x256xbf16>
    %c2_92 = arith.constant 2 : index
    %c0_93 = arith.constant 0 : index
    %106 = vector.load %arg2[%c2_92, %c0_93] : memref<9x256xbf16, #tpu.memory_space<vmem>>, vector<1x256xbf16>
    %107 = vector.broadcast %106 : vector<1x256xbf16> to vector<16x256xbf16>
    %108 = arith.mulf %105, %107 : vector<16x256xbf16>
    %c2_94 = arith.constant 2 : index
    %c0_95 = arith.constant 0 : index
    %c0_96 = arith.constant 0 : index
    %109 = vector.load %arg5[%c2_94, %c0_95, %c0_96] : memref<9x32x16xbf16, #tpu.memory_space<vmem>>, vector<1x32x16xbf16>
    %110 = vector.shape_cast %109 : vector<1x32x16xbf16> to vector<32x16xbf16>
    %cst_97 = arith.constant dense<0.000000e+00> : vector<32x256xf32>
    %111 = tpu.matmul %110, %108, %cst_97 {dimension_numbers = #tpu.dot_dimension_numbers<[1], [0], [0], [1], [0, 0, 1, 1], [], []>} : vector<32x16xbf16>, vector<16x256xbf16>, vector<32x256xf32> -> vector<32x256xf32>
    %112 = arith.addf %104, %111 : vector<32x256xf32>
    %c0_98 = arith.constant 0 : index
    %c16_99 = arith.constant 16 : index
    %113 = vector.load %arg9[%c0_98, %c16_99] : memref<16x290xbf16, #tpu.memory_space<vmem>>, vector<16x256xbf16>
    %c3_100 = arith.constant 3 : index
    %c0_101 = arith.constant 0 : index
    %114 = vector.load %arg2[%c3_100, %c0_101] : memref<9x256xbf16, #tpu.memory_space<vmem>>, vector<1x256xbf16>
    %115 = vector.broadcast %114 : vector<1x256xbf16> to vector<16x256xbf16>
    %116 = arith.mulf %113, %115 : vector<16x256xbf16>
    %c3_102 = arith.constant 3 : index
    %c0_103 = arith.constant 0 : index
    %c0_104 = arith.constant 0 : index
    %117 = vector.load %arg5[%c3_102, %c0_103, %c0_104] : memref<9x32x16xbf16, #tpu.memory_space<vmem>>, vector<1x32x16xbf16>
    %118 = vector.shape_cast %117 : vector<1x32x16xbf16> to vector<32x16xbf16>
    %cst_105 = arith.constant dense<0.000000e+00> : vector<32x256xf32>
    %119 = tpu.matmul %118, %116, %cst_105 {dimension_numbers = #tpu.dot_dimension_numbers<[1], [0], [0], [1], [0, 0, 1, 1], [], []>} : vector<32x16xbf16>, vector<16x256xbf16>, vector<32x256xf32> -> vector<32x256xf32>
    %120 = arith.addf %112, %119 : vector<32x256xf32>
    %c0_106 = arith.constant 0 : index
    %c17_107 = arith.constant 17 : index
    %121 = vector.load %arg9[%c0_106, %c17_107] : memref<16x290xbf16, #tpu.memory_space<vmem>>, vector<16x256xbf16>
    %c4_108 = arith.constant 4 : index
    %c0_109 = arith.constant 0 : index
    %122 = vector.load %arg2[%c4_108, %c0_109] : memref<9x256xbf16, #tpu.memory_space<vmem>>, vector<1x256xbf16>
    %123 = vector.broadcast %122 : vector<1x256xbf16> to vector<16x256xbf16>
    %124 = arith.mulf %121, %123 : vector<16x256xbf16>
    %c4_110 = arith.constant 4 : index
    %c0_111 = arith.constant 0 : index
    %c0_112 = arith.constant 0 : index
    %125 = vector.load %arg5[%c4_110, %c0_111, %c0_112] : memref<9x32x16xbf16, #tpu.memory_space<vmem>>, vector<1x32x16xbf16>
    %126 = vector.shape_cast %125 : vector<1x32x16xbf16> to vector<32x16xbf16>
    %cst_113 = arith.constant dense<0.000000e+00> : vector<32x256xf32>
    %127 = tpu.matmul %126, %124, %cst_113 {dimension_numbers = #tpu.dot_dimension_numbers<[1], [0], [0], [1], [0, 0, 1, 1], [], []>} : vector<32x16xbf16>, vector<16x256xbf16>, vector<32x256xf32> -> vector<32x256xf32>
    %128 = arith.addf %120, %127 : vector<32x256xf32>
    %c0_114 = arith.constant 0 : index
    %c18_115 = arith.constant 18 : index
    %129 = vector.load %arg9[%c0_114, %c18_115] : memref<16x290xbf16, #tpu.memory_space<vmem>>, vector<16x256xbf16>
    %c5_116 = arith.constant 5 : index
    %c0_117 = arith.constant 0 : index
    %130 = vector.load %arg2[%c5_116, %c0_117] : memref<9x256xbf16, #tpu.memory_space<vmem>>, vector<1x256xbf16>
    %131 = vector.broadcast %130 : vector<1x256xbf16> to vector<16x256xbf16>
    %132 = arith.mulf %129, %131 : vector<16x256xbf16>
    %c5_118 = arith.constant 5 : index
    %c0_119 = arith.constant 0 : index
    %c0_120 = arith.constant 0 : index
    %133 = vector.load %arg5[%c5_118, %c0_119, %c0_120] : memref<9x32x16xbf16, #tpu.memory_space<vmem>>, vector<1x32x16xbf16>
    %134 = vector.shape_cast %133 : vector<1x32x16xbf16> to vector<32x16xbf16>
    %cst_121 = arith.constant dense<0.000000e+00> : vector<32x256xf32>
    %135 = tpu.matmul %134, %132, %cst_121 {dimension_numbers = #tpu.dot_dimension_numbers<[1], [0], [0], [1], [0, 0, 1, 1], [], []>} : vector<32x16xbf16>, vector<16x256xbf16>, vector<32x256xf32> -> vector<32x256xf32>
    %136 = arith.addf %128, %135 : vector<32x256xf32>
    %c0_122 = arith.constant 0 : index
    %c32_123 = arith.constant 32 : index
    %137 = vector.load %arg9[%c0_122, %c32_123] : memref<16x290xbf16, #tpu.memory_space<vmem>>, vector<16x256xbf16>
    %c6_124 = arith.constant 6 : index
    %c0_125 = arith.constant 0 : index
    %138 = vector.load %arg2[%c6_124, %c0_125] : memref<9x256xbf16, #tpu.memory_space<vmem>>, vector<1x256xbf16>
    %139 = vector.broadcast %138 : vector<1x256xbf16> to vector<16x256xbf16>
    %140 = arith.mulf %137, %139 : vector<16x256xbf16>
    %c6_126 = arith.constant 6 : index
    %c0_127 = arith.constant 0 : index
    %c0_128 = arith.constant 0 : index
    %141 = vector.load %arg5[%c6_126, %c0_127, %c0_128] : memref<9x32x16xbf16, #tpu.memory_space<vmem>>, vector<1x32x16xbf16>
    %142 = vector.shape_cast %141 : vector<1x32x16xbf16> to vector<32x16xbf16>
    %cst_129 = arith.constant dense<0.000000e+00> : vector<32x256xf32>
    %143 = tpu.matmul %142, %140, %cst_129 {dimension_numbers = #tpu.dot_dimension_numbers<[1], [0], [0], [1], [0, 0, 1, 1], [], []>} : vector<32x16xbf16>, vector<16x256xbf16>, vector<32x256xf32> -> vector<32x256xf32>
    %144 = arith.addf %136, %143 : vector<32x256xf32>
    %c0_130 = arith.constant 0 : index
    %c33_131 = arith.constant 33 : index
    %145 = vector.load %arg9[%c0_130, %c33_131] : memref<16x290xbf16, #tpu.memory_space<vmem>>, vector<16x256xbf16>
    %c7_132 = arith.constant 7 : index
    %c0_133 = arith.constant 0 : index
    %146 = vector.load %arg2[%c7_132, %c0_133] : memref<9x256xbf16, #tpu.memory_space<vmem>>, vector<1x256xbf16>
    %147 = vector.broadcast %146 : vector<1x256xbf16> to vector<16x256xbf16>
    %148 = arith.mulf %145, %147 : vector<16x256xbf16>
    %c7_134 = arith.constant 7 : index
    %c0_135 = arith.constant 0 : index
    %c0_136 = arith.constant 0 : index
    %149 = vector.load %arg5[%c7_134, %c0_135, %c0_136] : memref<9x32x16xbf16, #tpu.memory_space<vmem>>, vector<1x32x16xbf16>
    %150 = vector.shape_cast %149 : vector<1x32x16xbf16> to vector<32x16xbf16>
    %cst_137 = arith.constant dense<0.000000e+00> : vector<32x256xf32>
    %151 = tpu.matmul %150, %148, %cst_137 {dimension_numbers = #tpu.dot_dimension_numbers<[1], [0], [0], [1], [0, 0, 1, 1], [], []>} : vector<32x16xbf16>, vector<16x256xbf16>, vector<32x256xf32> -> vector<32x256xf32>
    %152 = arith.addf %144, %151 : vector<32x256xf32>
    %c0_138 = arith.constant 0 : index
    %c34_139 = arith.constant 34 : index
    %153 = vector.load %arg9[%c0_138, %c34_139] : memref<16x290xbf16, #tpu.memory_space<vmem>>, vector<16x256xbf16>
    %c8_140 = arith.constant 8 : index
    %c0_141 = arith.constant 0 : index
    %154 = vector.load %arg2[%c8_140, %c0_141] : memref<9x256xbf16, #tpu.memory_space<vmem>>, vector<1x256xbf16>
    %155 = vector.broadcast %154 : vector<1x256xbf16> to vector<16x256xbf16>
    %156 = arith.mulf %153, %155 : vector<16x256xbf16>
    %c8_142 = arith.constant 8 : index
    %c0_143 = arith.constant 0 : index
    %c0_144 = arith.constant 0 : index
    %157 = vector.load %arg5[%c8_142, %c0_143, %c0_144] : memref<9x32x16xbf16, #tpu.memory_space<vmem>>, vector<1x32x16xbf16>
    %158 = vector.shape_cast %157 : vector<1x32x16xbf16> to vector<32x16xbf16>
    %cst_145 = arith.constant dense<0.000000e+00> : vector<32x256xf32>
    %159 = tpu.matmul %158, %156, %cst_145 {dimension_numbers = #tpu.dot_dimension_numbers<[1], [0], [0], [1], [0, 0, 1, 1], [], []>} : vector<32x16xbf16>, vector<16x256xbf16>, vector<32x256xf32> -> vector<32x256xf32>
    %160 = arith.addf %152, %159 : vector<32x256xf32>
    %c0_146 = arith.constant 0 : index
    %c0_147 = arith.constant 0 : index
    %161 = vector.load %arg6[%c0_146, %c0_147] : memref<32x1xf32, #tpu.memory_space<vmem>>, vector<32x1xf32>
    %162 = vector.broadcast %161 : vector<32x1xf32> to vector<32x256xf32>
    %163 = arith.addf %160, %162 : vector<32x256xf32>
    %cst_148 = arith.constant 0.000000e+00 : f32
    %164 = vector.broadcast %cst_148 : f32 to vector<32x256xf32>
    %165 = arith.maximumf %163, %164 : vector<32x256xf32>
    %166 = arith.truncf %165 : vector<32x256xf32> to vector<32x256xbf16>
    %c0_149 = arith.constant 0 : index
    %c0_150 = arith.constant 0 : index
    %c0_151 = arith.constant 0 : index
    %167 = vector.load %arg7[%c0_149, %c0_150, %c0_151] : memref<1x32x256xbf16, #tpu.memory_space<vmem>>, vector<1x32x256xbf16>
    %168 = vector.shape_cast %167 : vector<1x32x256xbf16> to vector<32x256xbf16>
    %169 = vector.shape_cast %166 : vector<32x256xbf16> to vector<1x32x256xbf16>
    tpu.vector_store %arg7[%c0_149, %c0_150, %c0_151], %169 {strides = array<i32>} : memref<1x32x256xbf16, #tpu.memory_space<vmem>>, vector<1x32x256xbf16>,
    return
  }
  func.func @transform_0(%arg0: i32) -> (i32, i32, i32) {
    %c0_i32 = arith.constant 0 : i32
    %c0_i32_0 = arith.constant 0 : i32
    %c0_i32_1 = arith.constant 0 : i32
    return %arg0, %c0_i32, %c0_i32_0 : i32, i32, i32
  }
  func.func @transform_1(%arg0: i32) -> (i32, i32) {
    %c0_i32 = arith.constant 0 : i32
    %c0_i32_0 = arith.constant 0 : i32
    %c0_i32_1 = arith.constant 0 : i32
    return %c0_i32, %c0_i32_0 : i32, i32
  }
  func.func @transform_2(%arg0: i32) -> (i32, i32, i32) {
    %c0_i32 = arith.constant 0 : i32
    %c0_i32_0 = arith.constant 0 : i32
    %c0_i32_1 = arith.constant 0 : i32
    %c0_i32_2 = arith.constant 0 : i32
    return %c0_i32, %c0_i32_0, %c0_i32_1 : i32, i32, i32
  }
  func.func @transform_3(%arg0: i32) -> (i32, i32) {
    %c0_i32 = arith.constant 0 : i32
    %c0_i32_0 = arith.constant 0 : i32
    %c0_i32_1 = arith.constant 0 : i32
    return %c0_i32, %c0_i32_0 : i32, i32
  }
  func.func @transform_4(%arg0: i32) -> (i32, i32, i32) {
    %c0_i32 = arith.constant 0 : i32
    %c0_i32_0 = arith.constant 0 : i32
    %c0_i32_1 = arith.constant 0 : i32
    %c0_i32_2 = arith.constant 0 : i32
    return %c0_i32, %c0_i32_0, %c0_i32_1 : i32, i32, i32
  }
  func.func @transform_5(%arg0: i32) -> (i32, i32) {
    %c0_i32 = arith.constant 0 : i32
    %c0_i32_0 = arith.constant 0 : i32
    %c0_i32_1 = arith.constant 0 : i32
    return %c0_i32, %c0_i32_0 : i32, i32
  }
  func.func @transform_6(%arg0: i32) -> (i32, i32, i32) {
    %c0_i32 = arith.constant 0 : i32
    %c0_i32_0 = arith.constant 0 : i32
    %c0_i32_1 = arith.constant 0 : i32
    return %arg0, %c0_i32, %c0_i32_0 : i32, i32, i32
  }
}

</mosaic_0001>

<llo_original>
// kernel: ocrnet_forward.3
$region0: #{ocrnet_forward.3}
  #allocation0 [shape = 'u32[]', space=smem, size = 0x4, offset = 0x4, fixed_abs, tag = 'smem constant byte address 0x4 - core index']
  #allocation1 [shape = 'u32[144,128]{1,0:T(1,128)}', space=vmem, size = 0x12000, scoped, tag = 'internal scratch']
  %s0 = inlined_call_operand.vmem [shape: bf16[2,8192], index: 0, kind: input, shape index: {}]
  %s1 = inlined_call_operand.vmem [shape: bf16[8192,86], index: 1, kind: input, shape index: {}]
  %s2 = inlined_call_operand.vmem [shape: f32[1,86], index: 2, kind: input, shape index: {}]
  %s3 = inlined_call_operand.hbm [shape: f32[2,86], index: 3, kind: output, shape index: {}]
  %s4 = sld [smem:[#allocation0]]
  $region49: #{ocrnet_forward.3} parent=0
    _
  %s6 = ssub.s32 1, %s4
  %s7 = scalar_select 0, %s6, %s4
  $region1: #{ocrnet_forward.3} parent=0
    #allocation2 [shape = 'u8[1024]{0}', space=vmem, size = 0x400, scoped, tag = 'output window, operand 0, single buffered']
    #allocation3 [shape = 's32[2]{0}', space=sflag, size = 0x8, scoped, tag = 'scoped memory for ocrnet_forward.3']
    %8 = vsyncpa [#allocation3], 0
    loop: start=0, step=1, limit=6
    $region2: #{ocrnet_forward.3} parent=1 // loop_pre_header
      _
    $region3: #{ocrnet_forward.3} parent=1 // loop_header
      %s10 = sphi 0, %s14
      %p11 = scmp.ge.s32.totalorder %s10, 6
      %s20 = sphi 0, %s22
      %s23 = sphi 0, %s20
      %s24 = sphi 0, %s23
      %s40 = sphi 0, %s24
      %s46 = sphi 0, %s48
      %s49 = sphi 0, %s46
      %s50 = sphi 0, %s49
      %s66 = sphi 0, %s50
      %s70 = sphi 0, %s70
      %s72 = sphi 0, %s70
      %s73 = sphi 0, %s72
      %s87 = sphi 0, %s73
      %s91 = sphi 0, %s91
      %s93 = sphi 0, %s91
      %s94 = sphi 0, %s93
      %s108 = sphi 0, %s94
    $region4: #{ocrnet_forward.3} parent=1 // loop_header_branch
      %13 = sbr.rel (%p11) target = $region8
    $region5: #{ocrnet_forward.3} parent=1 // loop_body
      %s15 = ssub.s32 %s10, 1
      %s16 = ssub.s32 %s10, 2
      %s17 = sadd.s32 %s10, 1
      %s18 = ssub.s32 %s10, %s17
      %p19 = scmp.eq.s32.totalorder %s18, 0
      %s21 = sadd.s32 %s20, 1
      %s22 = scalar_select %p19, %s20, %s21
      %p25 = pneg %p19
      %p26 = scmp.eq.s32.totalorder %s10, 3
      %p27 = por %p25, %p26
      %p28 = scmp.ne.s32.totalorder %s20, %s23
      %p29 = scmp.eq.s32.totalorder %s10, 0
      %p30 = por %p28, %p29
      %p31 = scmp.ne.s32.totalorder %s20, %s23
      %p32 = scmp.eq.s32.totalorder %s15, 3
      %p33 = por %p31, %p32
      %p34 = scmp.ne.s32.totalorder %s23, %s24
      %p35 = scmp.eq.s32.totalorder %s15, 0
      %p36 = por %p34, %p35
      %p37 = scmp.ne.s32.totalorder %s23, %s24
      %p38 = scmp.eq.s32.totalorder %s16, 3
      %p39 = por %p37, %p38
      %p41 = scmp.ne.s32.totalorder %s24, %s40
      %p42 = scmp.eq.s32.totalorder %s16, 0
      %p43 = por %p41, %p42
      %s44 = ssub.s32 %s10, %s17
      %p45 = scmp.eq.s32.totalorder %s44, 0
      %s47 = sadd.s32 %s46, 1
      %s48 = scalar_select %p45, %s46, %s47
      %p51 = pneg %p45
      %p52 = scmp.eq.s32.totalorder %s10, 3
      %p53 = por %p51, %p52
      %p54 = scmp.ne.s32.totalorder %s46, %s49
      %p55 = scmp.eq.s32.totalorder %s10, 0
      %p56 = por %p54, %p55
      %p57 = scmp.ne.s32.totalorder %s46, %s49
      %p58 = scmp.eq.s32.totalorder %s15, 3
      %p59 = por %p57, %p58
      %p60 = scmp.ne.s32.totalorder %s49, %s50
      %p61 = scmp.eq.s32.totalorder %s15, 0
      %p62 = por %p60, %p61
      %p63 = scmp.ne.s32.totalorder %s49, %s50
      %p64 = scmp.eq.s32.totalorder %s16, 3
      %p65 = por %p63, %p64
      %p67 = scmp.ne.s32.totalorder %s50, %s66
      %p68 = scmp.eq.s32.totalorder %s16, 0
      %p69 = por %p67, %p68
      %s71 = sadd.s32 %s70, 1
      %p74 = scmp.eq.s32.totalorder %s10, 3
      %p75 = scmp.ne.s32.totalorder %s70, %s72
      %p76 = scmp.eq.s32.totalorder %s10, 0
      %p77 = por %p75, %p76
      %p78 = scmp.ne.s32.totalorder %s70, %s72
      %p79 = scmp.eq.s32.totalorder %s15, 3
      %p80 = por %p78, %p79
      %p81 = scmp.ne.s32.totalorder %s72, %s73
      %p82 = scmp.eq.s32.totalorder %s15, 0
      %p83 = por %p81, %p82
      %p84 = scmp.ne.s32.totalorder %s72, %s73
      %p85 = scmp.eq.s32.totalorder %s16, 3
      %p86 = por %p84, %p85
      %p88 = scmp.ne.s32.totalorder %s73, %s87
      %p89 = scmp.eq.s32.totalorder %s16, 0
      %p90 = por %p88, %p89
      %s92 = sadd.s32 %s91, 1
      %p95 = scmp.eq.s32.totalorder %s10, 3
      %p96 = scmp.ne.s32.totalorder %s91, %s93
      %p97 = scmp.eq.s32.totalorder %s10, 0
      %p98 = por %p96, %p97
      %p99 = scmp.ne.s32.totalorder %s91, %s93
      %p100 = scmp.eq.s32.totalorder %s15, 3
      %p101 = por %p99, %p100
      %p102 = scmp.ne.s32.totalorder %s93, %s94
      %p103 = scmp.eq.s32.totalorder %s15, 0
      %p104 = por %p102, %p103
      %p105 = scmp.ne.s32.totalorder %s93, %s94
      %p106 = scmp.eq.s32.totalorder %s16, 3
      %p107 = por %p105, %p106
      %p109 = scmp.ne.s32.totalorder %s94, %s108
      %p110 = scmp.eq.s32.totalorder %s16, 0
      %p111 = por %p109, %p110
      %p112 = scmp.le.s32.totalorder 1, %s10
      %p113 = scmp.lt.s32.totalorder %s10, 5
      %p114 = pnand %p112, %p113
      %p115 = pneg %p114
      // Predicated region
      $region9: #{ocrnet_forward.3} parent=5 // pred_check
        _
      $region10: #{ocrnet_forward.3} parent=5 // pred_check_branch
        %117 = sbr.rel (%p114) target = $region12
      $region11: #{ocrnet_forward.3} parent=5 // pred_region
        %s118 = ssub.s32 %s10, 1
        // Predicated region
        $region13: #{ocrnet_forward.3} parent=11 // pred_check
          %p119 = pneg %p83
        $region14: #{ocrnet_forward.3} parent=11 // pred_check_branch
          %121 = sbr.rel (%p119) target = $region16
        $region15: #{ocrnet_forward.3} parent=11 // pred_region
          _
        $region16: #{ocrnet_forward.3} parent=11 // pred_fallthru
          _
      $region12: #{ocrnet_forward.3} parent=5 // pred_fallthru
        _
      %p122 = scmp.lt.s32.totalorder %s10, 4
      // Predicated region
      $region17: #{ocrnet_forward.3} parent=5 // pred_check
        %p123 = pneg %p122
      $region18: #{ocrnet_forward.3} parent=5 // pred_check_branch
        %125 = sbr.rel (%p123) target = $region20
      $region19: #{ocrnet_forward.3} parent=5 // pred_region
        // Predicated region
        $region21: #{ocrnet_forward.3} parent=19 // pred_check
          %p126 = pneg %p30
        $region22: #{ocrnet_forward.3} parent=19 // pred_check_branch
          %128 = sbr.rel (%p126) target = $region24
        $region23: #{ocrnet_forward.3} parent=19 // pred_region
          %s129 = smul.u32 16, %s10
          %p130 = scmp.lt.s32.totalorder %s129, 63
          %s131 = scalar_select %p130, %s129, 63
          %s132 = scalar_lea.vmem %s0, %s131
          %s133 = smul.u32 16, %s10
        $region24: #{ocrnet_forward.3} parent=19 // pred_fallthru
          _
        // Predicated region
        $region25: #{ocrnet_forward.3} parent=19 // pred_check
          %p134 = pneg %p56
        $region26: #{ocrnet_forward.3} parent=19 // pred_check_branch
          %136 = sbr.rel (%p134) target = $region28
        $region27: #{ocrnet_forward.3} parent=19 // pred_region
          %s137 = smul.u32 256, %s10
          %p138 = scmp.lt.s32.totalorder %s137, 1023
          %s139 = scalar_select %p138, %s137, 1023
          %s140 = smul.addr %s139, 4
          %s141 = scalar_lea.vmem %s1, %s140
          %s142 = smul.u32 256, %s10
        $region28: #{ocrnet_forward.3} parent=19 // pred_fallthru
          _
      $region20: #{ocrnet_forward.3} parent=5 // pred_fallthru
        _
      %p143 = scmp.le.s32.totalorder 1, %s10
      %p144 = scmp.lt.s32.totalorder %s10, 5
      %p145 = pnand %p143, %p144
      %p146 = pneg %p145
      // Predicated region
      $region29: #{ocrnet_forward.3} parent=5 // pred_check
        _
      $region30: #{ocrnet_forward.3} parent=5 // pred_check_branch
        %148 = sbr.rel (%p145) target = $region32
      $region31: #{ocrnet_forward.3} parent=5 // pred_region
        %s149 = ssub.s32 %s10, 1
        %s150 = smul.u32 16, %s15
        %p151 = scmp.lt.s32.totalorder %s150, 63
        %s152 = scalar_select %p151, %s150, 63
        %s153 = scalar_lea.vmem %s0, %s152
        %p154 = pneg %p36
        %p155 = pneg %p33
        %s156 = smul.u32 256, %s15
        %p157 = scmp.lt.s32.totalorder %s156, 1023
        %s158 = scalar_select %p157, %s156, 1023
        %s159 = smul.addr %s158, 4
        %s160 = scalar_lea.vmem %s1, %s159
        %p161 = pneg %p62
        %p162 = pneg %p59
        %p163 = pneg %p83
        %p164 = pneg %p80
        %p165 = pneg %p104
        %p166 = pneg %p101
        %s167 = smul.u32 16, %s15
        %p168 = scmp.lt.s32.totalorder %s167, 63
        %s169 = scalar_select %p168, %s167, 63
        %s170 = scalar_lea.vmem %s0, %s169
        %s171 = smul.u32 16, %s15
        %s172 = smul.u32 256, %s15
        %p173 = scmp.lt.s32.totalorder %s172, 1023
        %s174 = scalar_select %p173, %s172, 1023
        %s175 = smul.addr %s174, 4
        %s176 = scalar_lea.vmem %s1, %s175
        %s177 = smul.u32 256, %s15
        %p179 = scmp.eq.s32.totalorder %s15, 0
        // Predicated region
        $region33: #{ocrnet_forward.3} parent=31 // pred_check
          %p180 = pneg %p179
        $region34: #{ocrnet_forward.3} parent=31 // pred_check_branch
          %182 = sbr.rel (%p180) target = $region36
        $region35: #{ocrnet_forward.3} parent=31 // pred_region
          %v183 = vld [vmem:[%s2] sm:$0x1]
          %v185 = vlaneseq
          %v186 = vshrl.u32 %v185, 7
          %v187 = vsub.s32 0, %v186
          %v188 = vrot.slane %v183, %v187
          %vm190 = vcmask 697344
          %191 = vst.msk [vmem:[#allocation2] sm:$0x3] %vm190, %v188
        $region36: #{ocrnet_forward.3} parent=31 // pred_fallthru
          _
        %v192 = vld [vmem:[#allocation2] sm:$0x3]
        %v193 = vld [vmem:[%s170] sm:$0xff]
        %v194 = vld [vmem:[%s170 + $0x8] sm:$0xff]
        %v195 = vld [vmem:[%s176] sm:$0xf]
        %v196 = vld [vmem:[%s176 + $0x4] sm:$0xf]
        %v197 = vld [vmem:[%s176 + $0x8] sm:$0xf]
        %v198 = vld [vmem:[%s176 + $0xc] sm:$0xf]
        %v199 = vld [vmem:[%s176 + $0x10] sm:$0xf]
        %v200 = vld [vmem:[%s176 + $0x14] sm:$0xf]
        %v201 = vld [vmem:[%s176 + $0x18] sm:$0xf]
        %v202 = vld [vmem:[%s176 + $0x1c] sm:$0xf]
        %v203 = vld [vmem:[%s176 + $0x20] sm:$0xf]
        %v204 = vld [vmem:[%s176 + $0x24] sm:$0xf]
        %v205 = vld [vmem:[%s176 + $0x28] sm:$0xf]
        %v206 = vld [vmem:[%s176 + $0x2c] sm:$0xf]
        %v207 = vld [vmem:[%s176 + $0x30] sm:$0xf]
        %v208 = vld [vmem:[%s176 + $0x34] sm:$0xf]
        %v209 = vld [vmem:[%s176 + $0x38] sm:$0xf]
        %v210 = vld [vmem:[%s176 + $0x3c] sm:$0xf]
        %v211 = vld [vmem:[%s176 + $0x40] sm:$0xf]
        %v212 = vld [vmem:[%s176 + $0x44] sm:$0xf]
        %v213 = vld [vmem:[%s176 + $0x48] sm:$0xf]
        %v214 = vld [vmem:[%s176 + $0x4c] sm:$0xf]
        %v215 = vld [vmem:[%s176 + $0x50] sm:$0xf]
        %v216 = vld [vmem:[%s176 + $0x54] sm:$0xf]
        %v217 = vld [vmem:[%s176 + $0x58] sm:$0xf]
        %v218 = vld [vmem:[%s176 + $0x5c] sm:$0xf]
        %v219 = vld [vmem:[%s176 + $0x60] sm:$0xf]
        %v220 = vld [vmem:[%s176 + $0x64] sm:$0xf]
        %v221 = vld [vmem:[%s176 + $0x68] sm:$0xf]
        %v222 = vld [vmem:[%s176 + $0x6c] sm:$0xf]
        %v223 = vld [vmem:[%s176 + $0x70] sm:$0xf]
        %v224 = vld [vmem:[%s176 + $0x74] sm:$0xf]
        %v225 = vld [vmem:[%s176 + $0x78] sm:$0xf]
        %v226 = vld [vmem:[%s176 + $0x7c] sm:$0xf]
        %v227 = vld [vmem:[%s176 + $0x80] sm:$0xf]
        %v228 = vld [vmem:[%s176 + $0x84] sm:$0xf]
        %v229 = vld [vmem:[%s176 + $0x88] sm:$0xf]
        %v230 = vld [vmem:[%s176 + $0x8c] sm:$0xf]
        %v231 = vld [vmem:[%s176 + $0x90] sm:$0xf]
        %v232 = vld [vmem:[%s176 + $0x94] sm:$0xf]
        %v233 = vld [vmem:[%s176 + $0x98] sm:$0xf]
        %v234 = vld [vmem:[%s176 + $0x9c] sm:$0xf]
        %v235 = vld [vmem:[%s176 + $0xa0] sm:$0xf]
        %v236 = vld [vmem:[%s176 + $0xa4] sm:$0xf]
        %v237 = vld [vmem:[%s176 + $0xa8] sm:$0xf]
        %v238 = vld [vmem:[%s176 + $0xac] sm:$0xf]
        %v239 = vld [vmem:[%s176 + $0xb0] sm:$0xf]
        %v240 = vld [vmem:[%s176 + $0xb4] sm:$0xf]
        %v241 = vld [vmem:[%s176 + $0xb8] sm:$0xf]
        %v242 = vld [vmem:[%s176 + $0xbc] sm:$0xf]
        %v243 = vld [vmem:[%s176 + $0xc0] sm:$0xf]
        %v244 = vld [vmem:[%s176 + $0xc4] sm:$0xf]
        %v245 = vld [vmem:[%s176 + $0xc8] sm:$0xf]
        %v246 = vld [vmem:[%s176 + $0xcc] sm:$0xf]
        %v247 = vld [vmem:[%s176 + $0xd0] sm:$0xf]
        %v248 = vld [vmem:[%s176 + $0xd4] sm:$0xf]
        %v249 = vld [vmem:[%s176 + $0xd8] sm:$0xf]
        %v250 = vld [vmem:[%s176 + $0xdc] sm:$0xf]
        %v251 = vld [vmem:[%s176 + $0xe0] sm:$0xf]
        %v252 = vld [vmem:[%s176 + $0xe4] sm:$0xf]
        %v253 = vld [vmem:[%s176 + $0xe8] sm:$0xf]
        %v254 = vld [vmem:[%s176 + $0xec] sm:$0xf]
        %v255 = vld [vmem:[%s176 + $0xf0] sm:$0xf]
        %v256 = vld [vmem:[%s176 + $0xf4] sm:$0xf]
        %v257 = vld [vmem:[%s176 + $0xf8] sm:$0xf]
        %v258 = vld [vmem:[%s176 + $0xfc] sm:$0xf]
        %v259 = vld [vmem:[%s176 + $0x100] sm:$0xf]
        %v260 = vld [vmem:[%s176 + $0x104] sm:$0xf]
        %v261 = vld [vmem:[%s176 + $0x108] sm:$0xf]
        %v262 = vld [vmem:[%s176 + $0x10c] sm:$0xf]
        %v263 = vld [vmem:[%s176 + $0x110] sm:$0xf]
        %v264 = vld [vmem:[%s176 + $0x114] sm:$0xf]
        %v265 = vld [vmem:[%s176 + $0x118] sm:$0xf]
        %v266 = vld [vmem:[%s176 + $0x11c] sm:$0xf]
        %v267 = vld [vmem:[%s176 + $0x120] sm:$0xf]
        %v268 = vld [vmem:[%s176 + $0x124] sm:$0xf]
        %v269 = vld [vmem:[%s176 + $0x128] sm:$0xf]
        %v270 = vld [vmem:[%s176 + $0x12c] sm:$0xf]
        %v271 = vld [vmem:[%s176 + $0x130] sm:$0xf]
        %v272 = vld [vmem:[%s176 + $0x134] sm:$0xf]
        %v273 = vld [vmem:[%s176 + $0x138] sm:$0xf]
        %v274 = vld [vmem:[%s176 + $0x13c] sm:$0xf]
        %v275 = vld [vmem:[%s176 + $0x140] sm:$0xf]
        %v276 = vld [vmem:[%s176 + $0x144] sm:$0xf]
        %v277 = vld [vmem:[%s176 + $0x148] sm:$0xf]
        %v278 = vld [vmem:[%s176 + $0x14c] sm:$0xf]
        %v279 = vld [vmem:[%s176 + $0x150] sm:$0xf]
        %v280 = vld [vmem:[%s176 + $0x154] sm:$0xf]
        %v281 = vld [vmem:[%s176 + $0x158] sm:$0xf]
        %v282 = vld [vmem:[%s176 + $0x15c] sm:$0xf]
        %v283 = vld [vmem:[%s176 + $0x160] sm:$0xf]
        %v284 = vld [vmem:[%s176 + $0x164] sm:$0xf]
        %v285 = vld [vmem:[%s176 + $0x168] sm:$0xf]
        %v286 = vld [vmem:[%s176 + $0x16c] sm:$0xf]
        %v287 = vld [vmem:[%s176 + $0x170] sm:$0xf]
        %v288 = vld [vmem:[%s176 + $0x174] sm:$0xf]
        %v289 = vld [vmem:[%s176 + $0x178] sm:$0xf]
        %v290 = vld [vmem:[%s176 + $0x17c] sm:$0xf]
        %v291 = vld [vmem:[%s176 + $0x180] sm:$0xf]
        %v292 = vld [vmem:[%s176 + $0x184] sm:$0xf]
        %v293 = vld [vmem:[%s176 + $0x188] sm:$0xf]
        %v294 = vld [vmem:[%s176 + $0x18c] sm:$0xf]
        %v295 = vld [vmem:[%s176 + $0x190] sm:$0xf]
        %v296 = vld [vmem:[%s176 + $0x194] sm:$0xf]
        %v297 = vld [vmem:[%s176 + $0x198] sm:$0xf]
        %v298 = vld [vmem:[%s176 + $0x19c] sm:$0xf]
        %v299 = vld [vmem:[%s176 + $0x1a0] sm:$0xf]
        %v300 = vld [vmem:[%s176 + $0x1a4] sm:$0xf]
        %v301 = vld [vmem:[%s176 + $0x1a8] sm:$0xf]
        %v302 = vld [vmem:[%s176 + $0x1ac] sm:$0xf]
        %v303 = vld [vmem:[%s176 + $0x1b0] sm:$0xf]
        %v304 = vld [vmem:[%s176 + $0x1b4] sm:$0xf]
        %v305 = vld [vmem:[%s176 + $0x1b8] sm:$0xf]
        %v306 = vld [vmem:[%s176 + $0x1bc] sm:$0xf]
        %v307 = vld [vmem:[%s176 + $0x1c0] sm:$0xf]
        %v308 = vld [vmem:[%s176 + $0x1c4] sm:$0xf]
        %v309 = vld [vmem:[%s176 + $0x1c8] sm:$0xf]
        %v310 = vld [vmem:[%s176 + $0x1cc] sm:$0xf]
        %v311 = vld [vmem:[%s176 + $0x1d0] sm:$0xf]
        %v312 = vld [vmem:[%s176 + $0x1d4] sm:$0xf]
        %v313 = vld [vmem:[%s176 + $0x1d8] sm:$0xf]
        %v314 = vld [vmem:[%s176 + $0x1dc] sm:$0xf]
        %v315 = vld [vmem:[%s176 + $0x1e0] sm:$0xf]
        %v316 = vld [vmem:[%s176 + $0x1e4] sm:$0xf]
        %v317 = vld [vmem:[%s176 + $0x1e8] sm:$0xf]
        %v318 = vld [vmem:[%s176 + $0x1ec] sm:$0xf]
        %v319 = vld [vmem:[%s176 + $0x1f0] sm:$0xf]
        %v320 = vld [vmem:[%s176 + $0x1f4] sm:$0xf]
        %v321 = vld [vmem:[%s176 + $0x1f8] sm:$0xf]
        %v322 = vld [vmem:[%s176 + $0x1fc] sm:$0xf]
        %v323 = vld [vmem:[%s176 + $0x200] sm:$0xf]
        %v324 = vld [vmem:[%s176 + $0x204] sm:$0xf]
        %v325 = vld [vmem:[%s176 + $0x208] sm:$0xf]
        %v326 = vld [vmem:[%s176 + $0x20c] sm:$0xf]
        %v327 = vld [vmem:[%s176 + $0x210] sm:$0xf]
        %v328 = vld [vmem:[%s176 + $0x214] sm:$0xf]
        %v329 = vld [vmem:[%s176 + $0x218] sm:$0xf]
        %v330 = vld [vmem:[%s176 + $0x21c] sm:$0xf]
        %v331 = vld [vmem:[%s176 + $0x220] sm:$0xf]
        %v332 = vld [vmem:[%s176 + $0x224] sm:$0xf]
        %v333 = vld [vmem:[%s176 + $0x228] sm:$0xf]
        %v334 = vld [vmem:[%s176 + $0x22c] sm:$0xf]
        %v335 = vld [vmem:[%s176 + $0x230] sm:$0xf]
        %v336 = vld [vmem:[%s176 + $0x234] sm:$0xf]
        %v337 = vld [vmem:[%s176 + $0x238] sm:$0xf]
        %v338 = vld [vmem:[%s176 + $0x23c] sm:$0xf]
        %v339 = vld [vmem:[%s176 + $0x240] sm:$0xf]
        %v340 = vld [vmem:[%s176 + $0x244] sm:$0xf]
        %v341 = vld [vmem:[%s176 + $0x248] sm:$0xf]
        %v342 = vld [vmem:[%s176 + $0x24c] sm:$0xf]
        %v343 = vld [vmem:[%s176 + $0x250] sm:$0xf]
        %v344 = vld [vmem:[%s176 + $0x254] sm:$0xf]
        %v345 = vld [vmem:[%s176 + $0x258] sm:$0xf]
        %v346 = vld [vmem:[%s176 + $0x25c] sm:$0xf]
        %v347 = vld [vmem:[%s176 + $0x260] sm:$0xf]
        %v348 = vld [vmem:[%s176 + $0x264] sm:$0xf]
        %v349 = vld [vmem:[%s176 + $0x268] sm:$0xf]
        %v350 = vld [vmem:[%s176 + $0x26c] sm:$0xf]
        %v351 = vld [vmem:[%s176 + $0x270] sm:$0xf]
        %v352 = vld [vmem:[%s176 + $0x274] sm:$0xf]
        %v353 = vld [vmem:[%s176 + $0x278] sm:$0xf]
        %v354 = vld [vmem:[%s176 + $0x27c] sm:$0xf]
        %v355 = vld [vmem:[%s176 + $0x280] sm:$0xf]
        %v356 = vld [vmem:[%s176 + $0x284] sm:$0xf]
        %v357 = vld [vmem:[%s176 + $0x288] sm:$0xf]
        %v358 = vld [vmem:[%s176 + $0x28c] sm:$0xf]
        %v359 = vld [vmem:[%s176 + $0x290] sm:$0xf]
        %v360 = vld [vmem:[%s176 + $0x294] sm:$0xf]
        %v361 = vld [vmem:[%s176 + $0x298] sm:$0xf]
        %v362 = vld [vmem:[%s176 + $0x29c] sm:$0xf]
        %v363 = vld [vmem:[%s176 + $0x2a0] sm:$0xf]
        %v364 = vld [vmem:[%s176 + $0x2a4] sm:$0xf]
        %v365 = vld [vmem:[%s176 + $0x2a8] sm:$0xf]
        %v366 = vld [vmem:[%s176 + $0x2ac] sm:$0xf]
        %v367 = vld [vmem:[%s176 + $0x2b0] sm:$0xf]
        %v368 = vld [vmem:[%s176 + $0x2b4] sm:$0xf]
        %v369 = vld [vmem:[%s176 + $0x2b8] sm:$0xf]
        %v370 = vld [vmem:[%s176 + $0x2bc] sm:$0xf]
        %v371 = vld [vmem:[%s176 + $0x2c0] sm:$0xf]
        %v372 = vld [vmem:[%s176 + $0x2c4] sm:$0xf]
        %v373 = vld [vmem:[%s176 + $0x2c8] sm:$0xf]
        %v374 = vld [vmem:[%s176 + $0x2cc] sm:$0xf]
        %v375 = vld [vmem:[%s176 + $0x2d0] sm:$0xf]
        %v376 = vld [vmem:[%s176 + $0x2d4] sm:$0xf]
        %v377 = vld [vmem:[%s176 + $0x2d8] sm:$0xf]
        %v378 = vld [vmem:[%s176 + $0x2dc] sm:$0xf]
        %v379 = vld [vmem:[%s176 + $0x2e0] sm:$0xf]
        %v380 = vld [vmem:[%s176 + $0x2e4] sm:$0xf]
        %v381 = vld [vmem:[%s176 + $0x2e8] sm:$0xf]
        %v382 = vld [vmem:[%s176 + $0x2ec] sm:$0xf]
        %v383 = vld [vmem:[%s176 + $0x2f0] sm:$0xf]
        %v384 = vld [vmem:[%s176 + $0x2f4] sm:$0xf]
        %v385 = vld [vmem:[%s176 + $0x2f8] sm:$0xf]
        %v386 = vld [vmem:[%s176 + $0x2fc] sm:$0xf]
        %v387 = vld [vmem:[%s176 + $0x300] sm:$0xf]
        %v388 = vld [vmem:[%s176 + $0x304] sm:$0xf]
        %v389 = vld [vmem:[%s176 + $0x308] sm:$0xf]
        %v390 = vld [vmem:[%s176 + $0x30c] sm:$0xf]
        %v391 = vld [vmem:[%s176 + $0x310] sm:$0xf]
        %v392 = vld [vmem:[%s176 + $0x314] sm:$0xf]
        %v393 = vld [vmem:[%s176 + $0x318] sm:$0xf]
        %v394 = vld [vmem:[%s176 + $0x31c] sm:$0xf]
        %v395 = vld [vmem:[%s176 + $0x320] sm:$0xf]
        %v396 = vld [vmem:[%s176 + $0x324] sm:$0xf]
        %v397 = vld [vmem:[%s176 + $0x328] sm:$0xf]
        %v398 = vld [vmem:[%s176 + $0x32c] sm:$0xf]
        %v399 = vld [vmem:[%s176 + $0x330] sm:$0xf]
        %v400 = vld [vmem:[%s176 + $0x334] sm:$0xf]
        %v401 = vld [vmem:[%s176 + $0x338] sm:$0xf]
        %v402 = vld [vmem:[%s176 + $0x33c] sm:$0xf]
        %v403 = vld [vmem:[%s176 + $0x340] sm:$0xf]
        %v404 = vld [vmem:[%s176 + $0x344] sm:$0xf]
        %v405 = vld [vmem:[%s176 + $0x348] sm:$0xf]
        %v406 = vld [vmem:[%s176 + $0x34c] sm:$0xf]
        %v407 = vld [vmem:[%s176 + $0x350] sm:$0xf]
        %v408 = vld [vmem:[%s176 + $0x354] sm:$0xf]
        %v409 = vld [vmem:[%s176 + $0x358] sm:$0xf]
        %v410 = vld [vmem:[%s176 + $0x35c] sm:$0xf]
        %v411 = vld [vmem:[%s176 + $0x360] sm:$0xf]
        %v412 = vld [vmem:[%s176 + $0x364] sm:$0xf]
        %v413 = vld [vmem:[%s176 + $0x368] sm:$0xf]
        %v414 = vld [vmem:[%s176 + $0x36c] sm:$0xf]
        %v415 = vld [vmem:[%s176 + $0x370] sm:$0xf]
        %v416 = vld [vmem:[%s176 + $0x374] sm:$0xf]
        %v417 = vld [vmem:[%s176 + $0x378] sm:$0xf]
        %v418 = vld [vmem:[%s176 + $0x37c] sm:$0xf]
        %v419 = vld [vmem:[%s176 + $0x380] sm:$0xf]
        %v420 = vld [vmem:[%s176 + $0x384] sm:$0xf]
        %v421 = vld [vmem:[%s176 + $0x388] sm:$0xf]
        %v422 = vld [vmem:[%s176 + $0x38c] sm:$0xf]
        %v423 = vld [vmem:[%s176 + $0x390] sm:$0xf]
        %v424 = vld [vmem:[%s176 + $0x394] sm:$0xf]
        %v425 = vld [vmem:[%s176 + $0x398] sm:$0xf]
        %v426 = vld [vmem:[%s176 + $0x39c] sm:$0xf]
        %v427 = vld [vmem:[%s176 + $0x3a0] sm:$0xf]
        %v428 = vld [vmem:[%s176 + $0x3a4] sm:$0xf]
        %v429 = vld [vmem:[%s176 + $0x3a8] sm:$0xf]
        %v430 = vld [vmem:[%s176 + $0x3ac] sm:$0xf]
        %v431 = vld [vmem:[%s176 + $0x3b0] sm:$0xf]
        %v432 = vld [vmem:[%s176 + $0x3b4] sm:$0xf]
        %v433 = vld [vmem:[%s176 + $0x3b8] sm:$0xf]
        %v434 = vld [vmem:[%s176 + $0x3bc] sm:$0xf]
        %v435 = vld [vmem:[%s176 + $0x3c0] sm:$0xf]
        %v436 = vld [vmem:[%s176 + $0x3c4] sm:$0xf]
        %v437 = vld [vmem:[%s176 + $0x3c8] sm:$0xf]
        %v438 = vld [vmem:[%s176 + $0x3cc] sm:$0xf]
        %v439 = vld [vmem:[%s176 + $0x3d0] sm:$0xf]
        %v440 = vld [vmem:[%s176 + $0x3d4] sm:$0xf]
        %v441 = vld [vmem:[%s176 + $0x3d8] sm:$0xf]
        %v442 = vld [vmem:[%s176 + $0x3dc] sm:$0xf]
        %v443 = vld [vmem:[%s176 + $0x3e0] sm:$0xf]
        %v444 = vld [vmem:[%s176 + $0x3e4] sm:$0xf]
        %v445 = vld [vmem:[%s176 + $0x3e8] sm:$0xf]
        %v446 = vld [vmem:[%s176 + $0x3ec] sm:$0xf]
        %v447 = vld [vmem:[%s176 + $0x3f0] sm:$0xf]
        %v448 = vld [vmem:[%s176 + $0x3f4] sm:$0xf]
        %v449 = vld [vmem:[%s176 + $0x3f8] sm:$0xf]
        %v450 = vld [vmem:[%s176 + $0x3fc] sm:$0xf]
        %v453 = vcombine.high %v193, %v193
        %v455 = vunpack.c.l.s4 1966171168
        %v456 = vunpack.c.0.s8 %v455
        %v457 = vlaneseq
        %v458 = vshrl.u32 %v457, 7
        %v459 = vsub.s32 %v456, %v458
        %v460 = vrot.slane %v193, %v459
        %v462 = vunpack.c.l.s4 1966171168
        %v463 = vunpack.c.0.s8 %v462
        %v464 = vlaneseq
        %v465 = vshrl.u32 %v464, 7
        %v466 = vsub.s32 %v463, %v465
        %v467 = vrot.slane %v453, %v466
        %v468 = vcombine.high %v460, %v460
        %v469 = vcombine.high %v467, %v467
        %v471 = vunpack.c.l.s4 1966171168
        %v472 = vunpack.c.0.s8 %v471
        %v473 = vlaneseq
        %v474 = vshrl.u32 %v473, 7
        %v475 = vsub.s32 %v472, %v474
        %v476 = vrot.slane %v460, %v475
        %v478 = vunpack.c.l.s4 1966171168
        %v479 = vunpack.c.0.s8 %v478
        %v480 = vlaneseq
        %v481 = vshrl.u32 %v480, 7
        %v482 = vsub.s32 %v479, %v481
        %v483 = vrot.slane %v467, %v482
        %v485 = vunpack.c.l.s4 1966171168
        %v486 = vunpack.c.0.s8 %v485
        %v487 = vlaneseq
        %v488 = vshrl.u32 %v487, 7
        %v489 = vsub.s32 %v486, %v488
        %v490 = vrot.slane %v468, %v489
        %v492 = vunpack.c.l.s4 1966171168
        %v493 = vunpack.c.0.s8 %v492
        %v494 = vlaneseq
        %v495 = vshrl.u32 %v494, 7
        %v496 = vsub.s32 %v493, %v495
        %v497 = vrot.slane %v469, %v496
        %v498 = vcombine.high %v476, %v476
        %v499 = vcombine.high %v483, %v483
        %v500 = vcombine.high %v490, %v490
        %v501 = vcombine.high %v497, %v497
        %v502 = vcombine.high %v194, %v194
        %v504 = vunpack.c.l.s4 1966171168
        %v505 = vunpack.c.0.s8 %v504
        %v506 = vlaneseq
        %v507 = vshrl.u32 %v506, 7
        %v508 = vsub.s32 %v505, %v507
        %v509 = vrot.slane %v194, %v508
        %v511 = vunpack.c.l.s4 1966171168
        %v512 = vunpack.c.0.s8 %v511
        %v513 = vlaneseq
        %v514 = vshrl.u32 %v513, 7
        %v515 = vsub.s32 %v512, %v514
        %v516 = vrot.slane %v502, %v515
        %v517 = vcombine.high %v509, %v509
        %v518 = vcombine.high %v516, %v516
        %v520 = vunpack.c.l.s4 1966171168
        %v521 = vunpack.c.0.s8 %v520
        %v522 = vlaneseq
        %v523 = vshrl.u32 %v522, 7
        %v524 = vsub.s32 %v521, %v523
        %v525 = vrot.slane %v509, %v524
        %v527 = vunpack.c.l.s4 1966171168
        %v528 = vunpack.c.0.s8 %v527
        %v529 = vlaneseq
        %v530 = vshrl.u32 %v529, 7
        %v531 = vsub.s32 %v528, %v530
        %v532 = vrot.slane %v516, %v531
        %v534 = vunpack.c.l.s4 1966171168
        %v535 = vunpack.c.0.s8 %v534
        %v536 = vlaneseq
        %v537 = vshrl.u32 %v536, 7
        %v538 = vsub.s32 %v535, %v537
        %v539 = vrot.slane %v517, %v538
        %v541 = vunpack.c.l.s4 1966171168
        %v542 = vunpack.c.0.s8 %v541
        %v543 = vlaneseq
        %v544 = vshrl.u32 %v543, 7
        %v545 = vsub.s32 %v542, %v544
        %v546 = vrot.slane %v518, %v545
        %v547 = vcombine.high %v525, %v525
        %v548 = vcombine.high %v532, %v532
        %v549 = vcombine.high %v539, %v539
        %v550 = vcombine.high %v546, %v546
        %v823 = vunpack.c.l.b16 %v195
        %v824 = vunpack.c.l.b16 %v196
        %v825 = vunpack.c.l.b16 %v197
        %v826 = vunpack.c.l.b16 %v198
        %v827 = vunpack.c.l.b16 %v199
        %v828 = vunpack.c.l.b16 %v200
        %v829 = vunpack.c.l.b16 %v201
        %v830 = vunpack.c.l.b16 %v202
        %v831 = vunpack.c.l.b16 %v203
        %v832 = vunpack.c.l.b16 %v204
        %v833 = vunpack.c.l.b16 %v205
        %v834 = vunpack.c.l.b16 %v206
        %v835 = vunpack.c.l.b16 %v207
        %v836 = vunpack.c.l.b16 %v208
        %v837 = vunpack.c.l.b16 %v209
        %v838 = vunpack.c.l.b16 %v210
        %v839 = vunpack.c.l.b16 %v211
        %v840 = vunpack.c.l.b16 %v212
        %v841 = vunpack.c.l.b16 %v213
        %v842 = vunpack.c.l.b16 %v214
        %v843 = vunpack.c.l.b16 %v215
        %v844 = vunpack.c.l.b16 %v216
        %v845 = vunpack.c.l.b16 %v217
        %v846 = vunpack.c.l.b16 %v218
        %v847 = vunpack.c.l.b16 %v219
        %v848 = vunpack.c.l.b16 %v220
        %v849 = vunpack.c.l.b16 %v221
        %v850 = vunpack.c.l.b16 %v222
        %v851 = vunpack.c.l.b16 %v223
        %v852 = vunpack.c.l.b16 %v224
        %v853 = vunpack.c.l.b16 %v225
        %v854 = vunpack.c.l.b16 %v226
        %v855 = vunpack.c.l.b16 %v227
        %v856 = vunpack.c.l.b16 %v228
        %v857 = vunpack.c.l.b16 %v229
        %v858 = vunpack.c.l.b16 %v230
        %v859 = vunpack.c.l.b16 %v231
        %v860 = vunpack.c.l.b16 %v232
        %v861 = vunpack.c.l.b16 %v233
        %v862 = vunpack.c.l.b16 %v234
        %v863 = vunpack.c.l.b16 %v235
        %v864 = vunpack.c.l.b16 %v236
        %v865 = vunpack.c.l.b16 %v237
        %v866 = vunpack.c.l.b16 %v238
        %v867 = vunpack.c.l.b16 %v239
        %v868 = vunpack.c.l.b16 %v240
        %v869 = vunpack.c.l.b16 %v241
        %v870 = vunpack.c.l.b16 %v242
        %v871 = vunpack.c.l.b16 %v243
        %v872 = vunpack.c.l.b16 %v244
        %v873 = vunpack.c.l.b16 %v245
        %v874 = vunpack.c.l.b16 %v246
        %v875 = vunpack.c.l.b16 %v247
        %v876 = vunpack.c.l.b16 %v248
        %v877 = vunpack.c.l.b16 %v249
        %v878 = vunpack.c.l.b16 %v250
        %v879 = vunpack.c.l.b16 %v251
        %v880 = vunpack.c.l.b16 %v252
        %v881 = vunpack.c.l.b16 %v253
        %v882 = vunpack.c.l.b16 %v254
        %v883 = vunpack.c.l.b16 %v255
        %v884 = vunpack.c.l.b16 %v256
        %v885 = vunpack.c.l.b16 %v257
        %v886 = vunpack.c.l.b16 %v258
        %v887 = vunpack.c.l.b16 %v259
        %v888 = vunpack.c.l.b16 %v260
        %v889 = vunpack.c.l.b16 %v261
        %v890 = vunpack.c.l.b16 %v262
        %v891 = vunpack.c.l.b16 %v263
        %v892 = vunpack.c.l.b16 %v264
        %v893 = vunpack.c.l.b16 %v265
        %v894 = vunpack.c.l.b16 %v266
        %v895 = vunpack.c.l.b16 %v267
        %v896 = vunpack.c.l.b16 %v268
        %v897 = vunpack.c.l.b16 %v269
        %v898 = vunpack.c.l.b16 %v270
        %v899 = vunpack.c.l.b16 %v271
        %v900 = vunpack.c.l.b16 %v272
        %v901 = vunpack.c.l.b16 %v273
        %v902 = vunpack.c.l.b16 %v274
        %v903 = vunpack.c.l.b16 %v275
        %v904 = vunpack.c.l.b16 %v276
        %v905 = vunpack.c.l.b16 %v277
        %v906 = vunpack.c.l.b16 %v278
        %v907 = vunpack.c.l.b16 %v279
        %v908 = vunpack.c.l.b16 %v280
        %v909 = vunpack.c.l.b16 %v281
        %v910 = vunpack.c.l.b16 %v282
        %v911 = vunpack.c.l.b16 %v283
        %v912 = vunpack.c.l.b16 %v284
        %v913 = vunpack.c.l.b16 %v285
        %v914 = vunpack.c.l.b16 %v286
        %v915 = vunpack.c.l.b16 %v287
        %v916 = vunpack.c.l.b16 %v288
        %v917 = vunpack.c.l.b16 %v289
        %v918 = vunpack.c.l.b16 %v290
        %v919 = vunpack.c.l.b16 %v291
        %v920 = vunpack.c.l.b16 %v292
        %v921 = vunpack.c.l.b16 %v293
        %v922 = vunpack.c.l.b16 %v294
        %v923 = vunpack.c.l.b16 %v295
        %v924 = vunpack.c.l.b16 %v296
        %v925 = vunpack.c.l.b16 %v297
        %v926 = vunpack.c.l.b16 %v298
        %v927 = vunpack.c.l.b16 %v299
        %v928 = vunpack.c.l.b16 %v300
        %v929 = vunpack.c.l.b16 %v301
        %v930 = vunpack.c.l.b16 %v302
        %v931 = vunpack.c.l.b16 %v303
        %v932 = vunpack.c.l.b16 %v304
        %v933 = vunpack.c.l.b16 %v305
        %v934 = vunpack.c.l.b16 %v306
        %v935 = vunpack.c.l.b16 %v307
        %v936 = vunpack.c.l.b16 %v308
        %v937 = vunpack.c.l.b16 %v309
        %v938 = vunpack.c.l.b16 %v310
        %v939 = vunpack.c.l.b16 %v311
        %v940 = vunpack.c.l.b16 %v312
        %v941 = vunpack.c.l.b16 %v313
        %v942 = vunpack.c.l.b16 %v314
        %v943 = vunpack.c.l.b16 %v315
        %v944 = vunpack.c.l.b16 %v316
        %v945 = vunpack.c.l.b16 %v317
        %v946 = vunpack.c.l.b16 %v318
        %v947 = vunpack.c.l.b16 %v319
        %v948 = vunpack.c.l.b16 %v320
        %v949 = vunpack.c.l.b16 %v321
        %v950 = vunpack.c.l.b16 %v322
        %v951 = vunpack.c.l.b16 %v323
        %v952 = vunpack.c.l.b16 %v324
        %v953 = vunpack.c.l.b16 %v325
        %v954 = vunpack.c.l.b16 %v326
        %v955 = vunpack.c.l.b16 %v327
        %v956 = vunpack.c.l.b16 %v328
        %v957 = vunpack.c.l.b16 %v329
        %v958 = vunpack.c.l.b16 %v330
        %v959 = vunpack.c.l.b16 %v331
        %v960 = vunpack.c.l.b16 %v332
        %v961 = vunpack.c.l.b16 %v333
        %v962 = vunpack.c.l.b16 %v334
        %v963 = vunpack.c.l.b16 %v335
        %v964 = vunpack.c.l.b16 %v336
        %v965 = vunpack.c.l.b16 %v337
        %v966 = vunpack.c.l.b16 %v338
        %v967 = vunpack.c.l.b16 %v339
        %v968 = vunpack.c.l.b16 %v340
        %v969 = vunpack.c.l.b16 %v341
        %v970 = vunpack.c.l.b16 %v342
        %v971 = vunpack.c.l.b16 %v343
        %v972 = vunpack.c.l.b16 %v344
        %v973 = vunpack.c.l.b16 %v345
        %v974 = vunpack.c.l.b16 %v346
        %v975 = vunpack.c.l.b16 %v347
        %v976 = vunpack.c.l.b16 %v348
        %v977 = vunpack.c.l.b16 %v349
        %v978 = vunpack.c.l.b16 %v350
        %v979 = vunpack.c.l.b16 %v351
        %v980 = vunpack.c.l.b16 %v352
        %v981 = vunpack.c.l.b16 %v353
        %v982 = vunpack.c.l.b16 %v354
        %v983 = vunpack.c.l.b16 %v355
        %v984 = vunpack.c.l.b16 %v356
        %v985 = vunpack.c.l.b16 %v357
        %v986 = vunpack.c.l.b16 %v358
        %v987 = vunpack.c.l.b16 %v359
        %v988 = vunpack.c.l.b16 %v360
        %v989 = vunpack.c.l.b16 %v361
        %v990 = vunpack.c.l.b16 %v362
        %v991 = vunpack.c.l.b16 %v363
        %v992 = vunpack.c.l.b16 %v364
        %v993 = vunpack.c.l.b16 %v365
        %v994 = vunpack.c.l.b16 %v366
        %v995 = vunpack.c.l.b16 %v367
        %v996 = vunpack.c.l.b16 %v368
        %v997 = vunpack.c.l.b16 %v369
        %v998 = vunpack.c.l.b16 %v370
        %v999 = vunpack.c.l.b16 %v371
        %v1000 = vunpack.c.l.b16 %v372
        %v1001 = vunpack.c.l.b16 %v373
        %v1002 = vunpack.c.l.b16 %v374
        %v1003 = vunpack.c.l.b16 %v375
        %v1004 = vunpack.c.l.b16 %v376
        %v1005 = vunpack.c.l.b16 %v377
        %v1006 = vunpack.c.l.b16 %v378
        %v1007 = vunpack.c.l.b16 %v379
        %v1008 = vunpack.c.l.b16 %v380
        %v1009 = vunpack.c.l.b16 %v381
        %v1010 = vunpack.c.l.b16 %v382
        %v1011 = vunpack.c.l.b16 %v383
        %v1012 = vunpack.c.l.b16 %v384
        %v1013 = vunpack.c.l.b16 %v385
        %v1014 = vunpack.c.l.b16 %v386
        %v1015 = vunpack.c.l.b16 %v387
        %v1016 = vunpack.c.l.b16 %v388
        %v1017 = vunpack.c.l.b16 %v389
        %v1018 = vunpack.c.l.b16 %v390
        %v1019 = vunpack.c.l.b16 %v391
        %v1020 = vunpack.c.l.b16 %v392
        %v1021 = vunpack.c.l.b16 %v393
        %v1022 = vunpack.c.l.b16 %v394
        %v1023 = vunpack.c.l.b16 %v395
        %v1024 = vunpack.c.l.b16 %v396
        %v1025 = vunpack.c.l.b16 %v397
        %v1026 = vunpack.c.l.b16 %v398
        %v1027 = vunpack.c.l.b16 %v399
        %v1028 = vunpack.c.l.b16 %v400
        %v1029 = vunpack.c.l.b16 %v401
        %v1030 = vunpack.c.l.b16 %v402
        %v1031 = vunpack.c.l.b16 %v403
        %v1032 = vunpack.c.l.b16 %v404
        %v1033 = vunpack.c.l.b16 %v405
        %v1034 = vunpack.c.l.b16 %v406
        %v1035 = vunpack.c.l.b16 %v407
        %v1036 = vunpack.c.l.b16 %v408
        %v1037 = vunpack.c.l.b16 %v409
        %v1038 = vunpack.c.l.b16 %v410
        %v1039 = vunpack.c.l.b16 %v411
        %v1040 = vunpack.c.l.b16 %v412
        %v1041 = vunpack.c.l.b16 %v413
        %v1042 = vunpack.c.l.b16 %v414
        %v1043 = vunpack.c.l.b16 %v415
        %v1044 = vunpack.c.l.b16 %v416
        %v1045 = vunpack.c.l.b16 %v417
        %v1046 = vunpack.c.l.b16 %v418
        %v1047 = vunpack.c.l.b16 %v419
        %v1048 = vunpack.c.l.b16 %v420
        %v1049 = vunpack.c.l.b16 %v421
        %v1050 = vunpack.c.l.b16 %v422
        %v1051 = vunpack.c.l.b16 %v423
        %v1052 = vunpack.c.l.b16 %v424
        %v1053 = vunpack.c.l.b16 %v425
        %v1054 = vunpack.c.l.b16 %v426
        %v1055 = vunpack.c.l.b16 %v427
        %v1056 = vunpack.c.l.b16 %v428
        %v1057 = vunpack.c.l.b16 %v429
        %v1058 = vunpack.c.l.b16 %v430
        %v1059 = vunpack.c.l.b16 %v431
        %v1060 = vunpack.c.l.b16 %v432
        %v1061 = vunpack.c.l.b16 %v433
        %v1062 = vunpack.c.l.b16 %v434
        %v1063 = vunpack.c.l.b16 %v435
        %v1064 = vunpack.c.l.b16 %v436
        %v1065 = vunpack.c.l.b16 %v437
        %v1066 = vunpack.c.l.b16 %v438
        %v1067 = vunpack.c.l.b16 %v439
        %v1068 = vunpack.c.l.b16 %v440
        %v1069 = vunpack.c.l.b16 %v441
        %v1070 = vunpack.c.l.b16 %v442
        %v1071 = vunpack.c.l.b16 %v443
        %v1072 = vunpack.c.l.b16 %v444
        %v1073 = vunpack.c.l.b16 %v445
        %v1074 = vunpack.c.l.b16 %v446
        %v1075 = vunpack.c.l.b16 %v447
        %v1076 = vunpack.c.l.b16 %v448
        %v1077 = vunpack.c.l.b16 %v449
        %v1078 = vunpack.c.l.b16 %v450
        %v1079 = vpack.c.b16 %v824, %v823
        %v1080 = vpack.c.b16 %v826, %v825
        %v1081 = vpack.c.b16 %v828, %v827
        %v1082 = vpack.c.b16 %v830, %v829
        %v1083 = vpack.c.b16 %v832, %v831
        %v1084 = vpack.c.b16 %v834, %v833
        %v1085 = vpack.c.b16 %v836, %v835
        %v1086 = vpack.c.b16 %v838, %v837
        %v1087 = vpack.c.b16 %v840, %v839
        %v1088 = vpack.c.b16 %v842, %v841
        %v1089 = vpack.c.b16 %v844, %v843
        %v1090 = vpack.c.b16 %v846, %v845
        %v1091 = vpack.c.b16 %v848, %v847
        %v1092 = vpack.c.b16 %v850, %v849
        %v1093 = vpack.c.b16 %v852, %v851
        %v1094 = vpack.c.b16 %v854, %v853
        %v1095 = vpack.c.b16 %v856, %v855
        %v1096 = vpack.c.b16 %v858, %v857
        %v1097 = vpack.c.b16 %v860, %v859
        %v1098 = vpack.c.b16 %v862, %v861
        %v1099 = vpack.c.b16 %v864, %v863
        %v1100 = vpack.c.b16 %v866, %v865
        %v1101 = vpack.c.b16 %v868, %v867
        %v1102 = vpack.c.b16 %v870, %v869
        %v1103 = vpack.c.b16 %v872, %v871
        %v1104 = vpack.c.b16 %v874, %v873
        %v1105 = vpack.c.b16 %v876, %v875
        %v1106 = vpack.c.b16 %v878, %v877
        %v1107 = vpack.c.b16 %v880, %v879
        %v1108 = vpack.c.b16 %v882, %v881
        %v1109 = vpack.c.b16 %v884, %v883
        %v1110 = vpack.c.b16 %v886, %v885
        %v1111 = vpack.c.b16 %v888, %v887
        %v1112 = vpack.c.b16 %v890, %v889
        %v1113 = vpack.c.b16 %v892, %v891
        %v1114 = vpack.c.b16 %v894, %v893
        %v1115 = vpack.c.b16 %v896, %v895
        %v1116 = vpack.c.b16 %v898, %v897
        %v1117 = vpack.c.b16 %v900, %v899
        %v1118 = vpack.c.b16 %v902, %v901
        %v1119 = vpack.c.b16 %v904, %v903
        %v1120 = vpack.c.b16 %v906, %v905
        %v1121 = vpack.c.b16 %v908, %v907
        %v1122 = vpack.c.b16 %v910, %v909
        %v1123 = vpack.c.b16 %v912, %v911
        %v1124 = vpack.c.b16 %v914, %v913
        %v1125 = vpack.c.b16 %v916, %v915
        %v1126 = vpack.c.b16 %v918, %v917
        %v1127 = vpack.c.b16 %v920, %v919
        %v1128 = vpack.c.b16 %v922, %v921
        %v1129 = vpack.c.b16 %v924, %v923
        %v1130 = vpack.c.b16 %v926, %v925
        %v1131 = vpack.c.b16 %v928, %v927
        %v1132 = vpack.c.b16 %v930, %v929
        %v1133 = vpack.c.b16 %v932, %v931
        %v1134 = vpack.c.b16 %v934, %v933
        %v1135 = vpack.c.b16 %v936, %v935
        %v1136 = vpack.c.b16 %v938, %v937
        %v1137 = vpack.c.b16 %v940, %v939
        %v1138 = vpack.c.b16 %v942, %v941
        %v1139 = vpack.c.b16 %v944, %v943
        %v1140 = vpack.c.b16 %v946, %v945
        %v1141 = vpack.c.b16 %v948, %v947
        %v1142 = vpack.c.b16 %v950, %v949
        %v1143 = vpack.c.b16 %v952, %v951
        %v1144 = vpack.c.b16 %v954, %v953
        %v1145 = vpack.c.b16 %v956, %v955
        %v1146 = vpack.c.b16 %v958, %v957
        %v1147 = vpack.c.b16 %v960, %v959
        %v1148 = vpack.c.b16 %v962, %v961
        %v1149 = vpack.c.b16 %v964, %v963
        %v1150 = vpack.c.b16 %v966, %v965
        %v1151 = vpack.c.b16 %v968, %v967
        %v1152 = vpack.c.b16 %v970, %v969
        %v1153 = vpack.c.b16 %v972, %v971
        %v1154 = vpack.c.b16 %v974, %v973
        %v1155 = vpack.c.b16 %v976, %v975
        %v1156 = vpack.c.b16 %v978, %v977
        %v1157 = vpack.c.b16 %v980, %v979
        %v1158 = vpack.c.b16 %v982, %v981
        %v1159 = vpack.c.b16 %v984, %v983
        %v1160 = vpack.c.b16 %v986, %v985
        %v1161 = vpack.c.b16 %v988, %v987
        %v1162 = vpack.c.b16 %v990, %v989
        %v1163 = vpack.c.b16 %v992, %v991
        %v1164 = vpack.c.b16 %v994, %v993
        %v1165 = vpack.c.b16 %v996, %v995
        %v1166 = vpack.c.b16 %v998, %v997
        %v1167 = vpack.c.b16 %v1000, %v999
        %v1168 = vpack.c.b16 %v1002, %v1001
        %v1169 = vpack.c.b16 %v1004, %v1003
        %v1170 = vpack.c.b16 %v1006, %v1005
        %v1171 = vpack.c.b16 %v1008, %v1007
        %v1172 = vpack.c.b16 %v1010, %v1009
        %v1173 = vpack.c.b16 %v1012, %v1011
        %v1174 = vpack.c.b16 %v1014, %v1013
        %v1175 = vpack.c.b16 %v1016, %v1015
        %v1176 = vpack.c.b16 %v1018, %v1017
        %v1177 = vpack.c.b16 %v1020, %v1019
        %v1178 = vpack.c.b16 %v1022, %v1021
        %v1179 = vpack.c.b16 %v1024, %v1023
        %v1180 = vpack.c.b16 %v1026, %v1025
        %v1181 = vpack.c.b16 %v1028, %v1027
        %v1182 = vpack.c.b16 %v1030, %v1029
        %v1183 = vpack.c.b16 %v1032, %v1031
        %v1184 = vpack.c.b16 %v1034, %v1033
        %v1185 = vpack.c.b16 %v1036, %v1035
        %v1186 = vpack.c.b16 %v1038, %v1037
        %v1187 = vpack.c.b16 %v1040, %v1039
        %v1188 = vpack.c.b16 %v1042, %v1041
        %v1189 = vpack.c.b16 %v1044, %v1043
        %v1190 = vpack.c.b16 %v1046, %v1045
        %v1191 = vpack.c.b16 %v1048, %v1047
        %v1192 = vpack.c.b16 %v1050, %v1049
        %v1193 = vpack.c.b16 %v1052, %v1051
        %v1194 = vpack.c.b16 %v1054, %v1053
        %v1195 = vpack.c.b16 %v1056, %v1055
        %v1196 = vpack.c.b16 %v1058, %v1057
        %v1197 = vpack.c.b16 %v1060, %v1059
        %v1198 = vpack.c.b16 %v1062, %v1061
        %v1199 = vpack.c.b16 %v1064, %v1063
        %v1200 = vpack.c.b16 %v1066, %v1065
        %v1201 = vpack.c.b16 %v1068, %v1067
        %v1202 = vpack.c.b16 %v1070, %v1069
        %v1203 = vpack.c.b16 %v1072, %v1071
        %v1204 = vpack.c.b16 %v1074, %v1073
        %v1205 = vpack.c.b16 %v1076, %v1075
        %v1206 = vpack.c.b16 %v1078, %v1077
        %1335 = vmatprep.subr.bf16.mxu0 0
        %1336 = vmatpush1.bf16.msra.mxu0 %v1079
        %1337 = vmatprep.subr.bf16.mxu0 0
        %1338 = vmatpush1.bf16.msra.mxu0 %v1080
        %1339 = vmatprep.subr.bf16.mxu0 0
        %1340 = vmatpush1.bf16.msra.mxu0 %v1081
        %1341 = vmatprep.subr.bf16.mxu0 0
        %1342 = vmatpush1.bf16.msra.mxu0 %v1082
        %1343 = vmatprep.subr.bf16.mxu0 0
        %1344 = vmatpush1.bf16.msra.mxu0 %v1083
        %1345 = vmatprep.subr.bf16.mxu0 0
        %1346 = vmatpush1.bf16.msra.mxu0 %v1084
        %1347 = vmatprep.subr.bf16.mxu0 0
        %1348 = vmatpush1.bf16.msra.mxu0 %v1085
        %1349 = vmatprep.subr.bf16.mxu0 0
        %1350 = vmatpush1.bf16.msra.mxu0 %v1086
        %1351 = vmatprep.subr.bf16.mxu0 0
        %1352 = vmatpush1.bf16.msra.mxu0 %v1087
        %1353 = vmatprep.subr.bf16.mxu0 0
        %1354 = vmatpush1.bf16.msra.mxu0 %v1088
        %1355 = vmatprep.subr.bf16.mxu0 0
        %1356 = vmatpush1.bf16.msra.mxu0 %v1089
        %1357 = vmatprep.subr.bf16.mxu0 0
        %1358 = vmatpush1.bf16.msra.mxu0 %v1090
        %1359 = vmatprep.subr.bf16.mxu0 0
        %1360 = vmatpush1.bf16.msra.mxu0 %v1091
        %1361 = vmatprep.subr.bf16.mxu0 0
        %1362 = vmatpush1.bf16.msra.mxu0 %v1092
        %1363 = vmatprep.subr.bf16.mxu0 0
        %1364 = vmatpush1.bf16.msra.mxu0 %v1093
        %1365 = vmatprep.subr.bf16.mxu0 0
        %1366 = vmatpush1.bf16.msra.mxu0 %v1094
        %1367 = vmatprep.mubr.bf16.mxu0 %v490
        %1368 = vmatmul.mubr.bf16.gmra.mrb[0].mxu0 %v476
        %v1369 = vpop.f32.mrb[0].mxu0
        %v1370 = vadd.f32 0.0, %v1369
        %v1371 = vpop.f32.mrb[0].mxu0
        %v1372 = vpop.f32.mrb[0].mxu0
        %v1373 = vpop.f32.mrb[0].mxu0
        %1374 = vdwg.mxu0
        %1375 = vmatprep.subr.bf16.mxu0 0
        %1376 = vmatpush1.bf16.msra.mxu0 %v1095
        %1377 = vmatprep.subr.bf16.mxu0 0
        %1378 = vmatpush1.bf16.msra.mxu0 %v1096
        %1379 = vmatprep.subr.bf16.mxu0 0
        %1380 = vmatpush1.bf16.msra.mxu0 %v1097
        %1381 = vmatprep.subr.bf16.mxu0 0
        %1382 = vmatpush1.bf16.msra.mxu0 %v1098
        %1383 = vmatprep.subr.bf16.mxu0 0
        %1384 = vmatpush1.bf16.msra.mxu0 %v1099
        %1385 = vmatprep.subr.bf16.mxu0 0
        %1386 = vmatpush1.bf16.msra.mxu0 %v1100
        %1387 = vmatprep.subr.bf16.mxu0 0
        %1388 = vmatpush1.bf16.msra.mxu0 %v1101
        %1389 = vmatprep.subr.bf16.mxu0 0
        %1390 = vmatpush1.bf16.msra.mxu0 %v1102
        %1391 = vmatprep.subr.bf16.mxu0 0
        %1392 = vmatpush1.bf16.msra.mxu0 %v1103
        %1393 = vmatprep.subr.bf16.mxu0 0
        %1394 = vmatpush1.bf16.msra.mxu0 %v1104
        %1395 = vmatprep.subr.bf16.mxu0 0
        %1396 = vmatpush1.bf16.msra.mxu0 %v1105
        %1397 = vmatprep.subr.bf16.mxu0 0
        %1398 = vmatpush1.bf16.msra.mxu0 %v1106
        %1399 = vmatprep.subr.bf16.mxu0 0
        %1400 = vmatpush1.bf16.msra.mxu0 %v1107
        %1401 = vmatprep.subr.bf16.mxu0 0
        %1402 = vmatpush1.bf16.msra.mxu0 %v1108
        %1403 = vmatprep.subr.bf16.mxu0 0
        %1404 = vmatpush1.bf16.msra.mxu0 %v1109
        %1405 = vmatprep.subr.bf16.mxu0 0
        %1406 = vmatpush1.bf16.msra.mxu0 %v1110
        %1407 = vmatprep.mubr.bf16.mxu0 %v500
        %1408 = vmatmul.mubr.bf16.gmra.mrb[0].mxu0 %v498
        %v1409 = vpop.f32.mrb[0].mxu0
        %v1410 = vadd.f32 %v1370, %v1409
        %v1411 = vpop.f32.mrb[0].mxu0
        %v1412 = vpop.f32.mrb[0].mxu0
        %v1413 = vpop.f32.mrb[0].mxu0
        %1414 = vdwg.mxu0
        %1415 = vmatprep.subr.bf16.mxu0 0
        %1416 = vmatpush1.bf16.msra.mxu0 %v1111
        %1417 = vmatprep.subr.bf16.mxu0 0
        %1418 = vmatpush1.bf16.msra.mxu0 %v1112
        %1419 = vmatprep.subr.bf16.mxu0 0
        %1420 = vmatpush1.bf16.msra.mxu0 %v1113
        %1421 = vmatprep.subr.bf16.mxu0 0
        %1422 = vmatpush1.bf16.msra.mxu0 %v1114
        %1423 = vmatprep.subr.bf16.mxu0 0
        %1424 = vmatpush1.bf16.msra.mxu0 %v1115
        %1425 = vmatprep.subr.bf16.mxu0 0
        %1426 = vmatpush1.bf16.msra.mxu0 %v1116
        %1427 = vmatprep.subr.bf16.mxu0 0
        %1428 = vmatpush1.bf16.msra.mxu0 %v1117
        %1429 = vmatprep.subr.bf16.mxu0 0
        %1430 = vmatpush1.bf16.msra.mxu0 %v1118
        %1431 = vmatprep.subr.bf16.mxu0 0
        %1432 = vmatpush1.bf16.msra.mxu0 %v1119
        %1433 = vmatprep.subr.bf16.mxu0 0
        %1434 = vmatpush1.bf16.msra.mxu0 %v1120
        %1435 = vmatprep.subr.bf16.mxu0 0
        %1436 = vmatpush1.bf16.msra.mxu0 %v1121
        %1437 = vmatprep.subr.bf16.mxu0 0
        %1438 = vmatpush1.bf16.msra.mxu0 %v1122
        %1439 = vmatprep.subr.bf16.mxu0 0
        %1440 = vmatpush1.bf16.msra.mxu0 %v1123
        %1441 = vmatprep.subr.bf16.mxu0 0
        %1442 = vmatpush1.bf16.msra.mxu0 %v1124
        %1443 = vmatprep.subr.bf16.mxu0 0
        %1444 = vmatpush1.bf16.msra.mxu0 %v1125
        %1445 = vmatprep.subr.bf16.mxu0 0
        %1446 = vmatpush1.bf16.msra.mxu0 %v1126
        %1447 = vmatprep.mubr.bf16.mxu0 %v497
        %1448 = vmatmul.mubr.bf16.gmra.mrb[0].mxu0 %v483
        %v1449 = vpop.f32.mrb[0].mxu0
        %v1450 = vadd.f32 %v1410, %v1449
        %v1451 = vpop.f32.mrb[0].mxu0
        %v1452 = vpop.f32.mrb[0].mxu0
        %v1453 = vpop.f32.mrb[0].mxu0
        %1454 = vdwg.mxu0
        %1455 = vmatprep.subr.bf16.mxu0 0
        %1456 = vmatpush1.bf16.msra.mxu0 %v1127
        %1457 = vmatprep.subr.bf16.mxu0 0
        %1458 = vmatpush1.bf16.msra.mxu0 %v1128
        %1459 = vmatprep.subr.bf16.mxu0 0
        %1460 = vmatpush1.bf16.msra.mxu0 %v1129
        %1461 = vmatprep.subr.bf16.mxu0 0
        %1462 = vmatpush1.bf16.msra.mxu0 %v1130
        %1463 = vmatprep.subr.bf16.mxu0 0
        %1464 = vmatpush1.bf16.msra.mxu0 %v1131
        %1465 = vmatprep.subr.bf16.mxu0 0
        %1466 = vmatpush1.bf16.msra.mxu0 %v1132
        %1467 = vmatprep.subr.bf16.mxu0 0
        %1468 = vmatpush1.bf16.msra.mxu0 %v1133
        %1469 = vmatprep.subr.bf16.mxu0 0
        %1470 = vmatpush1.bf16.msra.mxu0 %v1134
        %1471 = vmatprep.subr.bf16.mxu0 0
        %1472 = vmatpush1.bf16.msra.mxu0 %v1135
        %1473 = vmatprep.subr.bf16.mxu0 0
        %1474 = vmatpush1.bf16.msra.mxu0 %v1136
        %1475 = vmatprep.subr.bf16.mxu0 0
        %1476 = vmatpush1.bf16.msra.mxu0 %v1137
        %1477 = vmatprep.subr.bf16.mxu0 0
        %1478 = vmatpush1.bf16.msra.mxu0 %v1138
        %1479 = vmatprep.subr.bf16.mxu0 0
        %1480 = vmatpush1.bf16.msra.mxu0 %v1139
        %1481 = vmatprep.subr.bf16.mxu0 0
        %1482 = vmatpush1.bf16.msra.mxu0 %v1140
        %1483 = vmatprep.subr.bf16.mxu0 0
        %1484 = vmatpush1.bf16.msra.mxu0 %v1141
        %1485 = vmatprep.subr.bf16.mxu0 0
        %1486 = vmatpush1.bf16.msra.mxu0 %v1142
        %1487 = vmatprep.mubr.bf16.mxu0 %v501
        %1488 = vmatmul.mubr.bf16.gmra.mrb[0].mxu0 %v499
        %v1489 = vpop.f32.mrb[0].mxu0
        %v1490 = vadd.f32 %v1450, %v1489
        %v1491 = vpop.f32.mrb[0].mxu0
        %v1492 = vpop.f32.mrb[0].mxu0
        %v1493 = vpop.f32.mrb[0].mxu0
        %1494 = vdwg.mxu0
        %1495 = vmatprep.subr.bf16.mxu0 0
        %1496 = vmatpush1.bf16.msra.mxu0 %v1143
        %1497 = vmatprep.subr.bf16.mxu0 0
        %1498 = vmatpush1.bf16.msra.mxu0 %v1144
        %1499 = vmatprep.subr.bf16.mxu0 0
        %1500 = vmatpush1.bf16.msra.mxu0 %v1145
        %1501 = vmatprep.subr.bf16.mxu0 0
        %1502 = vmatpush1.bf16.msra.mxu0 %v1146
        %1503 = vmatprep.subr.bf16.mxu0 0
        %1504 = vmatpush1.bf16.msra.mxu0 %v1147
        %1505 = vmatprep.subr.bf16.mxu0 0
        %1506 = vmatpush1.bf16.msra.mxu0 %v1148
        %1507 = vmatprep.subr.bf16.mxu0 0
        %1508 = vmatpush1.bf16.msra.mxu0 %v1149
        %1509 = vmatprep.subr.bf16.mxu0 0
        %1510 = vmatpush1.bf16.msra.mxu0 %v1150
        %1511 = vmatprep.subr.bf16.mxu0 0
        %1512 = vmatpush1.bf16.msra.mxu0 %v1151
        %1513 = vmatprep.subr.bf16.mxu0 0
        %1514 = vmatpush1.bf16.msra.mxu0 %v1152
        %1515 = vmatprep.subr.bf16.mxu0 0
        %1516 = vmatpush1.bf16.msra.mxu0 %v1153
        %1517 = vmatprep.subr.bf16.mxu0 0
        %1518 = vmatpush1.bf16.msra.mxu0 %v1154
        %1519 = vmatprep.subr.bf16.mxu0 0
        %1520 = vmatpush1.bf16.msra.mxu0 %v1155
        %1521 = vmatprep.subr.bf16.mxu0 0
        %1522 = vmatpush1.bf16.msra.mxu0 %v1156
        %1523 = vmatprep.subr.bf16.mxu0 0
        %1524 = vmatpush1.bf16.msra.mxu0 %v1157
        %1525 = vmatprep.subr.bf16.mxu0 0
        %1526 = vmatpush1.bf16.msra.mxu0 %v1158
        %1527 = vmatprep.mubr.bf16.mxu0 %v539
        %1528 = vmatmul.mubr.bf16.gmra.mrb[0].mxu0 %v525
        %v1529 = vpop.f32.mrb[0].mxu0
        %v1530 = vadd.f32 %v1490, %v1529
        %v1531 = vpop.f32.mrb[0].mxu0
        %v1532 = vpop.f32.mrb[0].mxu0
        %v1533 = vpop.f32.mrb[0].mxu0
        %1534 = vdwg.mxu0
        %1535 = vmatprep.subr.bf16.mxu0 0
        %1536 = vmatpush1.bf16.msra.mxu0 %v1159
        %1537 = vmatprep.subr.bf16.mxu0 0
        %1538 = vmatpush1.bf16.msra.mxu0 %v1160
        %1539 = vmatprep.subr.bf16.mxu0 0
        %1540 = vmatpush1.bf16.msra.mxu0 %v1161
        %1541 = vmatprep.subr.bf16.mxu0 0
        %1542 = vmatpush1.bf16.msra.mxu0 %v1162
        %1543 = vmatprep.subr.bf16.mxu0 0
        %1544 = vmatpush1.bf16.msra.mxu0 %v1163
        %1545 = vmatprep.subr.bf16.mxu0 0
        %1546 = vmatpush1.bf16.msra.mxu0 %v1164
        %1547 = vmatprep.subr.bf16.mxu0 0
        %1548 = vmatpush1.bf16.msra.mxu0 %v1165
        %1549 = vmatprep.subr.bf16.mxu0 0
        %1550 = vmatpush1.bf16.msra.mxu0 %v1166
        %1551 = vmatprep.subr.bf16.mxu0 0
        %1552 = vmatpush1.bf16.msra.mxu0 %v1167
        %1553 = vmatprep.subr.bf16.mxu0 0
        %1554 = vmatpush1.bf16.msra.mxu0 %v1168
        %1555 = vmatprep.subr.bf16.mxu0 0
        %1556 = vmatpush1.bf16.msra.mxu0 %v1169
        %1557 = vmatprep.subr.bf16.mxu0 0
        %1558 = vmatpush1.bf16.msra.mxu0 %v1170
        %1559 = vmatprep.subr.bf16.mxu0 0
        %1560 = vmatpush1.bf16.msra.mxu0 %v1171
        %1561 = vmatprep.subr.bf16.mxu0 0
        %1562 = vmatpush1.bf16.msra.mxu0 %v1172
        %1563 = vmatprep.subr.bf16.mxu0 0
        %1564 = vmatpush1.bf16.msra.mxu0 %v1173
        %1565 = vmatprep.subr.bf16.mxu0 0
        %1566 = vmatpush1.bf16.msra.mxu0 %v1174
        %1567 = vmatprep.mubr.bf16.mxu0 %v549
        %1568 = vmatmul.mubr.bf16.gmra.mrb[0].mxu0 %v547
        %v1569 = vpop.f32.mrb[0].mxu0
        %v1570 = vadd.f32 %v1530, %v1569
        %v1571 = vpop.f32.mrb[0].mxu0
        %v1572 = vpop.f32.mrb[0].mxu0
        %v1573 = vpop.f32.mrb[0].mxu0
        %1574 = vdwg.mxu0
        %1575 = vmatprep.subr.bf16.mxu0 0
        %1576 = vmatpush1.bf16.msra.mxu0 %v1175
        %1577 = vmatprep.subr.bf16.mxu0 0
        %1578 = vmatpush1.bf16.msra.mxu0 %v1176
        %1579 = vmatprep.subr.bf16.mxu0 0
        %1580 = vmatpush1.bf16.msra.mxu0 %v1177
        %1581 = vmatprep.subr.bf16.mxu0 0
        %1582 = vmatpush1.bf16.msra.mxu0 %v1178
        %1583 = vmatprep.subr.bf16.mxu0 0
        %1584 = vmatpush1.bf16.msra.mxu0 %v1179
        %1585 = vmatprep.subr.bf16.mxu0 0
        %1586 = vmatpush1.bf16.msra.mxu0 %v1180
        %1587 = vmatprep.subr.bf16.mxu0 0
        %1588 = vmatpush1.bf16.msra.mxu0 %v1181
        %1589 = vmatprep.subr.bf16.mxu0 0
        %1590 = vmatpush1.bf16.msra.mxu0 %v1182
        %1591 = vmatprep.subr.bf16.mxu0 0
        %1592 = vmatpush1.bf16.msra.mxu0 %v1183
        %1593 = vmatprep.subr.bf16.mxu0 0
        %1594 = vmatpush1.bf16.msra.mxu0 %v1184
        %1595 = vmatprep.subr.bf16.mxu0 0
        %1596 = vmatpush1.bf16.msra.mxu0 %v1185
        %1597 = vmatprep.subr.bf16.mxu0 0
        %1598 = vmatpush1.bf16.msra.mxu0 %v1186
        %1599 = vmatprep.subr.bf16.mxu0 0
        %1600 = vmatpush1.bf16.msra.mxu0 %v1187
        %1601 = vmatprep.subr.bf16.mxu0 0
        %1602 = vmatpush1.bf16.msra.mxu0 %v1188
        %1603 = vmatprep.subr.bf16.mxu0 0
        %1604 = vmatpush1.bf16.msra.mxu0 %v1189
        %1605 = vmatprep.subr.bf16.mxu0 0
        %1606 = vmatpush1.bf16.msra.mxu0 %v1190
        %1607 = vmatprep.mubr.bf16.mxu0 %v546
        %1608 = vmatmul.mubr.bf16.gmra.mrb[0].mxu0 %v532
        %v1609 = vpop.f32.mrb[0].mxu0
        %v1610 = vadd.f32 %v1570, %v1609
        %v1611 = vpop.f32.mrb[0].mxu0
        %v1612 = vpop.f32.mrb[0].mxu0
        %v1613 = vpop.f32.mrb[0].mxu0
        %1614 = vdwg.mxu0
        %1615 = vmatprep.subr.bf16.mxu0 0
        %1616 = vmatpush1.bf16.msra.mxu0 %v1191
        %1617 = vmatprep.subr.bf16.mxu0 0
        %1618 = vmatpush1.bf16.msra.mxu0 %v1192
        %1619 = vmatprep.subr.bf16.mxu0 0
        %1620 = vmatpush1.bf16.msra.mxu0 %v1193
        %1621 = vmatprep.subr.bf16.mxu0 0
        %1622 = vmatpush1.bf16.msra.mxu0 %v1194
        %1623 = vmatprep.subr.bf16.mxu0 0
        %1624 = vmatpush1.bf16.msra.mxu0 %v1195
        %1625 = vmatprep.subr.bf16.mxu0 0
        %1626 = vmatpush1.bf16.msra.mxu0 %v1196
        %1627 = vmatprep.subr.bf16.mxu0 0
        %1628 = vmatpush1.bf16.msra.mxu0 %v1197
        %1629 = vmatprep.subr.bf16.mxu0 0
        %1630 = vmatpush1.bf16.msra.mxu0 %v1198
        %1631 = vmatprep.subr.bf16.mxu0 0
        %1632 = vmatpush1.bf16.msra.mxu0 %v1199
        %1633 = vmatprep.subr.bf16.mxu0 0
        %1634 = vmatpush1.bf16.msra.mxu0 %v1200
        %1635 = vmatprep.subr.bf16.mxu0 0
        %1636 = vmatpush1.bf16.msra.mxu0 %v1201
        %1637 = vmatprep.subr.bf16.mxu0 0
        %1638 = vmatpush1.bf16.msra.mxu0 %v1202
        %1639 = vmatprep.subr.bf16.mxu0 0
        %1640 = vmatpush1.bf16.msra.mxu0 %v1203
        %1641 = vmatprep.subr.bf16.mxu0 0
        %1642 = vmatpush1.bf16.msra.mxu0 %v1204
        %1643 = vmatprep.subr.bf16.mxu0 0
        %1644 = vmatpush1.bf16.msra.mxu0 %v1205
        %1645 = vmatprep.subr.bf16.mxu0 0
        %1646 = vmatpush1.bf16.msra.mxu0 %v1206
        %1647 = vmatprep.mubr.bf16.mxu0 %v550
        %1648 = vmatmul.mubr.bf16.gmra.mrb[0].mxu0 %v548
        %v1649 = vpop.f32.mrb[0].mxu0
        %v1650 = vadd.f32 %v1610, %v1649
        %v1651 = vpop.f32.mrb[0].mxu0
        %v1652 = vpop.f32.mrb[0].mxu0
        %v1653 = vpop.f32.mrb[0].mxu0
        %1654 = vdwg.mxu0
        %v1655 = vadd.f32 %v192, %v1650
        %vm1656 = vcmask 697344
        %1657 = vst.msk [vmem:[#allocation2] sm:$0x3] %vm1656, %v1655
        // Predicated region
        $region37: #{ocrnet_forward.3} parent=31 // pred_check
          %p1658 = pneg %p101
        $region38: #{ocrnet_forward.3} parent=31 // pred_check_branch
          %1660 = sbr.rel (%p1658) target = $region40
        $region39: #{ocrnet_forward.3} parent=31 // pred_region
          %s1662 = ssub.s32 32, 32
          %1663 = vsyncadd [#allocation3], %s1662
          %s1665 = sshll.u32 [#allocation2], 4
          %s1666 = int_to_ptr.vmem [resolvable:$true] %s1665
          %1668 = dma.vmem_to_hbm [thread:$0]  %s1666, 32, %s3, [#allocation3]
        $region40: #{ocrnet_forward.3} parent=31 // pred_fallthru
          _
        // Predicated region
        $region41: #{ocrnet_forward.3} parent=31 // pred_check
          %p1669 = pneg %p101
        $region42: #{ocrnet_forward.3} parent=31 // pred_check_branch
          %1671 = sbr.rel (%p1669) target = $region44
        $region43: #{ocrnet_forward.3} parent=31 // pred_region
          %1672 = dma.done [#allocation3], 32
        $region44: #{ocrnet_forward.3} parent=31 // pred_fallthru
          _
      $region32: #{ocrnet_forward.3} parent=5 // pred_fallthru
        _
      %p1673 = scmp.le.s32.totalorder 2, %s10
      // Predicated region
      $region45: #{ocrnet_forward.3} parent=5 // pred_check
        %p1674 = pneg %p1673
      $region46: #{ocrnet_forward.3} parent=5 // pred_check_branch
        %1676 = sbr.rel (%p1674) target = $region48
      $region47: #{ocrnet_forward.3} parent=5 // pred_region
        %s1677 = ssub.s32 %s10, 2
      $region48: #{ocrnet_forward.3} parent=5 // pred_fallthru
        _
    $region6: #{ocrnet_forward.3} parent=1 // loop_footer
      %s14 = sadd.s32 1, %s10
    $region7: #{ocrnet_forward.3} parent=1 // loop_footer_branch
      %9 = sbr.rel target = $region3
    $region8: #{ocrnet_forward.3} parent=1 // loop_exit
      _
    %1678 = vsyncpa [#allocation3], 1
    %s1679 = scalar_lea.sflag [#allocation3], 1
    %1680 = vsyncpa %s1679, 1

// kernel: ocrnet_forward.2
$region0: #{ocrnet_forward.2}
  #allocation0 [shape = 'u32[]', space=smem, size = 0x4, offset = 0x4, fixed_abs, tag = 'smem constant byte address 0x4 - core index']
  #allocation1 [shape = 'u32[144,128]{1,0:T(1,128)}', space=vmem, size = 0x12000, scoped, tag = 'internal scratch']
  #allocation2 [shape = 'bf16[3,290]{1,0:T(4,128)(2,1)}', space=vmem, size = 0xc00, scoped, tag = 'scratch operand']
  #allocation3 [shape = 'bf16[16,290]{1,0:T(16,128)(2,1)}', space=vmem, size = 0x3000, scoped, tag = 'scratch operand']
  %s0 = inlined_call_operand.vmem [shape: f32[2,3,256], index: 0, kind: input, shape index: {}]
  %s1 = inlined_call_operand.hbm [shape: bf16[9,256], index: 1, kind: input, shape index: {}]
  %s2 = inlined_call_operand.vmem [shape: bf16[9,16,3], index: 2, kind: input, shape index: {}]
  %s3 = inlined_call_operand.vmem [shape: f32[16,1], index: 3, kind: input, shape index: {}]
  %s4 = inlined_call_operand.vmem [shape: bf16[9,32,16], index: 4, kind: input, shape index: {}]
  %s5 = inlined_call_operand.vmem [shape: f32[32,1], index: 5, kind: input, shape index: {}]
  %s6 = inlined_call_operand.vmem [shape: bf16[2,32,256], index: 6, kind: output, shape index: {}]
  %s7 = sld [smem:[#allocation0]]
  $region61: #{ocrnet_forward.2} parent=0
    _
  %s9 = ssub.s32 1, %s7
  %s10 = scalar_select 0, %s9, %s7
  $region1: #{ocrnet_forward.2} parent=0
    #allocation4 [shape = 'u8[8192]{0}', space=vmem, size = 0x2000, scoped, tag = 'input window, operand 1, single buffered']
    #allocation5 [shape = 's32[2]{0}', space=sflag, size = 0x8, scoped, tag = 'scoped memory for ocrnet_forward.2']
    %11 = vsyncpa [#allocation5], 0
    loop: start=0, step=1, limit=4
    $region2: #{ocrnet_forward.2} parent=1 // loop_pre_header
      _
    $region3: #{ocrnet_forward.2} parent=1 // loop_header
      %s13 = sphi 0, %s17
      %p14 = scmp.ge.s32.totalorder %s13, 4
      %s23 = sphi 0, %s25
      %s26 = sphi 0, %s23
      %s27 = sphi 0, %s26
      %s43 = sphi 0, %s27
      %s47 = sphi 0, %s47
      %s49 = sphi 0, %s47
      %s50 = sphi 0, %s49
      %s64 = sphi 0, %s50
      %s68 = sphi 0, %s68
      %s70 = sphi 0, %s68
      %s71 = sphi 0, %s70
      %s85 = sphi 0, %s71
      %s89 = sphi 0, %s89
      %s91 = sphi 0, %s89
      %s92 = sphi 0, %s91
      %s106 = sphi 0, %s92
      %s110 = sphi 0, %s110
      %s112 = sphi 0, %s110
      %s113 = sphi 0, %s112
      %s127 = sphi 0, %s113
      %s131 = sphi 0, %s131
      %s133 = sphi 0, %s131
      %s134 = sphi 0, %s133
      %s148 = sphi 0, %s134
      %s154 = sphi 0, %s156
      %s157 = sphi 0, %s154
      %s158 = sphi 0, %s157
      %s174 = sphi 0, %s158
    $region4: #{ocrnet_forward.2} parent=1 // loop_header_branch
      %16 = sbr.rel (%p14) target = $region8
    $region5: #{ocrnet_forward.2} parent=1 // loop_body
      %s18 = ssub.s32 %s13, 1
      %s19 = ssub.s32 %s13, 2
      %s20 = sadd.s32 %s13, 1
      %s21 = ssub.s32 %s13, %s20
      %p22 = scmp.eq.s32.totalorder %s21, 0
      %s24 = sadd.s32 %s23, 1
      %s25 = scalar_select %p22, %s23, %s24
      %p28 = pneg %p22
      %p29 = scmp.eq.s32.totalorder %s13, 1
      %p30 = por %p28, %p29
      %p31 = scmp.ne.s32.totalorder %s23, %s26
      %p32 = scmp.eq.s32.totalorder %s13, 0
      %p33 = por %p31, %p32
      %p34 = scmp.ne.s32.totalorder %s23, %s26
      %p35 = scmp.eq.s32.totalorder %s18, 1
      %p36 = por %p34, %p35
      %p37 = scmp.ne.s32.totalorder %s26, %s27
      %p38 = scmp.eq.s32.totalorder %s18, 0
      %p39 = por %p37, %p38
      %p40 = scmp.ne.s32.totalorder %s26, %s27
      %p41 = scmp.eq.s32.totalorder %s19, 1
      %p42 = por %p40, %p41
      %p44 = scmp.ne.s32.totalorder %s27, %s43
      %p45 = scmp.eq.s32.totalorder %s19, 0
      %p46 = por %p44, %p45
      %s48 = sadd.s32 %s47, 1
      %p51 = scmp.eq.s32.totalorder %s13, 1
      %p52 = scmp.ne.s32.totalorder %s47, %s49
      %p53 = scmp.eq.s32.totalorder %s13, 0
      %p54 = por %p52, %p53
      %p55 = scmp.ne.s32.totalorder %s47, %s49
      %p56 = scmp.eq.s32.totalorder %s18, 1
      %p57 = por %p55, %p56
      %p58 = scmp.ne.s32.totalorder %s49, %s50
      %p59 = scmp.eq.s32.totalorder %s18, 0
      %p60 = por %p58, %p59
      %p61 = scmp.ne.s32.totalorder %s49, %s50
      %p62 = scmp.eq.s32.totalorder %s19, 1
      %p63 = por %p61, %p62
      %p65 = scmp.ne.s32.totalorder %s50, %s64
      %p66 = scmp.eq.s32.totalorder %s19, 0
      %p67 = por %p65, %p66
      %s69 = sadd.s32 %s68, 1
      %p72 = scmp.eq.s32.totalorder %s13, 1
      %p73 = scmp.ne.s32.totalorder %s68, %s70
      %p74 = scmp.eq.s32.totalorder %s13, 0
      %p75 = por %p73, %p74
      %p76 = scmp.ne.s32.totalorder %s68, %s70
      %p77 = scmp.eq.s32.totalorder %s18, 1
      %p78 = por %p76, %p77
      %p79 = scmp.ne.s32.totalorder %s70, %s71
      %p80 = scmp.eq.s32.totalorder %s18, 0
      %p81 = por %p79, %p80
      %p82 = scmp.ne.s32.totalorder %s70, %s71
      %p83 = scmp.eq.s32.totalorder %s19, 1
      %p84 = por %p82, %p83
      %p86 = scmp.ne.s32.totalorder %s71, %s85
      %p87 = scmp.eq.s32.totalorder %s19, 0
      %p88 = por %p86, %p87
      %s90 = sadd.s32 %s89, 1
      %p93 = scmp.eq.s32.totalorder %s13, 1
      %p94 = scmp.ne.s32.totalorder %s89, %s91
      %p95 = scmp.eq.s32.totalorder %s13, 0
      %p96 = por %p94, %p95
      %p97 = scmp.ne.s32.totalorder %s89, %s91
      %p98 = scmp.eq.s32.totalorder %s18, 1
      %p99 = por %p97, %p98
      %p100 = scmp.ne.s32.totalorder %s91, %s92
      %p101 = scmp.eq.s32.totalorder %s18, 0
      %p102 = por %p100, %p101
      %p103 = scmp.ne.s32.totalorder %s91, %s92
      %p104 = scmp.eq.s32.totalorder %s19, 1
      %p105 = por %p103, %p104
      %p107 = scmp.ne.s32.totalorder %s92, %s106
      %p108 = scmp.eq.s32.totalorder %s19, 0
      %p109 = por %p107, %p108
      %s111 = sadd.s32 %s110, 1
      %p114 = scmp.eq.s32.totalorder %s13, 1
      %p115 = scmp.ne.s32.totalorder %s110, %s112
      %p116 = scmp.eq.s32.totalorder %s13, 0
      %p117 = por %p115, %p116
      %p118 = scmp.ne.s32.totalorder %s110, %s112
      %p119 = scmp.eq.s32.totalorder %s18, 1
      %p120 = por %p118, %p119
      %p121 = scmp.ne.s32.totalorder %s112, %s113
      %p122 = scmp.eq.s32.totalorder %s18, 0
      %p123 = por %p121, %p122
      %p124 = scmp.ne.s32.totalorder %s112, %s113
      %p125 = scmp.eq.s32.totalorder %s19, 1
      %p126 = por %p124, %p125
      %p128 = scmp.ne.s32.totalorder %s113, %s127
      %p129 = scmp.eq.s32.totalorder %s19, 0
      %p130 = por %p128, %p129
      %s132 = sadd.s32 %s131, 1
      %p135 = scmp.eq.s32.totalorder %s13, 1
      %p136 = scmp.ne.s32.totalorder %s131, %s133
      %p137 = scmp.eq.s32.totalorder %s13, 0
      %p138 = por %p136, %p137
      %p139 = scmp.ne.s32.totalorder %s131, %s133
      %p140 = scmp.eq.s32.totalorder %s18, 1
      %p141 = por %p139, %p140
      %p142 = scmp.ne.s32.totalorder %s133, %s134
      %p143 = scmp.eq.s32.totalorder %s18, 0
      %p144 = por %p142, %p143
      %p145 = scmp.ne.s32.totalorder %s133, %s134
      %p146 = scmp.eq.s32.totalorder %s19, 1
      %p147 = por %p145, %p146
      %p149 = scmp.ne.s32.totalorder %s134, %s148
      %p150 = scmp.eq.s32.totalorder %s19, 0
      %p151 = por %p149, %p150
      %s152 = ssub.s32 %s13, %s20
      %p153 = scmp.eq.s32.totalorder %s152, 0
      %s155 = sadd.s32 %s154, 1
      %s156 = scalar_select %p153, %s154, %s155
      %p159 = pneg %p153
      %p160 = scmp.eq.s32.totalorder %s13, 1
      %p161 = por %p159, %p160
      %p162 = scmp.ne.s32.totalorder %s154, %s157
      %p163 = scmp.eq.s32.totalorder %s13, 0
      %p164 = por %p162, %p163
      %p165 = scmp.ne.s32.totalorder %s154, %s157
      %p166 = scmp.eq.s32.totalorder %s18, 1
      %p167 = por %p165, %p166
      %p168 = scmp.ne.s32.totalorder %s157, %s158
      %p169 = scmp.eq.s32.totalorder %s18, 0
      %p170 = por %p168, %p169
      %p171 = scmp.ne.s32.totalorder %s157, %s158
      %p172 = scmp.eq.s32.totalorder %s19, 1
      %p173 = por %p171, %p172
      %p175 = scmp.ne.s32.totalorder %s158, %s174
      %p176 = scmp.eq.s32.totalorder %s19, 0
      %p177 = por %p175, %p176
      %p178 = scmp.le.s32.totalorder 1, %s13
      %p179 = scmp.lt.s32.totalorder %s13, 3
      %p180 = pnand %p178, %p179
      %p181 = pneg %p180
      // Predicated region
      $region9: #{ocrnet_forward.2} parent=5 // pred_check
        _
      $region10: #{ocrnet_forward.2} parent=5 // pred_check_branch
        %183 = sbr.rel (%p180) target = $region12
      $region11: #{ocrnet_forward.2} parent=5 // pred_region
        %s184 = ssub.s32 %s13, 1
        // Predicated region
        $region13: #{ocrnet_forward.2} parent=11 // pred_check
          %p185 = pneg %p60
        $region14: #{ocrnet_forward.2} parent=11 // pred_check_branch
          %187 = sbr.rel (%p185) target = $region16
        $region15: #{ocrnet_forward.2} parent=11 // pred_region
          %s189 = ssub.s32 256, 256
          %190 = vsyncadd [#allocation5], %s189
          %s191 = sshll.u32 [#allocation4], 4
          %s192 = int_to_ptr.vmem [resolvable:$true] %s191
          %197 = dma.hbm_to_vmem [thread:$0]  %s1, 256, %s192, [#allocation5], 128, 128, 8
        $region16: #{ocrnet_forward.2} parent=11 // pred_fallthru
          _
        // Predicated region
        $region17: #{ocrnet_forward.2} parent=11 // pred_check
          %p198 = pneg %p81
        $region18: #{ocrnet_forward.2} parent=11 // pred_check_branch
          %200 = sbr.rel (%p198) target = $region20
        $region19: #{ocrnet_forward.2} parent=11 // pred_region
          _
        $region20: #{ocrnet_forward.2} parent=11 // pred_fallthru
          _
        // Predicated region
        $region21: #{ocrnet_forward.2} parent=11 // pred_check
          %p201 = pneg %p102
        $region22: #{ocrnet_forward.2} parent=11 // pred_check_branch
          %203 = sbr.rel (%p201) target = $region24
        $region23: #{ocrnet_forward.2} parent=11 // pred_region
          _
        $region24: #{ocrnet_forward.2} parent=11 // pred_fallthru
          _
        // Predicated region
        $region25: #{ocrnet_forward.2} parent=11 // pred_check
          %p204 = pneg %p123
        $region26: #{ocrnet_forward.2} parent=11 // pred_check_branch
          %206 = sbr.rel (%p204) target = $region28
        $region27: #{ocrnet_forward.2} parent=11 // pred_region
          _
        $region28: #{ocrnet_forward.2} parent=11 // pred_fallthru
          _
        // Predicated region
        $region29: #{ocrnet_forward.2} parent=11 // pred_check
          %p207 = pneg %p144
        $region30: #{ocrnet_forward.2} parent=11 // pred_check_branch
          %209 = sbr.rel (%p207) target = $region32
        $region31: #{ocrnet_forward.2} parent=11 // pred_region
          _
        $region32: #{ocrnet_forward.2} parent=11 // pred_fallthru
          _
      $region12: #{ocrnet_forward.2} parent=5 // pred_fallthru
        _
      %p210 = scmp.lt.s32.totalorder %s13, 2
      // Predicated region
      $region33: #{ocrnet_forward.2} parent=5 // pred_check
        %p211 = pneg %p210
      $region34: #{ocrnet_forward.2} parent=5 // pred_check_branch
        %213 = sbr.rel (%p211) target = $region36
      $region35: #{ocrnet_forward.2} parent=5 // pred_region
        // Predicated region
        $region37: #{ocrnet_forward.2} parent=35 // pred_check
          %p214 = pneg %p33
        $region38: #{ocrnet_forward.2} parent=35 // pred_check_branch
          %216 = sbr.rel (%p214) target = $region40
        $region39: #{ocrnet_forward.2} parent=35 // pred_region
          %p217 = scmp.lt.s32.totalorder %s13, 1
          %s218 = scalar_select %p217, %s13, 1
          %s219 = smul.addr %s218, 2
          %s220 = smul.addr %s219, 4
          %s221 = scalar_lea.vmem %s0, %s220
        $region40: #{ocrnet_forward.2} parent=35 // pred_fallthru
          _
      $region36: #{ocrnet_forward.2} parent=5 // pred_fallthru
        _
      %p222 = scmp.le.s32.totalorder 1, %s13
      %p223 = scmp.lt.s32.totalorder %s13, 3
      %p224 = pnand %p222, %p223
      %p225 = pneg %p224
      // Predicated region
      $region41: #{ocrnet_forward.2} parent=5 // pred_check
        _
      $region42: #{ocrnet_forward.2} parent=5 // pred_check_branch
        %227 = sbr.rel (%p224) target = $region44
      $region43: #{ocrnet_forward.2} parent=5 // pred_region
        %s228 = ssub.s32 %s13, 1
        // Predicated region
        $region45: #{ocrnet_forward.2} parent=43 // pred_check
          %p229 = pneg %p60
        $region46: #{ocrnet_forward.2} parent=43 // pred_check_branch
          %231 = sbr.rel (%p229) target = $region48
        $region47: #{ocrnet_forward.2} parent=43 // pred_region
          %232 = dma.done [#allocation5], 256
        $region48: #{ocrnet_forward.2} parent=43 // pred_fallthru
          _
        %p233 = scmp.lt.s32.totalorder %s18, 1
        %s234 = scalar_select %p233, %s18, 1
        %s235 = smul.addr %s234, 2
        %s236 = smul.addr %s235, 4
        %s237 = scalar_lea.vmem %s0, %s236
        %p238 = pneg %p39
        %p239 = pneg %p36
        %p240 = pneg %p60
        %p241 = pneg %p57
        %p242 = pneg %p81
        %p243 = pneg %p78
        %p244 = pneg %p102
        %p245 = pneg %p99
        %p246 = pneg %p123
        %p247 = pneg %p120
        %p248 = pneg %p144
        %p249 = pneg %p141
        %p250 = pneg %p170
        %p251 = pneg %p167
        %p252 = scmp.lt.s32.totalorder %s18, 1
        %s253 = scalar_select %p252, %s18, 1
        %s254 = smul.addr %s253, 8
        %s255 = smul.addr %s254, 4
        %s256 = scalar_lea.vmem %s6, %s255
        %p257 = scmp.lt.s32.totalorder %s18, 1
        %s258 = scalar_select %p257, %s18, 1
        %s259 = smul.addr %s258, 2
        %s260 = smul.addr %s259, 4
        %s261 = scalar_lea.vmem %s0, %s260
        %p262 = scmp.lt.s32.totalorder %s18, 1
        %s263 = scalar_select %p262, %s18, 1
        %s264 = smul.addr %s263, 8
        %s265 = smul.addr %s264, 4
        %s266 = scalar_lea.vmem %s6, %s265
        %vm268 = vcmask 1041408
        %vm269 = vsmask.f32 1280
        %vm270 = vmand %vm268, %vm269
        %vm271 = vcmask 1043458
        %vm272 = vsmask.f32 3328
        %vm273 = vmand %vm271, %vm272
        %vm274 = vmor %vm273, %vm270
        %vm275 = vcmask 275460
        %vm276 = vsmask.f32 5376
        %vm277 = vmand %vm275, %vm276
        %vm278 = vmor %vm277, %vm274
        %v279 = vld [vmem:[#allocation2] sm:$0x3f]
        %v280 = vsel %vm278, 0, %v279
        %281 = vst [vmem:[#allocation2] sm:$0x3f] %v280
        %282 = vst [vmem:[#allocation3] sm:$0xff] 0
        %283 = vst [vmem:[#allocation3 + $0x8] sm:$0xff] 0
        %vm284 = vcmask 277504
        %285 = vst.msk [vmem:[#allocation3 + $0x10] sm:$0xff] %vm284, 0
        %v286 = vld [vmem:[%s261] sm:$0x77]
        %v288 = vcombine.high %v286, %v286
        %v290 = vpack.c.bf16 %v286, %v286
        %v291 = vpack.c.bf16 %v288, %v288
        %v294 = vcombine.low %v290, %v291
        %v296 = vunpack.c.l.s4 1983009808
        %v297 = vunpack.c.0.s8 %v296
        %v298 = vlaneseq
        %v299 = vshrl.u32 %v298, 7
        %v300 = vsub.s32 %v297, %v299
        %v301 = vrot.slane %v294, %v300
        %302 = vrot.lane.b32.xlu0 %v301, 17
        %v303 = vpop.permute.xlu0 %302
        %v304 = vrot.slane %v303, 6
        %vm305 = vcmask 138240
        %v306 = vsel %vm305, %v304, %v303
        %vm308 = vcmask 1041544
        %vm309 = vmand %vm308, %vm269
        %vm310 = vmor %vm273, %vm309
        %vm311 = vcmask 136196
        %vm312 = vmand %vm311, %vm276
        %vm313 = vmor %vm312, %vm310
        %v314 = vld [vmem:[#allocation2] sm:$0x3f]
        %v315 = vsel %vm313, %v306, %v314
        %316 = vst [vmem:[#allocation2] sm:$0x3f] %v315
        %v317 = vld [vmem:[#allocation2] sm:$0xf]
        %v318 = vld [vmem:[#allocation4] sm:$0x11]
        %v320 = vunpack.c.l.b16 %v318
        %v321 = vunpack.c.h.b16 %v318
        %v322 = vpack.c.b16 %v320, %v320
        %v323 = vpack.c.b16 %v321, %v321
        %v325 = vpack.i.b16 %v322, %v322
        %v327 = vlaneseq
        %v328 = vshrl.u32 %v327, 7
        %v329 = vsub.s32 0, %v328
        %v330 = vrot.slane %v325, %v329
        %v332 = vpack.i.b16 %v323, %v323
        %v334 = vlaneseq
        %v335 = vshrl.u32 %v334, 7
        %v336 = vsub.s32 0, %v335
        %v337 = vrot.slane %v332, %v336
        %v340 = vcombine.low %v330, %v337
        %v342 = vunpack.c.l.s4 1983009808
        %v343 = vunpack.c.0.s8 %v342
        %v344 = vlaneseq
        %v345 = vshrl.u32 %v344, 7
        %v346 = vsub.s32 %v343, %v345
        %v347 = vrot.slane %v340, %v346
        %v349 = vmul.bf16 %v317, %v347
        %v350 = vld [vmem:[%s2] sm:$0xf]
        %v351 = vld [vmem:[%s2 + $0x4] sm:$0xf]
        %v352 = vld [vmem:[#allocation2] sm:$0x3f]
        %v353 = vshrl.u32 %v322, 16
        %v354 = vpack.i.b16 %v353, %v353
        %v356 = vlaneseq
        %v357 = vshrl.u32 %v356, 7
        %v358 = vsub.s32 0, %v357
        %v359 = vrot.slane %v354, %v358
        %v360 = vshrl.u32 %v323, 16
        %v361 = vpack.i.b16 %v360, %v360
        %v363 = vlaneseq
        %v364 = vshrl.u32 %v363, 7
        %v365 = vsub.s32 0, %v364
        %v366 = vrot.slane %v361, %v365
        %v369 = vcombine.low %v359, %v366
        %v371 = vunpack.c.l.s4 1983009808
        %v372 = vunpack.c.0.s8 %v371
        %v373 = vlaneseq
        %v374 = vshrl.u32 %v373, 7
        %v375 = vsub.s32 %v372, %v374
        %v376 = vrot.slane %v369, %v375
        %377 = vrot.lane.b32.xlu0 %v376, 1
        %v378 = vpop.permute.xlu0 %377
        %v379 = vrot.slane %v378, 6
        %vm380 = vcmask 7168
        %v381 = vsel %vm380, %v379, %v378
        %v383 = vmul.bf16 %v352, %v381
        %s384 = scalar_lea.vmem %s2, 8
        %v385 = vld [vmem:[%s384] sm:$0xf]
        %v386 = vld [vmem:[%s384 + $0x4] sm:$0xf]
        %v389 = vunpack.c.l.b16 %v385
        %v390 = vunpack.c.l.b16 %v386
        %v391 = vpack.c.b16 %v390, %v389
        %v393 = vcombine.high %v383, %v383
        %v395 = vunpack.c.l.s4 1983009808
        %v396 = vunpack.c.0.s8 %v395
        %v397 = vlaneseq
        %v398 = vshrl.u32 %v397, 7
        %v399 = vsub.s32 %v396, %v398
        %v400 = vrot.slane %v383, %v399
        %v402 = vunpack.c.l.s4 1983009808
        %v403 = vunpack.c.0.s8 %v402
        %v404 = vlaneseq
        %v405 = vshrl.u32 %v404, 7
        %v406 = vsub.s32 %v403, %v405
        %v407 = vrot.slane %v393, %v406
        %v408 = vcombine.high %v400, %v400
        %409 = vrot.lane.b32.xlu0 %v400, 127
        %v410 = vpop.permute.xlu0 %409
        %411 = vrot.lane.b32.xlu0 %v408, 127
        %v412 = vpop.permute.xlu0 %411
        %413 = vrot.lane.b32.xlu0 %v407, 127
        %v414 = vpop.permute.xlu0 %413
        %vm415 = vcmask 1039360
        %v416 = vsel %vm415, %v410, %v412
        %v417 = vsel %vm415, %v412, %v414
        %vm418 = vcmask 23552
        %v420 = vsel %vm418, %v391, 0
        %vm422 = vcmask 1040384
        %vm423 = vcmask 1041408
        %v424 = vsel %vm422, 4294967295, 65535
        %v425 = vsel %vm423, %v424, 0
        %v427 = vand.u32 %v416, %v425
        %v430 = vand.u32 %v417, %v425
        %432 = vmatprep.subr.bf16.mxu0 %v430
        %433 = vmatpush1.bf16.msra.mxu0 %v427
        %434 = vmatprep.subr.bf16.mxu0 0
        %435 = vmatpush1.bf16.msra.mxu0 0
        %436 = vmatprep.subr.bf16.mxu0 0
        %437 = vmatpush1.bf16.msra.mxu0 0
        %438 = vmatprep.subr.bf16.mxu0 0
        %439 = vmatpush1.bf16.msra.mxu0 0
        %440 = vmatprep.subr.bf16.mxu0 0
        %441 = vmatpush1.bf16.msra.mxu0 0
        %442 = vmatprep.subr.bf16.mxu0 0
        %443 = vmatpush1.bf16.msra.mxu0 0
        %444 = vmatprep.subr.bf16.mxu0 0
        %445 = vmatpush1.bf16.msra.mxu0 0
        %446 = vmatprep.subr.bf16.mxu0 0
        %447 = vmatpush1.bf16.msra.mxu0 0
        %448 = vmatprep.subr.bf16.mxu0 0
        %449 = vmatpush1.bf16.msra.mxu0 0
        %450 = vmatprep.subr.bf16.mxu0 0
        %451 = vmatpush1.bf16.msra.mxu0 0
        %452 = vmatprep.subr.bf16.mxu0 0
        %453 = vmatpush1.bf16.msra.mxu0 0
        %454 = vmatprep.subr.bf16.mxu0 0
        %455 = vmatpush1.bf16.msra.mxu0 0
        %456 = vmatprep.subr.bf16.mxu0 0
        %457 = vmatpush1.bf16.msra.mxu0 0
        %458 = vmatprep.subr.bf16.mxu0 0
        %459 = vmatpush1.bf16.msra.mxu0 0
        %460 = vmatprep.subr.bf16.mxu0 0
        %461 = vmatpush1.bf16.msra.mxu0 0
        %462 = vmatprep.subr.bf16.mxu0 0
        %463 = vmatpush1.bf16.msra.mxu0 0
        %464 = vmatprep.mubr.bf16.mxu0 0
        %465 = vmatmul.mubr.bf16.gmra.mrb[0].mxu0 %v420
        %v466 = vpop.f32.mrb[0].mxu0
        %v467 = vadd.f32 0.0, %v466
        %v468 = vpop.f32.mrb[0].mxu0
        %v469 = vadd.f32 0.0, %v468
        %v470 = vpop.f32.mrb[0].mxu0
        %v471 = vadd.f32 0.0, %v470
        %v472 = vpop.f32.mrb[0].mxu0
        %v473 = vadd.f32 0.0, %v472
        %474 = vdwg.mxu0
        %v477 = vunpack.c.l.b16 %v350
        %v478 = vunpack.c.l.b16 %v351
        %v479 = vpack.c.b16 %v478, %v477
        %v482 = vunpack.c.l.s4 1983009808
        %v483 = vunpack.c.0.s8 %v482
        %v484 = vlaneseq
        %v485 = vshrl.u32 %v484, 7
        %v486 = vsub.s32 %v483, %v485
        %v487 = vrot.slane %v349, %v486
        %v488 = vcombine.high %v487, %v487
        %v490 = vsel %vm418, %v479, 0
        %v493 = vand.u32 %v487, %v425
        %v496 = vand.u32 %v488, %v425
        %498 = vmatprep.subr.bf16.mxu0 %v496
        %499 = vmatpush1.bf16.msra.mxu0 %v493
        %500 = vmatprep.subr.bf16.mxu0 0
        %501 = vmatpush1.bf16.msra.mxu0 0
        %502 = vmatprep.subr.bf16.mxu0 0
        %503 = vmatpush1.bf16.msra.mxu0 0
        %504 = vmatprep.subr.bf16.mxu0 0
        %505 = vmatpush1.bf16.msra.mxu0 0
        %506 = vmatprep.subr.bf16.mxu0 0
        %507 = vmatpush1.bf16.msra.mxu0 0
        %508 = vmatprep.subr.bf16.mxu0 0
        %509 = vmatpush1.bf16.msra.mxu0 0
        %510 = vmatprep.subr.bf16.mxu0 0
        %511 = vmatpush1.bf16.msra.mxu0 0
        %512 = vmatprep.subr.bf16.mxu0 0
        %513 = vmatpush1.bf16.msra.mxu0 0
        %514 = vmatprep.subr.bf16.mxu0 0
        %515 = vmatpush1.bf16.msra.mxu0 0
        %516 = vmatprep.subr.bf16.mxu0 0
        %517 = vmatpush1.bf16.msra.mxu0 0
        %518 = vmatprep.subr.bf16.mxu0 0
        %519 = vmatpush1.bf16.msra.mxu0 0
        %520 = vmatprep.subr.bf16.mxu0 0
        %521 = vmatpush1.bf16.msra.mxu0 0
        %522 = vmatprep.subr.bf16.mxu0 0
        %523 = vmatpush1.bf16.msra.mxu0 0
        %524 = vmatprep.subr.bf16.mxu0 0
        %525 = vmatpush1.bf16.msra.mxu0 0
        %526 = vmatprep.subr.bf16.mxu0 0
        %527 = vmatpush1.bf16.msra.mxu0 0
        %528 = vmatprep.subr.bf16.mxu0 0
        %529 = vmatpush1.bf16.msra.mxu0 0
        %530 = vmatprep.mubr.bf16.mxu0 0
        %531 = vmatmul.mubr.bf16.gmra.mrb[0].mxu0 %v490
        %v532 = vpop.f32.mrb[0].mxu0
        %v533 = vadd.f32 %v467, %v532
        %v534 = vpop.f32.mrb[0].mxu0
        %v535 = vadd.f32 %v469, %v534
        %v536 = vpop.f32.mrb[0].mxu0
        %v537 = vadd.f32 %v471, %v536
        %v538 = vpop.f32.mrb[0].mxu0
        %v539 = vadd.f32 %v473, %v538
        %540 = vdwg.mxu0
        %v541 = vld [vmem:[#allocation2] sm:$0x3f]
        %v542 = vld [vmem:[#allocation4] sm:$0x22]
        %v544 = vunpack.c.l.b16 %v542
        %v545 = vunpack.c.h.b16 %v542
        %v546 = vpack.c.b16 %v544, %v544
        %v547 = vpack.c.b16 %v545, %v545
        %v549 = vpack.i.b16 %v546, %v546
        %v551 = vlaneseq
        %v552 = vshrl.u32 %v551, 7
        %v553 = vsub.s32 1, %v552
        %v554 = vrot.slane %v549, %v553
        %v556 = vpack.i.b16 %v547, %v547
        %v558 = vlaneseq
        %v559 = vshrl.u32 %v558, 7
        %v560 = vsub.s32 1, %v559
        %v561 = vrot.slane %v556, %v560
        %v564 = vcombine.low %v554, %v561
        %v566 = vunpack.c.l.s4 1983009808
        %v567 = vunpack.c.0.s8 %v566
        %v568 = vlaneseq
        %v569 = vshrl.u32 %v568, 7
        %v570 = vsub.s32 %v567, %v569
        %v571 = vrot.slane %v564, %v570
        %572 = vrot.lane.b32.xlu0 %v571, 2
        %v573 = vpop.permute.xlu0 %572
        %v574 = vrot.slane %v573, 6
        %vm575 = vcmask 15360
        %v576 = vsel %vm575, %v574, %v573
        %v578 = vmul.bf16 %v541, %v576
        %s579 = scalar_lea.vmem %s2, 16
        %v580 = vld [vmem:[%s579] sm:$0xf]
        %v581 = vld [vmem:[%s579 + $0x4] sm:$0xf]
        %v584 = vunpack.c.l.b16 %v580
        %v585 = vunpack.c.l.b16 %v581
        %v586 = vpack.c.b16 %v585, %v584
        %v588 = vcombine.high %v578, %v578
        %v590 = vunpack.c.l.s4 1983009808
        %v591 = vunpack.c.0.s8 %v590
        %v592 = vlaneseq
        %v593 = vshrl.u32 %v592, 7
        %v594 = vsub.s32 %v591, %v593
        %v595 = vrot.slane %v578, %v594
        %v597 = vunpack.c.l.s4 1983009808
        %v598 = vunpack.c.0.s8 %v597
        %v599 = vlaneseq
        %v600 = vshrl.u32 %v599, 7
        %v601 = vsub.s32 %v598, %v600
        %v602 = vrot.slane %v588, %v601
        %v603 = vcombine.high %v595, %v595
        %604 = vrot.lane.b32.xlu0 %v595, 126
        %v605 = vpop.permute.xlu0 %604
        %606 = vrot.lane.b32.xlu0 %v603, 126
        %v607 = vpop.permute.xlu0 %606
        %608 = vrot.lane.b32.xlu0 %v602, 126
        %v609 = vpop.permute.xlu0 %608
        %vm610 = vcmask 1031168
        %v611 = vsel %vm610, %v605, %v607
        %v612 = vsel %vm610, %v607, %v609
        %v614 = vsel %vm418, %v586, 0
        %v617 = vand.u32 %v611, %v425
        %v620 = vand.u32 %v612, %v425
        %622 = vmatprep.subr.bf16.mxu0 %v620
        %623 = vmatpush1.bf16.msra.mxu0 %v617
        %624 = vmatprep.subr.bf16.mxu0 0
        %625 = vmatpush1.bf16.msra.mxu0 0
        %626 = vmatprep.subr.bf16.mxu0 0
        %627 = vmatpush1.bf16.msra.mxu0 0
        %628 = vmatprep.subr.bf16.mxu0 0
        %629 = vmatpush1.bf16.msra.mxu0 0
        %630 = vmatprep.subr.bf16.mxu0 0
        %631 = vmatpush1.bf16.msra.mxu0 0
        %632 = vmatprep.subr.bf16.mxu0 0
        %633 = vmatpush1.bf16.msra.mxu0 0
        %634 = vmatprep.subr.bf16.mxu0 0
        %635 = vmatpush1.bf16.msra.mxu0 0
        %636 = vmatprep.subr.bf16.mxu0 0
        %637 = vmatpush1.bf16.msra.mxu0 0
        %638 = vmatprep.subr.bf16.mxu0 0
        %639 = vmatpush1.bf16.msra.mxu0 0
        %640 = vmatprep.subr.bf16.mxu0 0
        %641 = vmatpush1.bf16.msra.mxu0 0
        %642 = vmatprep.subr.bf16.mxu0 0
        %643 = vmatpush1.bf16.msra.mxu0 0
        %644 = vmatprep.subr.bf16.mxu0 0
        %645 = vmatpush1.bf16.msra.mxu0 0
        %646 = vmatprep.subr.bf16.mxu0 0
        %647 = vmatpush1.bf16.msra.mxu0 0
        %648 = vmatprep.subr.bf16.mxu0 0
        %649 = vmatpush1.bf16.msra.mxu0 0
        %650 = vmatprep.subr.bf16.mxu0 0
        %651 = vmatpush1.bf16.msra.mxu0 0
        %652 = vmatprep.subr.bf16.mxu0 0
        %653 = vmatpush1.bf16.msra.mxu0 0
        %654 = vmatprep.mubr.bf16.mxu0 0
        %655 = vmatmul.mubr.bf16.gmra.mrb[0].mxu0 %v614
        %v656 = vpop.f32.mrb[0].mxu0
        %v657 = vadd.f32 0.0, %v656
        %v658 = vpop.f32.mrb[0].mxu0
        %v659 = vadd.f32 0.0, %v658
        %v660 = vpop.f32.mrb[0].mxu0
        %v661 = vadd.f32 0.0, %v660
        %v662 = vpop.f32.mrb[0].mxu0
        %v663 = vadd.f32 0.0, %v662
        %664 = vdwg.mxu0
        %v665 = vadd.f32 %v533, %v657
        %v666 = vadd.f32 %v535, %v659
        %v667 = vadd.f32 %v537, %v661
        %v668 = vadd.f32 %v539, %v663
        %v669 = vld [vmem:[#allocation2] sm:$0x3f]
        %v670 = vld [vmem:[#allocation4] sm:$0x22]
        %v672 = vunpack.c.l.b16 %v670
        %v673 = vunpack.c.h.b16 %v670
        %v674 = vpack.c.b16 %v672, %v672
        %v675 = vpack.c.b16 %v673, %v673
        %v677 = vshrl.u32 %v674, 16
        %v678 = vpack.i.b16 %v677, %v677
        %v680 = vlaneseq
        %v681 = vshrl.u32 %v680, 7
        %v682 = vsub.s32 1, %v681
        %v683 = vrot.slane %v678, %v682
        %v685 = vshrl.u32 %v675, 16
        %v686 = vpack.i.b16 %v685, %v685
        %v688 = vlaneseq
        %v689 = vshrl.u32 %v688, 7
        %v690 = vsub.s32 1, %v689
        %v691 = vrot.slane %v686, %v690
        %v694 = vcombine.low %v683, %v691
        %v696 = vunpack.c.l.s4 1983009808
        %v697 = vunpack.c.0.s8 %v696
        %v698 = vlaneseq
        %v699 = vshrl.u32 %v698, 7
        %v700 = vsub.s32 %v697, %v699
        %v701 = vrot.slane %v694, %v700
        %702 = vrot.lane.b32.xlu0 %v701, 16
        %v703 = vpop.permute.xlu0 %702
        %v704 = vrot.slane %v703, 6
        %vm705 = vcmask 130048
        %v706 = vsel %vm705, %v704, %v703
        %v708 = vmul.bf16 %v669, %v706
        %s709 = scalar_lea.vmem %s2, 24
        %v710 = vld [vmem:[%s709] sm:$0xf]
        %v711 = vld [vmem:[%s709 + $0x4] sm:$0xf]
        %v714 = vunpack.c.l.b16 %v710
        %v715 = vunpack.c.l.b16 %v711
        %v716 = vpack.c.b16 %v715, %v714
        %v718 = vcombine.high %v708, %v708
        %v720 = vunpack.c.l.s4 1983009808
        %v721 = vunpack.c.0.s8 %v720
        %v722 = vlaneseq
        %v723 = vshrl.u32 %v722, 7
        %v724 = vsub.s32 %v721, %v723
        %v725 = vrot.slane %v708, %v724
        %v727 = vunpack.c.l.s4 1983009808
        %v728 = vunpack.c.0.s8 %v727
        %v729 = vlaneseq
        %v730 = vshrl.u32 %v729, 7
        %v731 = vsub.s32 %v728, %v730
        %v732 = vrot.slane %v718, %v731
        %v733 = vcombine.high %v725, %v725
        %734 = vrot.lane.b32.xlu0 %v725, 112
        %v735 = vpop.permute.xlu0 %734
        %736 = vrot.lane.b32.xlu0 %v733, 112
        %v737 = vpop.permute.xlu0 %736
        %738 = vrot.lane.b32.xlu0 %v732, 112
        %v739 = vpop.permute.xlu0 %738
        %vm740 = vcmask 916480
        %v741 = vsel %vm740, %v735, %v737
        %v742 = vsel %vm740, %v737, %v739
        %v744 = vsel %vm418, %v716, 0
        %v747 = vand.u32 %v741, %v425
        %v750 = vand.u32 %v742, %v425
        %752 = vmatprep.subr.bf16.mxu0 %v750
        %753 = vmatpush1.bf16.msra.mxu0 %v747
        %754 = vmatprep.subr.bf16.mxu0 0
        %755 = vmatpush1.bf16.msra.mxu0 0
        %756 = vmatprep.subr.bf16.mxu0 0
        %757 = vmatpush1.bf16.msra.mxu0 0
        %758 = vmatprep.subr.bf16.mxu0 0
        %759 = vmatpush1.bf16.msra.mxu0 0
        %760 = vmatprep.subr.bf16.mxu0 0
        %761 = vmatpush1.bf16.msra.mxu0 0
        %762 = vmatprep.subr.bf16.mxu0 0
        %763 = vmatpush1.bf16.msra.mxu0 0
        %764 = vmatprep.subr.bf16.mxu0 0
        %765 = vmatpush1.bf16.msra.mxu0 0
        %766 = vmatprep.subr.bf16.mxu0 0
        %767 = vmatpush1.bf16.msra.mxu0 0
        %768 = vmatprep.subr.bf16.mxu0 0
        %769 = vmatpush1.bf16.msra.mxu0 0
        %770 = vmatprep.subr.bf16.mxu0 0
        %771 = vmatpush1.bf16.msra.mxu0 0
        %772 = vmatprep.subr.bf16.mxu0 0
        %773 = vmatpush1.bf16.msra.mxu0 0
        %774 = vmatprep.subr.bf16.mxu0 0
        %775 = vmatpush1.bf16.msra.mxu0 0
        %776 = vmatprep.subr.bf16.mxu0 0
        %777 = vmatpush1.bf16.msra.mxu0 0
        %778 = vmatprep.subr.bf16.mxu0 0
        %779 = vmatpush1.bf16.msra.mxu0 0
        %780 = vmatprep.subr.bf16.mxu0 0
        %781 = vmatpush1.bf16.msra.mxu0 0
        %782 = vmatprep.subr.bf16.mxu0 0
        %783 = vmatpush1.bf16.msra.mxu0 0
        %784 = vmatprep.mubr.bf16.mxu0 0
        %785 = vmatmul.mubr.bf16.gmra.mrb[0].mxu0 %v744
        %v786 = vpop.f32.mrb[0].mxu0
        %v787 = vadd.f32 0.0, %v786
        %v788 = vpop.f32.mrb[0].mxu0
        %v789 = vadd.f32 0.0, %v788
        %v790 = vpop.f32.mrb[0].mxu0
        %v791 = vadd.f32 0.0, %v790
        %v792 = vpop.f32.mrb[0].mxu0
        %v793 = vadd.f32 0.0, %v792
        %794 = vdwg.mxu0
        %v795 = vadd.f32 %v665, %v787
        %v796 = vadd.f32 %v666, %v789
        %v797 = vadd.f32 %v667, %v791
        %v798 = vadd.f32 %v668, %v793
        %v799 = vld [vmem:[#allocation2] sm:$0x3f]
        %v800 = vld [vmem:[#allocation4] sm:$0x44]
        %v802 = vunpack.c.l.b16 %v800
        %v803 = vunpack.c.h.b16 %v800
        %v804 = vpack.c.b16 %v802, %v802
        %v805 = vpack.c.b16 %v803, %v803
        %v807 = vpack.i.b16 %v804, %v804
        %v809 = vlaneseq
        %v810 = vshrl.u32 %v809, 7
        %v811 = vsub.s32 2, %v810
        %v812 = vrot.slane %v807, %v811
        %v814 = vpack.i.b16 %v805, %v805
        %v816 = vlaneseq
        %v817 = vshrl.u32 %v816, 7
        %v818 = vsub.s32 2, %v817
        %v819 = vrot.slane %v814, %v818
        %v822 = vcombine.low %v812, %v819
        %v824 = vunpack.c.l.s4 1983009808
        %v825 = vunpack.c.0.s8 %v824
        %v826 = vlaneseq
        %v827 = vshrl.u32 %v826, 7
        %v828 = vsub.s32 %v825, %v827
        %v829 = vrot.slane %v822, %v828
        %830 = vrot.lane.b32.xlu0 %v829, 17
        %v831 = vpop.permute.xlu0 %830
        %v832 = vrot.slane %v831, 6
        %v833 = vsel %vm305, %v832, %v831
        %v835 = vmul.bf16 %v799, %v833
        %s836 = scalar_lea.vmem %s2, 32
        %v837 = vld [vmem:[%s836] sm:$0xf]
        %v838 = vld [vmem:[%s836 + $0x4] sm:$0xf]
        %v841 = vunpack.c.l.b16 %v837
        %v842 = vunpack.c.l.b16 %v838
        %v843 = vpack.c.b16 %v842, %v841
        %v845 = vcombine.high %v835, %v835
        %v847 = vunpack.c.l.s4 1983009808
        %v848 = vunpack.c.0.s8 %v847
        %v849 = vlaneseq
        %v850 = vshrl.u32 %v849, 7
        %v851 = vsub.s32 %v848, %v850
        %v852 = vrot.slane %v835, %v851
        %v854 = vunpack.c.l.s4 1983009808
        %v855 = vunpack.c.0.s8 %v854
        %v856 = vlaneseq
        %v857 = vshrl.u32 %v856, 7
        %v858 = vsub.s32 %v855, %v857
        %v859 = vrot.slane %v845, %v858
        %v860 = vcombine.high %v852, %v852
        %861 = vrot.lane.b32.xlu0 %v852, 111
        %v862 = vpop.permute.xlu0 %861
        %863 = vrot.lane.b32.xlu0 %v860, 111
        %v864 = vpop.permute.xlu0 %863
        %865 = vrot.lane.b32.xlu0 %v859, 111
        %v866 = vpop.permute.xlu0 %865
        %vm867 = vcmask 908288
        %v868 = vsel %vm867, %v862, %v864
        %v869 = vsel %vm867, %v864, %v866
        %v871 = vsel %vm418, %v843, 0
        %v874 = vand.u32 %v868, %v425
        %v877 = vand.u32 %v869, %v425
        %879 = vmatprep.subr.bf16.mxu0 %v877
        %880 = vmatpush1.bf16.msra.mxu0 %v874
        %881 = vmatprep.subr.bf16.mxu0 0
        %882 = vmatpush1.bf16.msra.mxu0 0
        %883 = vmatprep.subr.bf16.mxu0 0
        %884 = vmatpush1.bf16.msra.mxu0 0
        %885 = vmatprep.subr.bf16.mxu0 0
        %886 = vmatpush1.bf16.msra.mxu0 0
        %887 = vmatprep.subr.bf16.mxu0 0
        %888 = vmatpush1.bf16.msra.mxu0 0
        %889 = vmatprep.subr.bf16.mxu0 0
        %890 = vmatpush1.bf16.msra.mxu0 0
        %891 = vmatprep.subr.bf16.mxu0 0
        %892 = vmatpush1.bf16.msra.mxu0 0
        %893 = vmatprep.subr.bf16.mxu0 0
        %894 = vmatpush1.bf16.msra.mxu0 0
        %895 = vmatprep.subr.bf16.mxu0 0
        %896 = vmatpush1.bf16.msra.mxu0 0
        %897 = vmatprep.subr.bf16.mxu0 0
        %898 = vmatpush1.bf16.msra.mxu0 0
        %899 = vmatprep.subr.bf16.mxu0 0
        %900 = vmatpush1.bf16.msra.mxu0 0
        %901 = vmatprep.subr.bf16.mxu0 0
        %902 = vmatpush1.bf16.msra.mxu0 0
        %903 = vmatprep.subr.bf16.mxu0 0
        %904 = vmatpush1.bf16.msra.mxu0 0
        %905 = vmatprep.subr.bf16.mxu0 0
        %906 = vmatpush1.bf16.msra.mxu0 0
        %907 = vmatprep.subr.bf16.mxu0 0
        %908 = vmatpush1.bf16.msra.mxu0 0
        %909 = vmatprep.subr.bf16.mxu0 0
        %910 = vmatpush1.bf16.msra.mxu0 0
        %911 = vmatprep.mubr.bf16.mxu0 0
        %912 = vmatmul.mubr.bf16.gmra.mrb[0].mxu0 %v871
        %v913 = vpop.f32.mrb[0].mxu0
        %v914 = vadd.f32 0.0, %v913
        %v915 = vpop.f32.mrb[0].mxu0
        %v916 = vadd.f32 0.0, %v915
        %v917 = vpop.f32.mrb[0].mxu0
        %v918 = vadd.f32 0.0, %v917
        %v919 = vpop.f32.mrb[0].mxu0
        %v920 = vadd.f32 0.0, %v919
        %921 = vdwg.mxu0
        %v922 = vadd.f32 %v795, %v914
        %v923 = vadd.f32 %v796, %v916
        %v924 = vadd.f32 %v797, %v918
        %v925 = vadd.f32 %v798, %v920
        %v926 = vld [vmem:[#allocation2] sm:$0x3f]
        %v927 = vld [vmem:[#allocation4] sm:$0x44]
        %v929 = vunpack.c.l.b16 %v927
        %v930 = vunpack.c.h.b16 %v927
        %v931 = vpack.c.b16 %v929, %v929
        %v932 = vpack.c.b16 %v930, %v930
        %v934 = vshrl.u32 %v931, 16
        %v935 = vpack.i.b16 %v934, %v934
        %v937 = vlaneseq
        %v938 = vshrl.u32 %v937, 7
        %v939 = vsub.s32 2, %v938
        %v940 = vrot.slane %v935, %v939
        %v942 = vshrl.u32 %v932, 16
        %v943 = vpack.i.b16 %v942, %v942
        %v945 = vlaneseq
        %v946 = vshrl.u32 %v945, 7
        %v947 = vsub.s32 2, %v946
        %v948 = vrot.slane %v943, %v947
        %v951 = vcombine.low %v940, %v948
        %v953 = vunpack.c.l.s4 1983009808
        %v954 = vunpack.c.0.s8 %v953
        %v955 = vlaneseq
        %v956 = vshrl.u32 %v955, 7
        %v957 = vsub.s32 %v954, %v956
        %v958 = vrot.slane %v951, %v957
        %959 = vrot.lane.b32.xlu0 %v958, 18
        %v960 = vpop.permute.xlu0 %959
        %v961 = vrot.slane %v960, 6
        %vm962 = vcmask 146432
        %v963 = vsel %vm962, %v961, %v960
        %v965 = vmul.bf16 %v926, %v963
        %s966 = scalar_lea.vmem %s2, 40
        %v967 = vld [vmem:[%s966] sm:$0xf]
        %v968 = vld [vmem:[%s966 + $0x4] sm:$0xf]
        %v971 = vunpack.c.l.b16 %v967
        %v972 = vunpack.c.l.b16 %v968
        %v973 = vpack.c.b16 %v972, %v971
        %v975 = vcombine.high %v965, %v965
        %v977 = vunpack.c.l.s4 1983009808
        %v978 = vunpack.c.0.s8 %v977
        %v979 = vlaneseq
        %v980 = vshrl.u32 %v979, 7
        %v981 = vsub.s32 %v978, %v980
        %v982 = vrot.slane %v965, %v981
        %v984 = vunpack.c.l.s4 1983009808
        %v985 = vunpack.c.0.s8 %v984
        %v986 = vlaneseq
        %v987 = vshrl.u32 %v986, 7
        %v988 = vsub.s32 %v985, %v987
        %v989 = vrot.slane %v975, %v988
        %v990 = vcombine.high %v982, %v982
        %991 = vrot.lane.b32.xlu0 %v982, 110
        %v992 = vpop.permute.xlu0 %991
        %993 = vrot.lane.b32.xlu0 %v990, 110
        %v994 = vpop.permute.xlu0 %993
        %995 = vrot.lane.b32.xlu0 %v989, 110
        %v996 = vpop.permute.xlu0 %995
        %vm997 = vcmask 900096
        %v998 = vsel %vm997, %v992, %v994
        %v999 = vsel %vm997, %v994, %v996
        %v1001 = vsel %vm418, %v973, 0
        %v1004 = vand.u32 %v998, %v425
        %v1007 = vand.u32 %v999, %v425
        %1009 = vmatprep.subr.bf16.mxu0 %v1007
        %1010 = vmatpush1.bf16.msra.mxu0 %v1004
        %1011 = vmatprep.subr.bf16.mxu0 0
        %1012 = vmatpush1.bf16.msra.mxu0 0
        %1013 = vmatprep.subr.bf16.mxu0 0
        %1014 = vmatpush1.bf16.msra.mxu0 0
        %1015 = vmatprep.subr.bf16.mxu0 0
        %1016 = vmatpush1.bf16.msra.mxu0 0
        %1017 = vmatprep.subr.bf16.mxu0 0
        %1018 = vmatpush1.bf16.msra.mxu0 0
        %1019 = vmatprep.subr.bf16.mxu0 0
        %1020 = vmatpush1.bf16.msra.mxu0 0
        %1021 = vmatprep.subr.bf16.mxu0 0
        %1022 = vmatpush1.bf16.msra.mxu0 0
        %1023 = vmatprep.subr.bf16.mxu0 0
        %1024 = vmatpush1.bf16.msra.mxu0 0
        %1025 = vmatprep.subr.bf16.mxu0 0
        %1026 = vmatpush1.bf16.msra.mxu0 0
        %1027 = vmatprep.subr.bf16.mxu0 0
        %1028 = vmatpush1.bf16.msra.mxu0 0
        %1029 = vmatprep.subr.bf16.mxu0 0
        %1030 = vmatpush1.bf16.msra.mxu0 0
        %1031 = vmatprep.subr.bf16.mxu0 0
        %1032 = vmatpush1.bf16.msra.mxu0 0
        %1033 = vmatprep.subr.bf16.mxu0 0
        %1034 = vmatpush1.bf16.msra.mxu0 0
        %1035 = vmatprep.subr.bf16.mxu0 0
        %1036 = vmatpush1.bf16.msra.mxu0 0
        %1037 = vmatprep.subr.bf16.mxu0 0
        %1038 = vmatpush1.bf16.msra.mxu0 0
        %1039 = vmatprep.subr.bf16.mxu0 0
        %1040 = vmatpush1.bf16.msra.mxu0 0
        %1041 = vmatprep.mubr.bf16.mxu0 0
        %1042 = vmatmul.mubr.bf16.gmra.mrb[0].mxu0 %v1001
        %v1043 = vpop.f32.mrb[0].mxu0
        %v1044 = vadd.f32 0.0, %v1043
        %v1045 = vpop.f32.mrb[0].mxu0
        %v1046 = vadd.f32 0.0, %v1045
        %v1047 = vpop.f32.mrb[0].mxu0
        %v1048 = vadd.f32 0.0, %v1047
        %v1049 = vpop.f32.mrb[0].mxu0
        %v1050 = vadd.f32 0.0, %v1049
        %1051 = vdwg.mxu0
        %v1052 = vadd.f32 %v922, %v1044
        %v1053 = vadd.f32 %v923, %v1046
        %v1054 = vadd.f32 %v924, %v1048
        %v1055 = vadd.f32 %v925, %v1050
        %v1056 = vld [vmem:[#allocation2] sm:$0x3f]
        %v1057 = vld [vmem:[#allocation4] sm:$0x88]
        %v1059 = vunpack.c.l.b16 %v1057
        %v1060 = vunpack.c.h.b16 %v1057
        %v1061 = vpack.c.b16 %v1059, %v1059
        %v1062 = vpack.c.b16 %v1060, %v1060
        %v1064 = vpack.i.b16 %v1061, %v1061
        %v1066 = vlaneseq
        %v1067 = vshrl.u32 %v1066, 7
        %v1068 = vsub.s32 3, %v1067
        %v1069 = vrot.slane %v1064, %v1068
        %v1071 = vpack.i.b16 %v1062, %v1062
        %v1073 = vlaneseq
        %v1074 = vshrl.u32 %v1073, 7
        %v1075 = vsub.s32 3, %v1074
        %v1076 = vrot.slane %v1071, %v1075
        %v1079 = vcombine.low %v1069, %v1076
        %v1081 = vunpack.c.l.s4 1983009808
        %v1082 = vunpack.c.0.s8 %v1081
        %v1083 = vlaneseq
        %v1084 = vshrl.u32 %v1083, 7
        %v1085 = vsub.s32 %v1082, %v1084
        %v1086 = vrot.slane %v1079, %v1085
        %1087 = vrot.lane.b32.xlu0 %v1086, 32
        %v1088 = vpop.permute.xlu0 %1087
        %v1089 = vrot.slane %v1088, 6
        %vm1090 = vcmask 261120
        %v1091 = vsel %vm1090, %v1089, %v1088
        %v1093 = vmul.bf16 %v1056, %v1091
        %s1094 = scalar_lea.vmem %s2, 48
        %v1095 = vld [vmem:[%s1094] sm:$0xf]
        %v1096 = vld [vmem:[%s1094 + $0x4] sm:$0xf]
        %v1099 = vunpack.c.l.b16 %v1095
        %v1100 = vunpack.c.l.b16 %v1096
        %v1101 = vpack.c.b16 %v1100, %v1099
        %v1103 = vcombine.high %v1093, %v1093
        %v1105 = vunpack.c.l.s4 1983009808
        %v1106 = vunpack.c.0.s8 %v1105
        %v1107 = vlaneseq
        %v1108 = vshrl.u32 %v1107, 7
        %v1109 = vsub.s32 %v1106, %v1108
        %v1110 = vrot.slane %v1093, %v1109
        %v1112 = vunpack.c.l.s4 1983009808
        %v1113 = vunpack.c.0.s8 %v1112
        %v1114 = vlaneseq
        %v1115 = vshrl.u32 %v1114, 7
        %v1116 = vsub.s32 %v1113, %v1115
        %v1117 = vrot.slane %v1103, %v1116
        %v1118 = vcombine.high %v1110, %v1110
        %1119 = vrot.lane.b32.xlu0 %v1110, 96
        %v1120 = vpop.permute.xlu0 %1119
        %1121 = vrot.lane.b32.xlu0 %v1118, 96
        %v1122 = vpop.permute.xlu0 %1121
        %1123 = vrot.lane.b32.xlu0 %v1117, 96
        %v1124 = vpop.permute.xlu0 %1123
        %vm1125 = vcmask 785408
        %v1126 = vsel %vm1125, %v1120, %v1122
        %v1127 = vsel %vm1125, %v1122, %v1124
        %v1129 = vsel %vm418, %v1101, 0
        %v1132 = vand.u32 %v1126, %v425
        %v1135 = vand.u32 %v1127, %v425
        %1137 = vmatprep.subr.bf16.mxu0 %v1135
        %1138 = vmatpush1.bf16.msra.mxu0 %v1132
        %1139 = vmatprep.subr.bf16.mxu0 0
        %1140 = vmatpush1.bf16.msra.mxu0 0
        %1141 = vmatprep.subr.bf16.mxu0 0
        %1142 = vmatpush1.bf16.msra.mxu0 0
        %1143 = vmatprep.subr.bf16.mxu0 0
        %1144 = vmatpush1.bf16.msra.mxu0 0
        %1145 = vmatprep.subr.bf16.mxu0 0
        %1146 = vmatpush1.bf16.msra.mxu0 0
        %1147 = vmatprep.subr.bf16.mxu0 0
        %1148 = vmatpush1.bf16.msra.mxu0 0
        %1149 = vmatprep.subr.bf16.mxu0 0
        %1150 = vmatpush1.bf16.msra.mxu0 0
        %1151 = vmatprep.subr.bf16.mxu0 0
        %1152 = vmatpush1.bf16.msra.mxu0 0
        %1153 = vmatprep.subr.bf16.mxu0 0
        %1154 = vmatpush1.bf16.msra.mxu0 0
        %1155 = vmatprep.subr.bf16.mxu0 0
        %1156 = vmatpush1.bf16.msra.mxu0 0
        %1157 = vmatprep.subr.bf16.mxu0 0
        %1158 = vmatpush1.bf16.msra.mxu0 0
        %1159 = vmatprep.subr.bf16.mxu0 0
        %1160 = vmatpush1.bf16.msra.mxu0 0
        %1161 = vmatprep.subr.bf16.mxu0 0
        %1162 = vmatpush1.bf16.msra.mxu0 0
        %1163 = vmatprep.subr.bf16.mxu0 0
        %1164 = vmatpush1.bf16.msra.mxu0 0
        %1165 = vmatprep.subr.bf16.mxu0 0
        %1166 = vmatpush1.bf16.msra.mxu0 0
        %1167 = vmatprep.subr.bf16.mxu0 0
        %1168 = vmatpush1.bf16.msra.mxu0 0
        %1169 = vmatprep.mubr.bf16.mxu0 0
        %1170 = vmatmul.mubr.bf16.gmra.mrb[0].mxu0 %v1129
        %v1171 = vpop.f32.mrb[0].mxu0
        %v1172 = vadd.f32 0.0, %v1171
        %v1173 = vpop.f32.mrb[0].mxu0
        %v1174 = vadd.f32 0.0, %v1173
        %v1175 = vpop.f32.mrb[0].mxu0
        %v1176 = vadd.f32 0.0, %v1175
        %v1177 = vpop.f32.mrb[0].mxu0
        %v1178 = vadd.f32 0.0, %v1177
        %1179 = vdwg.mxu0
        %v1180 = vadd.f32 %v1052, %v1172
        %v1181 = vadd.f32 %v1053, %v1174
        %v1182 = vadd.f32 %v1054, %v1176
        %v1183 = vadd.f32 %v1055, %v1178
        %v1184 = vld [vmem:[#allocation2] sm:$0x3f]
        %v1185 = vld [vmem:[#allocation4] sm:$0x88]
        %v1187 = vunpack.c.l.b16 %v1185
        %v1188 = vunpack.c.h.b16 %v1185
        %v1189 = vpack.c.b16 %v1187, %v1187
        %v1190 = vpack.c.b16 %v1188, %v1188
        %v1192 = vshrl.u32 %v1189, 16
        %v1193 = vpack.i.b16 %v1192, %v1192
        %v1195 = vlaneseq
        %v1196 = vshrl.u32 %v1195, 7
        %v1197 = vsub.s32 3, %v1196
        %v1198 = vrot.slane %v1193, %v1197
        %v1200 = vshrl.u32 %v1190, 16
        %v1201 = vpack.i.b16 %v1200, %v1200
        %v1203 = vlaneseq
        %v1204 = vshrl.u32 %v1203, 7
        %v1205 = vsub.s32 3, %v1204
        %v1206 = vrot.slane %v1201, %v1205
        %v1209 = vcombine.low %v1198, %v1206
        %v1211 = vunpack.c.l.s4 1983009808
        %v1212 = vunpack.c.0.s8 %v1211
        %v1213 = vlaneseq
        %v1214 = vshrl.u32 %v1213, 7
        %v1215 = vsub.s32 %v1212, %v1214
        %v1216 = vrot.slane %v1209, %v1215
        %1217 = vrot.lane.b32.xlu0 %v1216, 33
        %v1218 = vpop.permute.xlu0 %1217
        %v1219 = vrot.slane %v1218, 6
        %vm1220 = vcmask 269312
        %v1221 = vsel %vm1220, %v1219, %v1218
        %v1223 = vmul.bf16 %v1184, %v1221
        %s1224 = scalar_lea.vmem %s2, 56
        %v1225 = vld [vmem:[%s1224] sm:$0xf]
        %v1226 = vld [vmem:[%s1224 + $0x4] sm:$0xf]
        %v1229 = vunpack.c.l.b16 %v1225
        %v1230 = vunpack.c.l.b16 %v1226
        %v1231 = vpack.c.b16 %v1230, %v1229
        %v1233 = vcombine.high %v1223, %v1223
        %v1235 = vunpack.c.l.s4 1983009808
        %v1236 = vunpack.c.0.s8 %v1235
        %v1237 = vlaneseq
        %v1238 = vshrl.u32 %v1237, 7
        %v1239 = vsub.s32 %v1236, %v1238
        %v1240 = vrot.slane %v1223, %v1239
        %v1242 = vunpack.c.l.s4 1983009808
        %v1243 = vunpack.c.0.s8 %v1242
        %v1244 = vlaneseq
        %v1245 = vshrl.u32 %v1244, 7
        %v1246 = vsub.s32 %v1243, %v1245
        %v1247 = vrot.slane %v1233, %v1246
        %v1248 = vcombine.high %v1240, %v1240
        %1249 = vrot.lane.b32.xlu0 %v1240, 95
        %v1250 = vpop.permute.xlu0 %1249
        %1251 = vrot.lane.b32.xlu0 %v1248, 95
        %v1252 = vpop.permute.xlu0 %1251
        %1253 = vrot.lane.b32.xlu0 %v1247, 95
        %v1254 = vpop.permute.xlu0 %1253
        %vm1255 = vcmask 777216
        %v1256 = vsel %vm1255, %v1250, %v1252
        %v1257 = vsel %vm1255, %v1252, %v1254
        %v1259 = vsel %vm418, %v1231, 0
        %v1262 = vand.u32 %v1256, %v425
        %v1265 = vand.u32 %v1257, %v425
        %1267 = vmatprep.subr.bf16.mxu0 %v1265
        %1268 = vmatpush1.bf16.msra.mxu0 %v1262
        %1269 = vmatprep.subr.bf16.mxu0 0
        %1270 = vmatpush1.bf16.msra.mxu0 0
        %1271 = vmatprep.subr.bf16.mxu0 0
        %1272 = vmatpush1.bf16.msra.mxu0 0
        %1273 = vmatprep.subr.bf16.mxu0 0
        %1274 = vmatpush1.bf16.msra.mxu0 0
        %1275 = vmatprep.subr.bf16.mxu0 0
        %1276 = vmatpush1.bf16.msra.mxu0 0
        %1277 = vmatprep.subr.bf16.mxu0 0
        %1278 = vmatpush1.bf16.msra.mxu0 0
        %1279 = vmatprep.subr.bf16.mxu0 0
        %1280 = vmatpush1.bf16.msra.mxu0 0
        %1281 = vmatprep.subr.bf16.mxu0 0
        %1282 = vmatpush1.bf16.msra.mxu0 0
        %1283 = vmatprep.subr.bf16.mxu0 0
        %1284 = vmatpush1.bf16.msra.mxu0 0
        %1285 = vmatprep.subr.bf16.mxu0 0
        %1286 = vmatpush1.bf16.msra.mxu0 0
        %1287 = vmatprep.subr.bf16.mxu0 0
        %1288 = vmatpush1.bf16.msra.mxu0 0
        %1289 = vmatprep.subr.bf16.mxu0 0
        %1290 = vmatpush1.bf16.msra.mxu0 0
        %1291 = vmatprep.subr.bf16.mxu0 0
        %1292 = vmatpush1.bf16.msra.mxu0 0
        %1293 = vmatprep.subr.bf16.mxu0 0
        %1294 = vmatpush1.bf16.msra.mxu0 0
        %1295 = vmatprep.subr.bf16.mxu0 0
        %1296 = vmatpush1.bf16.msra.mxu0 0
        %1297 = vmatprep.subr.bf16.mxu0 0
        %1298 = vmatpush1.bf16.msra.mxu0 0
        %1299 = vmatprep.mubr.bf16.mxu0 0
        %1300 = vmatmul.mubr.bf16.gmra.mrb[0].mxu0 %v1259
        %v1301 = vpop.f32.mrb[0].mxu0
        %v1302 = vadd.f32 0.0, %v1301
        %v1303 = vpop.f32.mrb[0].mxu0
        %v1304 = vadd.f32 0.0, %v1303
        %v1305 = vpop.f32.mrb[0].mxu0
        %v1306 = vadd.f32 0.0, %v1305
        %v1307 = vpop.f32.mrb[0].mxu0
        %v1308 = vadd.f32 0.0, %v1307
        %1309 = vdwg.mxu0
        %v1310 = vadd.f32 %v1180, %v1302
        %v1311 = vadd.f32 %v1181, %v1304
        %v1312 = vadd.f32 %v1182, %v1306
        %v1313 = vadd.f32 %v1183, %v1308
        %v1314 = vld [vmem:[#allocation2] sm:$0x3f]
        %v1315 = vld [vmem:[#allocation4 + $0x8] sm:$0x11]
        %v1317 = vunpack.c.l.b16 %v1315
        %v1318 = vunpack.c.h.b16 %v1315
        %v1319 = vpack.c.b16 %v1317, %v1317
        %v1320 = vpack.c.b16 %v1318, %v1318
        %v1322 = vpack.i.b16 %v1319, %v1319
        %v1324 = vlaneseq
        %v1325 = vshrl.u32 %v1324, 7
        %v1326 = vsub.s32 0, %v1325
        %v1327 = vrot.slane %v1322, %v1326
        %v1329 = vpack.i.b16 %v1320, %v1320
        %v1331 = vlaneseq
        %v1332 = vshrl.u32 %v1331, 7
        %v1333 = vsub.s32 0, %v1332
        %v1334 = vrot.slane %v1329, %v1333
        %v1337 = vcombine.low %v1327, %v1334
        %v1339 = vunpack.c.l.s4 1983009808
        %v1340 = vunpack.c.0.s8 %v1339
        %v1341 = vlaneseq
        %v1342 = vshrl.u32 %v1341, 7
        %v1343 = vsub.s32 %v1340, %v1342
        %v1344 = vrot.slane %v1337, %v1343
        %1345 = vrot.lane.b32.xlu0 %v1344, 34
        %v1346 = vpop.permute.xlu0 %1345
        %v1347 = vrot.slane %v1346, 6
        %vm1348 = vcmask 277504
        %v1349 = vsel %vm1348, %v1347, %v1346
        %v1351 = vmul.bf16 %v1314, %v1349
        %s1352 = scalar_lea.vmem %s2, 64
        %v1353 = vld [vmem:[%s1352] sm:$0xf]
        %v1354 = vld [vmem:[%s1352 + $0x4] sm:$0xf]
        %v1357 = vunpack.c.l.b16 %v1353
        %v1358 = vunpack.c.l.b16 %v1354
        %v1359 = vpack.c.b16 %v1358, %v1357
        %v1361 = vcombine.high %v1351, %v1351
        %v1363 = vunpack.c.l.s4 1983009808
        %v1364 = vunpack.c.0.s8 %v1363
        %v1365 = vlaneseq
        %v1366 = vshrl.u32 %v1365, 7
        %v1367 = vsub.s32 %v1364, %v1366
        %v1368 = vrot.slane %v1351, %v1367
        %v1370 = vunpack.c.l.s4 1983009808
        %v1371 = vunpack.c.0.s8 %v1370
        %v1372 = vlaneseq
        %v1373 = vshrl.u32 %v1372, 7
        %v1374 = vsub.s32 %v1371, %v1373
        %v1375 = vrot.slane %v1361, %v1374
        %v1376 = vcombine.high %v1368, %v1368
        %1377 = vrot.lane.b32.xlu0 %v1368, 94
        %v1378 = vpop.permute.xlu0 %1377
        %1379 = vrot.lane.b32.xlu0 %v1376, 94
        %v1380 = vpop.permute.xlu0 %1379
        %1381 = vrot.lane.b32.xlu0 %v1375, 94
        %v1382 = vpop.permute.xlu0 %1381
        %vm1383 = vcmask 769024
        %v1384 = vsel %vm1383, %v1378, %v1380
        %v1385 = vsel %vm1383, %v1380, %v1382
        %v1387 = vsel %vm418, %v1359, 0
        %v1390 = vand.u32 %v1384, %v425
        %v1393 = vand.u32 %v1385, %v425
        %1395 = vmatprep.subr.bf16.mxu0 %v1393
        %1396 = vmatpush1.bf16.msra.mxu0 %v1390
        %1397 = vmatprep.subr.bf16.mxu0 0
        %1398 = vmatpush1.bf16.msra.mxu0 0
        %1399 = vmatprep.subr.bf16.mxu0 0
        %1400 = vmatpush1.bf16.msra.mxu0 0
        %1401 = vmatprep.subr.bf16.mxu0 0
        %1402 = vmatpush1.bf16.msra.mxu0 0
        %1403 = vmatprep.subr.bf16.mxu0 0
        %1404 = vmatpush1.bf16.msra.mxu0 0
        %1405 = vmatprep.subr.bf16.mxu0 0
        %1406 = vmatpush1.bf16.msra.mxu0 0
        %1407 = vmatprep.subr.bf16.mxu0 0
        %1408 = vmatpush1.bf16.msra.mxu0 0
        %1409 = vmatprep.subr.bf16.mxu0 0
        %1410 = vmatpush1.bf16.msra.mxu0 0
        %1411 = vmatprep.subr.bf16.mxu0 0
        %1412 = vmatpush1.bf16.msra.mxu0 0
        %1413 = vmatprep.subr.bf16.mxu0 0
        %1414 = vmatpush1.bf16.msra.mxu0 0
        %1415 = vmatprep.subr.bf16.mxu0 0
        %1416 = vmatpush1.bf16.msra.mxu0 0
        %1417 = vmatprep.subr.bf16.mxu0 0
        %1418 = vmatpush1.bf16.msra.mxu0 0
        %1419 = vmatprep.subr.bf16.mxu0 0
        %1420 = vmatpush1.bf16.msra.mxu0 0
        %1421 = vmatprep.subr.bf16.mxu0 0
        %1422 = vmatpush1.bf16.msra.mxu0 0
        %1423 = vmatprep.subr.bf16.mxu0 0
        %1424 = vmatpush1.bf16.msra.mxu0 0
        %1425 = vmatprep.subr.bf16.mxu0 0
        %1426 = vmatpush1.bf16.msra.mxu0 0
        %1427 = vmatprep.mubr.bf16.mxu0 0
        %1428 = vmatmul.mubr.bf16.gmra.mrb[0].mxu0 %v1387
        %v1429 = vpop.f32.mrb[0].mxu0
        %v1430 = vadd.f32 0.0, %v1429
        %v1431 = vpop.f32.mrb[0].mxu0
        %v1432 = vadd.f32 0.0, %v1431
        %v1433 = vpop.f32.mrb[0].mxu0
        %v1434 = vadd.f32 0.0, %v1433
        %v1435 = vpop.f32.mrb[0].mxu0
        %v1436 = vadd.f32 0.0, %v1435
        %1437 = vdwg.mxu0
        %v1438 = vadd.f32 %v1310, %v1430
        %v1439 = vadd.f32 %v1311, %v1432
        %v1440 = vadd.f32 %v1312, %v1434
        %v1441 = vadd.f32 %v1313, %v1436
        %v1442 = vld [vmem:[%s3] sm:$0xff]
        %v1443 = vld [vmem:[%s3 + $0x8] sm:$0xff]
        %1445 = vset.pattern.permute.xlu0 0
        %1446 = vperm.xlu0 %1445, %v1442
        %v1447 = vpop.permute.xlu0 %1446
        %1450 = vset.pattern.permute.xlu0 0
        %1451 = vperm.xlu0 %1450, %v1443
        %v1452 = vpop.permute.xlu0 %1451
        %v1454 = vadd.f32 %v1438, %v1447
        %v1455 = vadd.f32 %v1439, %v1447
        %v1456 = vadd.f32 %v1440, %v1452
        %v1457 = vadd.f32 %v1441, %v1452
        %v1458 = vmax.f32 %v1454, 0.0
        %v1459 = vmax.f32 %v1455, 0.0
        %v1460 = vmax.f32 %v1456, 0.0
        %v1461 = vmax.f32 %v1457, 0.0
        %v1462 = vpack.c.bf16 %v1460, %v1458
        %v1463 = vpack.c.bf16 %v1461, %v1459
        %1466 = vrot.lane.b32.xlu0 %v1462, 17
        %v1467 = vpop.permute.xlu0 %1466
        %1468 = vrot.lane.b32.xlu0 %v1463, 17
        %v1469 = vpop.permute.xlu0 %1468
        %v1470 = vsel %vm305, %v1467, %v1469
        %vm1474 = vcmask 1047688
        %1475 = vst.msk [vmem:[#allocation3] sm:$0xff] %vm1474, %v1467
        %1476 = vst [vmem:[#allocation3 + $0x8] sm:$0xff] %v1470
        %vm1477 = vcmask 138240
        %1478 = vst.msk [vmem:[#allocation3 + $0x10] sm:$0xff] %vm1477, %v1469
        %v1479 = vld [vmem:[#allocation3] sm:$0xff]
        %v1480 = vld [vmem:[#allocation3 + $0x8] sm:$0xff]
        %v1481 = vld [vmem:[#allocation4] sm:$0x11]
        %v1483 = vunpack.c.l.b16 %v1481
        %v1484 = vunpack.c.h.b16 %v1481
        %v1485 = vpack.c.b16 %v1483, %v1483
        %v1486 = vpack.c.b16 %v1484, %v1484
        %v1488 = vpack.i.b16 %v1485, %v1485
        %v1490 = vlaneseq
        %v1491 = vshrl.u32 %v1490, 7
        %v1492 = vsub.s32 0, %v1491
        %v1493 = vrot.slane %v1488, %v1492
        %v1495 = vpack.i.b16 %v1486, %v1486
        %v1497 = vlaneseq
        %v1498 = vshrl.u32 %v1497, 7
        %v1499 = vsub.s32 0, %v1498
        %v1500 = vrot.slane %v1495, %v1499
        %v1501 = vmul.bf16 %v1479, %v1493
        %v1502 = vmul.bf16 %v1480, %v1500
        %v1503 = vld [vmem:[%s4] sm:$0xf]
        %v1504 = vld [vmem:[%s4 + $0x4] sm:$0xf]
        %v1505 = vld [vmem:[%s4 + $0x8] sm:$0xf]
        %v1506 = vld [vmem:[%s4 + $0xc] sm:$0xf]
        %v1507 = vld [vmem:[#allocation3 + $0x10] sm:$0xff]
        %v1508 = vshrl.u32 %v1485, 16
        %v1509 = vpack.i.b16 %v1508, %v1508
        %v1511 = vlaneseq
        %v1512 = vshrl.u32 %v1511, 7
        %v1513 = vsub.s32 0, %v1512
        %v1514 = vrot.slane %v1509, %v1513
        %v1515 = vshrl.u32 %v1486, 16
        %v1516 = vpack.i.b16 %v1515, %v1515
        %v1518 = vlaneseq
        %v1519 = vshrl.u32 %v1518, 7
        %v1520 = vsub.s32 0, %v1519
        %v1521 = vrot.slane %v1516, %v1520
        %1524 = vrot.lane.b32.xlu0 %v1514, 1
        %v1525 = vpop.permute.xlu0 %1524
        %1526 = vrot.lane.b32.xlu0 %v1521, 1
        %v1527 = vpop.permute.xlu0 %1526
        %v1528 = vsel %vm380, %v1525, %v1527
        %v1532 = vmul.bf16 %v1479, %v1525
        %v1533 = vmul.bf16 %v1480, %v1528
        %v1534 = vmul.bf16 %v1507, %v1527
        %s1535 = scalar_lea.vmem %s4, 16
        %v1536 = vld [vmem:[%s1535] sm:$0xf]
        %v1537 = vld [vmem:[%s1535 + $0x4] sm:$0xf]
        %v1538 = vld [vmem:[%s1535 + $0x8] sm:$0xf]
        %v1539 = vld [vmem:[%s1535 + $0xc] sm:$0xf]
        %v1544 = vunpack.c.l.b16 %v1536
        %v1545 = vunpack.c.l.b16 %v1537
        %v1546 = vunpack.c.l.b16 %v1538
        %v1547 = vunpack.c.l.b16 %v1539
        %v1548 = vpack.c.b16 %v1545, %v1544
        %v1549 = vpack.c.b16 %v1547, %v1546
        %1553 = vrot.lane.b32.xlu0 %v1532, 127
        %v1554 = vpop.permute.xlu0 %1553
        %1555 = vrot.lane.b32.xlu0 %v1533, 127
        %v1556 = vpop.permute.xlu0 %1555
        %1557 = vrot.lane.b32.xlu0 %v1534, 127
        %v1558 = vpop.permute.xlu0 %1557
        %v1559 = vsel %vm415, %v1554, %v1556
        %v1560 = vsel %vm415, %v1556, %v1558
        %vm1563 = vcmask 130048
        %v1565 = vsel %vm1563, %v1548, 0
        %v1568 = vsel %vm1563, %v1549, 0
        %1570 = vmatprep.subr.bf16.mxu0 %v1560
        %1571 = vmatpush1.bf16.msra.mxu0 %v1559
        %1572 = vmatprep.subr.bf16.mxu0 0
        %1573 = vmatpush1.bf16.msra.mxu0 0
        %1574 = vmatprep.subr.bf16.mxu0 0
        %1575 = vmatpush1.bf16.msra.mxu0 0
        %1576 = vmatprep.subr.bf16.mxu0 0
        %1577 = vmatpush1.bf16.msra.mxu0 0
        %1578 = vmatprep.subr.bf16.mxu0 0
        %1579 = vmatpush1.bf16.msra.mxu0 0
        %1580 = vmatprep.subr.bf16.mxu0 0
        %1581 = vmatpush1.bf16.msra.mxu0 0
        %1582 = vmatprep.subr.bf16.mxu0 0
        %1583 = vmatpush1.bf16.msra.mxu0 0
        %1584 = vmatprep.subr.bf16.mxu0 0
        %1585 = vmatpush1.bf16.msra.mxu0 0
        %1586 = vmatprep.subr.bf16.mxu0 0
        %1587 = vmatpush1.bf16.msra.mxu0 0
        %1588 = vmatprep.subr.bf16.mxu0 0
        %1589 = vmatpush1.bf16.msra.mxu0 0
        %1590 = vmatprep.subr.bf16.mxu0 0
        %1591 = vmatpush1.bf16.msra.mxu0 0
        %1592 = vmatprep.subr.bf16.mxu0 0
        %1593 = vmatpush1.bf16.msra.mxu0 0
        %1594 = vmatprep.subr.bf16.mxu0 0
        %1595 = vmatpush1.bf16.msra.mxu0 0
        %1596 = vmatprep.subr.bf16.mxu0 0
        %1597 = vmatpush1.bf16.msra.mxu0 0
        %1598 = vmatprep.subr.bf16.mxu0 0
        %1599 = vmatpush1.bf16.msra.mxu0 0
        %1600 = vmatprep.subr.bf16.mxu0 0
        %1601 = vmatpush1.bf16.msra.mxu0 0
        %1602 = vmatprep.mubr.bf16.mxu0 0
        %1603 = vmatmul.mubr.bf16.gmra.mrb[0].mxu0 %v1565
        %v1604 = vpop.f32.mrb[0].mxu0
        %v1605 = vadd.f32 0.0, %v1604
        %v1606 = vpop.f32.mrb[0].mxu0
        %v1607 = vadd.f32 0.0, %v1606
        %v1608 = vpop.f32.mrb[0].mxu0
        %v1609 = vadd.f32 0.0, %v1608
        %v1610 = vpop.f32.mrb[0].mxu0
        %v1611 = vadd.f32 0.0, %v1610
        %1612 = vmatprep.mubr.bf16.mxu0 0
        %1613 = vmatmul.mubr.bf16.gmra.mrb[0].mxu0 %v1568
        %v1614 = vpop.f32.mrb[0].mxu0
        %v1615 = vadd.f32 0.0, %v1614
        %v1616 = vpop.f32.mrb[0].mxu0
        %v1617 = vadd.f32 0.0, %v1616
        %v1618 = vpop.f32.mrb[0].mxu0
        %v1619 = vadd.f32 0.0, %v1618
        %v1620 = vpop.f32.mrb[0].mxu0
        %v1621 = vadd.f32 0.0, %v1620
        %1622 = vdwg.mxu0
        %v1627 = vunpack.c.l.b16 %v1503
        %v1628 = vunpack.c.l.b16 %v1504
        %v1629 = vunpack.c.l.b16 %v1505
        %v1630 = vunpack.c.l.b16 %v1506
        %v1631 = vpack.c.b16 %v1628, %v1627
        %v1632 = vpack.c.b16 %v1630, %v1629
        %v1634 = vsel %vm1563, %v1631, 0
        %v1637 = vsel %vm1563, %v1632, 0
        %1639 = vmatprep.subr.bf16.mxu0 %v1502
        %1640 = vmatpush1.bf16.msra.mxu0 %v1501
        %1641 = vmatprep.subr.bf16.mxu0 0
        %1642 = vmatpush1.bf16.msra.mxu0 0
        %1643 = vmatprep.subr.bf16.mxu0 0
        %1644 = vmatpush1.bf16.msra.mxu0 0
        %1645 = vmatprep.subr.bf16.mxu0 0
        %1646 = vmatpush1.bf16.msra.mxu0 0
        %1647 = vmatprep.subr.bf16.mxu0 0
        %1648 = vmatpush1.bf16.msra.mxu0 0
        %1649 = vmatprep.subr.bf16.mxu0 0
        %1650 = vmatpush1.bf16.msra.mxu0 0
        %1651 = vmatprep.subr.bf16.mxu0 0
        %1652 = vmatpush1.bf16.msra.mxu0 0
        %1653 = vmatprep.subr.bf16.mxu0 0
        %1654 = vmatpush1.bf16.msra.mxu0 0
        %1655 = vmatprep.subr.bf16.mxu0 0
        %1656 = vmatpush1.bf16.msra.mxu0 0
        %1657 = vmatprep.subr.bf16.mxu0 0
        %1658 = vmatpush1.bf16.msra.mxu0 0
        %1659 = vmatprep.subr.bf16.mxu0 0
        %1660 = vmatpush1.bf16.msra.mxu0 0
        %1661 = vmatprep.subr.bf16.mxu0 0
        %1662 = vmatpush1.bf16.msra.mxu0 0
        %1663 = vmatprep.subr.bf16.mxu0 0
        %1664 = vmatpush1.bf16.msra.mxu0 0
        %1665 = vmatprep.subr.bf16.mxu0 0
        %1666 = vmatpush1.bf16.msra.mxu0 0
        %1667 = vmatprep.subr.bf16.mxu0 0
        %1668 = vmatpush1.bf16.msra.mxu0 0
        %1669 = vmatprep.subr.bf16.mxu0 0
        %1670 = vmatpush1.bf16.msra.mxu0 0
        %1671 = vmatprep.mubr.bf16.mxu0 0
        %1672 = vmatmul.mubr.bf16.gmra.mrb[0].mxu0 %v1634
        %v1673 = vpop.f32.mrb[0].mxu0
        %v1674 = vadd.f32 %v1605, %v1673
        %v1675 = vpop.f32.mrb[0].mxu0
        %v1676 = vadd.f32 %v1607, %v1675
        %v1677 = vpop.f32.mrb[0].mxu0
        %v1678 = vadd.f32 %v1609, %v1677
        %v1679 = vpop.f32.mrb[0].mxu0
        %v1680 = vadd.f32 %v1611, %v1679
        %1681 = vmatprep.mubr.bf16.mxu0 0
        %1682 = vmatmul.mubr.bf16.gmra.mrb[0].mxu0 %v1637
        %v1683 = vpop.f32.mrb[0].mxu0
        %v1684 = vadd.f32 %v1615, %v1683
        %v1685 = vpop.f32.mrb[0].mxu0
        %v1686 = vadd.f32 %v1617, %v1685
        %v1687 = vpop.f32.mrb[0].mxu0
        %v1688 = vadd.f32 %v1619, %v1687
        %v1689 = vpop.f32.mrb[0].mxu0
        %v1690 = vadd.f32 %v1621, %v1689
        %1691 = vdwg.mxu0
        %v1692 = vld [vmem:[#allocation4] sm:$0x22]
        %v1694 = vunpack.c.l.b16 %v1692
        %v1695 = vunpack.c.h.b16 %v1692
        %v1696 = vpack.c.b16 %v1694, %v1694
        %v1697 = vpack.c.b16 %v1695, %v1695
        %v1699 = vpack.i.b16 %v1696, %v1696
        %v1701 = vlaneseq
        %v1702 = vshrl.u32 %v1701, 7
        %v1703 = vsub.s32 1, %v1702
        %v1704 = vrot.slane %v1699, %v1703
        %v1706 = vpack.i.b16 %v1697, %v1697
        %v1708 = vlaneseq
        %v1709 = vshrl.u32 %v1708, 7
        %v1710 = vsub.s32 1, %v1709
        %v1711 = vrot.slane %v1706, %v1710
        %1714 = vrot.lane.b32.xlu0 %v1704, 2
        %v1715 = vpop.permute.xlu0 %1714
        %1716 = vrot.lane.b32.xlu0 %v1711, 2
        %v1717 = vpop.permute.xlu0 %1716
        %v1718 = vsel %vm575, %v1715, %v1717
        %v1722 = vmul.bf16 %v1479, %v1715
        %v1723 = vmul.bf16 %v1480, %v1718
        %v1724 = vmul.bf16 %v1507, %v1717
        %s1725 = scalar_lea.vmem %s4, 32
        %v1726 = vld [vmem:[%s1725] sm:$0xf]
        %v1727 = vld [vmem:[%s1725 + $0x4] sm:$0xf]
        %v1728 = vld [vmem:[%s1725 + $0x8] sm:$0xf]
        %v1729 = vld [vmem:[%s1725 + $0xc] sm:$0xf]
        %v1734 = vunpack.c.l.b16 %v1726
        %v1735 = vunpack.c.l.b16 %v1727
        %v1736 = vunpack.c.l.b16 %v1728
        %v1737 = vunpack.c.l.b16 %v1729
        %v1738 = vpack.c.b16 %v1735, %v1734
        %v1739 = vpack.c.b16 %v1737, %v1736
        %1743 = vrot.lane.b32.xlu0 %v1722, 126
        %v1744 = vpop.permute.xlu0 %1743
        %1745 = vrot.lane.b32.xlu0 %v1723, 126
        %v1746 = vpop.permute.xlu0 %1745
        %1747 = vrot.lane.b32.xlu0 %v1724, 126
        %v1748 = vpop.permute.xlu0 %1747
        %v1749 = vsel %vm610, %v1744, %v1746
        %v1750 = vsel %vm610, %v1746, %v1748
        %v1754 = vsel %vm1563, %v1738, 0
        %v1757 = vsel %vm1563, %v1739, 0
        %1759 = vmatprep.subr.bf16.mxu0 %v1750
        %1760 = vmatpush1.bf16.msra.mxu0 %v1749
        %1761 = vmatprep.subr.bf16.mxu0 0
        %1762 = vmatpush1.bf16.msra.mxu0 0
        %1763 = vmatprep.subr.bf16.mxu0 0
        %1764 = vmatpush1.bf16.msra.mxu0 0
        %1765 = vmatprep.subr.bf16.mxu0 0
        %1766 = vmatpush1.bf16.msra.mxu0 0
        %1767 = vmatprep.subr.bf16.mxu0 0
        %1768 = vmatpush1.bf16.msra.mxu0 0
        %1769 = vmatprep.subr.bf16.mxu0 0
        %1770 = vmatpush1.bf16.msra.mxu0 0
        %1771 = vmatprep.subr.bf16.mxu0 0
        %1772 = vmatpush1.bf16.msra.mxu0 0
        %1773 = vmatprep.subr.bf16.mxu0 0
        %1774 = vmatpush1.bf16.msra.mxu0 0
        %1775 = vmatprep.subr.bf16.mxu0 0
        %1776 = vmatpush1.bf16.msra.mxu0 0
        %1777 = vmatprep.subr.bf16.mxu0 0
        %1778 = vmatpush1.bf16.msra.mxu0 0
        %1779 = vmatprep.subr.bf16.mxu0 0
        %1780 = vmatpush1.bf16.msra.mxu0 0
        %1781 = vmatprep.subr.bf16.mxu0 0
        %1782 = vmatpush1.bf16.msra.mxu0 0
        %1783 = vmatprep.subr.bf16.mxu0 0
        %1784 = vmatpush1.bf16.msra.mxu0 0
        %1785 = vmatprep.subr.bf16.mxu0 0
        %1786 = vmatpush1.bf16.msra.mxu0 0
        %1787 = vmatprep.subr.bf16.mxu0 0
        %1788 = vmatpush1.bf16.msra.mxu0 0
        %1789 = vmatprep.subr.bf16.mxu0 0
        %1790 = vmatpush1.bf16.msra.mxu0 0
        %1791 = vmatprep.mubr.bf16.mxu0 0
        %1792 = vmatmul.mubr.bf16.gmra.mrb[0].mxu0 %v1754
        %v1793 = vpop.f32.mrb[0].mxu0
        %v1794 = vadd.f32 0.0, %v1793
        %v1795 = vpop.f32.mrb[0].mxu0
        %v1796 = vadd.f32 0.0, %v1795
        %v1797 = vpop.f32.mrb[0].mxu0
        %v1798 = vadd.f32 0.0, %v1797
        %v1799 = vpop.f32.mrb[0].mxu0
        %v1800 = vadd.f32 0.0, %v1799
        %1801 = vmatprep.mubr.bf16.mxu0 0
        %1802 = vmatmul.mubr.bf16.gmra.mrb[0].mxu0 %v1757
        %v1803 = vpop.f32.mrb[0].mxu0
        %v1804 = vadd.f32 0.0, %v1803
        %v1805 = vpop.f32.mrb[0].mxu0
        %v1806 = vadd.f32 0.0, %v1805
        %v1807 = vpop.f32.mrb[0].mxu0
        %v1808 = vadd.f32 0.0, %v1807
        %v1809 = vpop.f32.mrb[0].mxu0
        %v1810 = vadd.f32 0.0, %v1809
        %1811 = vdwg.mxu0
        %v1812 = vadd.f32 %v1674, %v1794
        %v1813 = vadd.f32 %v1676, %v1796
        %v1814 = vadd.f32 %v1678, %v1798
        %v1815 = vadd.f32 %v1680, %v1800
        %v1816 = vadd.f32 %v1684, %v1804
        %v1817 = vadd.f32 %v1686, %v1806
        %v1818 = vadd.f32 %v1688, %v1808
        %v1819 = vadd.f32 %v1690, %v1810
        %v1820 = vshrl.u32 %v1696, 16
        %v1821 = vpack.i.b16 %v1820, %v1820
        %v1823 = vlaneseq
        %v1824 = vshrl.u32 %v1823, 7
        %v1825 = vsub.s32 1, %v1824
        %v1826 = vrot.slane %v1821, %v1825
        %v1827 = vshrl.u32 %v1697, 16
        %v1828 = vpack.i.b16 %v1827, %v1827
        %v1830 = vlaneseq
        %v1831 = vshrl.u32 %v1830, 7
        %v1832 = vsub.s32 1, %v1831
        %v1833 = vrot.slane %v1828, %v1832
        %1836 = vrot.lane.b32.xlu0 %v1826, 16
        %v1837 = vpop.permute.xlu0 %1836
        %1838 = vrot.lane.b32.xlu0 %v1833, 16
        %v1839 = vpop.permute.xlu0 %1838
        %v1840 = vsel %vm705, %v1837, %v1839
        %v1844 = vmul.bf16 %v1479, %v1837
        %v1845 = vmul.bf16 %v1480, %v1840
        %v1846 = vmul.bf16 %v1507, %v1839
        %s1847 = scalar_lea.vmem %s4, 48
        %v1848 = vld [vmem:[%s1847] sm:$0xf]
        %v1849 = vld [vmem:[%s1847 + $0x4] sm:$0xf]
        %v1850 = vld [vmem:[%s1847 + $0x8] sm:$0xf]
        %v1851 = vld [vmem:[%s1847 + $0xc] sm:$0xf]
        %v1856 = vunpack.c.l.b16 %v1848
        %v1857 = vunpack.c.l.b16 %v1849
        %v1858 = vunpack.c.l.b16 %v1850
        %v1859 = vunpack.c.l.b16 %v1851
        %v1860 = vpack.c.b16 %v1857, %v1856
        %v1861 = vpack.c.b16 %v1859, %v1858
        %1865 = vrot.lane.b32.xlu0 %v1844, 112
        %v1866 = vpop.permute.xlu0 %1865
        %1867 = vrot.lane.b32.xlu0 %v1845, 112
        %v1868 = vpop.permute.xlu0 %1867
        %1869 = vrot.lane.b32.xlu0 %v1846, 112
        %v1870 = vpop.permute.xlu0 %1869
        %v1871 = vsel %vm740, %v1866, %v1868
        %v1872 = vsel %vm740, %v1868, %v1870
        %v1876 = vsel %vm1563, %v1860, 0
        %v1879 = vsel %vm1563, %v1861, 0
        %1881 = vmatprep.subr.bf16.mxu0 %v1872
        %1882 = vmatpush1.bf16.msra.mxu0 %v1871
        %1883 = vmatprep.subr.bf16.mxu0 0
        %1884 = vmatpush1.bf16.msra.mxu0 0
        %1885 = vmatprep.subr.bf16.mxu0 0
        %1886 = vmatpush1.bf16.msra.mxu0 0
        %1887 = vmatprep.subr.bf16.mxu0 0
        %1888 = vmatpush1.bf16.msra.mxu0 0
        %1889 = vmatprep.subr.bf16.mxu0 0
        %1890 = vmatpush1.bf16.msra.mxu0 0
        %1891 = vmatprep.subr.bf16.mxu0 0
        %1892 = vmatpush1.bf16.msra.mxu0 0
        %1893 = vmatprep.subr.bf16.mxu0 0
        %1894 = vmatpush1.bf16.msra.mxu0 0
        %1895 = vmatprep.subr.bf16.mxu0 0
        %1896 = vmatpush1.bf16.msra.mxu0 0
        %1897 = vmatprep.subr.bf16.mxu0 0
        %1898 = vmatpush1.bf16.msra.mxu0 0
        %1899 = vmatprep.subr.bf16.mxu0 0
        %1900 = vmatpush1.bf16.msra.mxu0 0
        %1901 = vmatprep.subr.bf16.mxu0 0
        %1902 = vmatpush1.bf16.msra.mxu0 0
        %1903 = vmatprep.subr.bf16.mxu0 0
        %1904 = vmatpush1.bf16.msra.mxu0 0
        %1905 = vmatprep.subr.bf16.mxu0 0
        %1906 = vmatpush1.bf16.msra.mxu0 0
        %1907 = vmatprep.subr.bf16.mxu0 0
        %1908 = vmatpush1.bf16.msra.mxu0 0
        %1909 = vmatprep.subr.bf16.mxu0 0
        %1910 = vmatpush1.bf16.msra.mxu0 0
        %1911 = vmatprep.subr.bf16.mxu0 0
        %1912 = vmatpush1.bf16.msra.mxu0 0
        %1913 = vmatprep.mubr.bf16.mxu0 0
        %1914 = vmatmul.mubr.bf16.gmra.mrb[0].mxu0 %v1876
        %v1915 = vpop.f32.mrb[0].mxu0
        %v1916 = vadd.f32 0.0, %v1915
        %v1917 = vpop.f32.mrb[0].mxu0
        %v1918 = vadd.f32 0.0, %v1917
        %v1919 = vpop.f32.mrb[0].mxu0
        %v1920 = vadd.f32 0.0, %v1919
        %v1921 = vpop.f32.mrb[0].mxu0
        %v1922 = vadd.f32 0.0, %v1921
        %1923 = vmatprep.mubr.bf16.mxu0 0
        %1924 = vmatmul.mubr.bf16.gmra.mrb[0].mxu0 %v1879
        %v1925 = vpop.f32.mrb[0].mxu0
        %v1926 = vadd.f32 0.0, %v1925
        %v1927 = vpop.f32.mrb[0].mxu0
        %v1928 = vadd.f32 0.0, %v1927
        %v1929 = vpop.f32.mrb[0].mxu0
        %v1930 = vadd.f32 0.0, %v1929
        %v1931 = vpop.f32.mrb[0].mxu0
        %v1932 = vadd.f32 0.0, %v1931
        %1933 = vdwg.mxu0
        %v1934 = vadd.f32 %v1812, %v1916
        %v1935 = vadd.f32 %v1813, %v1918
        %v1936 = vadd.f32 %v1814, %v1920
        %v1937 = vadd.f32 %v1815, %v1922
        %v1938 = vadd.f32 %v1816, %v1926
        %v1939 = vadd.f32 %v1817, %v1928
        %v1940 = vadd.f32 %v1818, %v1930
        %v1941 = vadd.f32 %v1819, %v1932
        %v1942 = vld [vmem:[#allocation4] sm:$0x44]
        %v1944 = vunpack.c.l.b16 %v1942
        %v1945 = vunpack.c.h.b16 %v1942
        %v1946 = vpack.c.b16 %v1944, %v1944
        %v1947 = vpack.c.b16 %v1945, %v1945
        %v1949 = vpack.i.b16 %v1946, %v1946
        %v1951 = vlaneseq
        %v1952 = vshrl.u32 %v1951, 7
        %v1953 = vsub.s32 2, %v1952
        %v1954 = vrot.slane %v1949, %v1953
        %v1956 = vpack.i.b16 %v1947, %v1947
        %v1958 = vlaneseq
        %v1959 = vshrl.u32 %v1958, 7
        %v1960 = vsub.s32 2, %v1959
        %v1961 = vrot.slane %v1956, %v1960
        %1964 = vrot.lane.b32.xlu0 %v1954, 17
        %v1965 = vpop.permute.xlu0 %1964
        %1966 = vrot.lane.b32.xlu0 %v1961, 17
        %v1967 = vpop.permute.xlu0 %1966
        %v1968 = vsel %vm305, %v1965, %v1967
        %v1972 = vmul.bf16 %v1479, %v1965
        %v1973 = vmul.bf16 %v1480, %v1968
        %v1974 = vmul.bf16 %v1507, %v1967
        %s1975 = scalar_lea.vmem %s4, 64
        %v1976 = vld [vmem:[%s1975] sm:$0xf]
        %v1977 = vld [vmem:[%s1975 + $0x4] sm:$0xf]
        %v1978 = vld [vmem:[%s1975 + $0x8] sm:$0xf]
        %v1979 = vld [vmem:[%s1975 + $0xc] sm:$0xf]
        %v1984 = vunpack.c.l.b16 %v1976
        %v1985 = vunpack.c.l.b16 %v1977
        %v1986 = vunpack.c.l.b16 %v1978
        %v1987 = vunpack.c.l.b16 %v1979
        %v1988 = vpack.c.b16 %v1985, %v1984
        %v1989 = vpack.c.b16 %v1987, %v1986
        %1993 = vrot.lane.b32.xlu0 %v1972, 111
        %v1994 = vpop.permute.xlu0 %1993
        %1995 = vrot.lane.b32.xlu0 %v1973, 111
        %v1996 = vpop.permute.xlu0 %1995
        %1997 = vrot.lane.b32.xlu0 %v1974, 111
        %v1998 = vpop.permute.xlu0 %1997
        %v1999 = vsel %vm867, %v1994, %v1996
        %v2000 = vsel %vm867, %v1996, %v1998
        %v2004 = vsel %vm1563, %v1988, 0
        %v2007 = vsel %vm1563, %v1989, 0
        %2009 = vmatprep.subr.bf16.mxu0 %v2000
        %2010 = vmatpush1.bf16.msra.mxu0 %v1999
        %2011 = vmatprep.subr.bf16.mxu0 0
        %2012 = vmatpush1.bf16.msra.mxu0 0
        %2013 = vmatprep.subr.bf16.mxu0 0
        %2014 = vmatpush1.bf16.msra.mxu0 0
        %2015 = vmatprep.subr.bf16.mxu0 0
        %2016 = vmatpush1.bf16.msra.mxu0 0
        %2017 = vmatprep.subr.bf16.mxu0 0
        %2018 = vmatpush1.bf16.msra.mxu0 0
        %2019 = vmatprep.subr.bf16.mxu0 0
        %2020 = vmatpush1.bf16.msra.mxu0 0
        %2021 = vmatprep.subr.bf16.mxu0 0
        %2022 = vmatpush1.bf16.msra.mxu0 0
        %2023 = vmatprep.subr.bf16.mxu0 0
        %2024 = vmatpush1.bf16.msra.mxu0 0
        %2025 = vmatprep.subr.bf16.mxu0 0
        %2026 = vmatpush1.bf16.msra.mxu0 0
        %2027 = vmatprep.subr.bf16.mxu0 0
        %2028 = vmatpush1.bf16.msra.mxu0 0
        %2029 = vmatprep.subr.bf16.mxu0 0
        %2030 = vmatpush1.bf16.msra.mxu0 0
        %2031 = vmatprep.subr.bf16.mxu0 0
        %2032 = vmatpush1.bf16.msra.mxu0 0
        %2033 = vmatprep.subr.bf16.mxu0 0
        %2034 = vmatpush1.bf16.msra.mxu0 0
        %2035 = vmatprep.subr.bf16.mxu0 0
        %2036 = vmatpush1.bf16.msra.mxu0 0
        %2037 = vmatprep.subr.bf16.mxu0 0
        %2038 = vmatpush1.bf16.msra.mxu0 0
        %2039 = vmatprep.subr.bf16.mxu0 0
        %2040 = vmatpush1.bf16.msra.mxu0 0
        %2041 = vmatprep.mubr.bf16.mxu0 0
        %2042 = vmatmul.mubr.bf16.gmra.mrb[0].mxu0 %v2004
        %v2043 = vpop.f32.mrb[0].mxu0
        %v2044 = vadd.f32 0.0, %v2043
        %v2045 = vpop.f32.mrb[0].mxu0
        %v2046 = vadd.f32 0.0, %v2045
        %v2047 = vpop.f32.mrb[0].mxu0
        %v2048 = vadd.f32 0.0, %v2047
        %v2049 = vpop.f32.mrb[0].mxu0
        %v2050 = vadd.f32 0.0, %v2049
        %2051 = vmatprep.mubr.bf16.mxu0 0
        %2052 = vmatmul.mubr.bf16.gmra.mrb[0].mxu0 %v2007
        %v2053 = vpop.f32.mrb[0].mxu0
        %v2054 = vadd.f32 0.0, %v2053
        %v2055 = vpop.f32.mrb[0].mxu0
        %v2056 = vadd.f32 0.0, %v2055
        %v2057 = vpop.f32.mrb[0].mxu0
        %v2058 = vadd.f32 0.0, %v2057
        %v2059 = vpop.f32.mrb[0].mxu0
        %v2060 = vadd.f32 0.0, %v2059
        %2061 = vdwg.mxu0
        %v2062 = vadd.f32 %v1934, %v2044
        %v2063 = vadd.f32 %v1935, %v2046
        %v2064 = vadd.f32 %v1936, %v2048
        %v2065 = vadd.f32 %v1937, %v2050
        %v2066 = vadd.f32 %v1938, %v2054
        %v2067 = vadd.f32 %v1939, %v2056
        %v2068 = vadd.f32 %v1940, %v2058
        %v2069 = vadd.f32 %v1941, %v2060
        %v2070 = vshrl.u32 %v1946, 16
        %v2071 = vpack.i.b16 %v2070, %v2070
        %v2073 = vlaneseq
        %v2074 = vshrl.u32 %v2073, 7
        %v2075 = vsub.s32 2, %v2074
        %v2076 = vrot.slane %v2071, %v2075
        %v2077 = vshrl.u32 %v1947, 16
        %v2078 = vpack.i.b16 %v2077, %v2077
        %v2080 = vlaneseq
        %v2081 = vshrl.u32 %v2080, 7
        %v2082 = vsub.s32 2, %v2081
        %v2083 = vrot.slane %v2078, %v2082
        %2086 = vrot.lane.b32.xlu0 %v2076, 18
        %v2087 = vpop.permute.xlu0 %2086
        %2088 = vrot.lane.b32.xlu0 %v2083, 18
        %v2089 = vpop.permute.xlu0 %2088
        %v2090 = vsel %vm962, %v2087, %v2089
        %v2094 = vmul.bf16 %v1479, %v2087
        %v2095 = vmul.bf16 %v1480, %v2090
        %v2096 = vmul.bf16 %v1507, %v2089
        %s2097 = scalar_lea.vmem %s4, 80
        %v2098 = vld [vmem:[%s2097] sm:$0xf]
        %v2099 = vld [vmem:[%s2097 + $0x4] sm:$0xf]
        %v2100 = vld [vmem:[%s2097 + $0x8] sm:$0xf]
        %v2101 = vld [vmem:[%s2097 + $0xc] sm:$0xf]
        %v2106 = vunpack.c.l.b16 %v2098
        %v2107 = vunpack.c.l.b16 %v2099
        %v2108 = vunpack.c.l.b16 %v2100
        %v2109 = vunpack.c.l.b16 %v2101
        %v2110 = vpack.c.b16 %v2107, %v2106
        %v2111 = vpack.c.b16 %v2109, %v2108
        %2115 = vrot.lane.b32.xlu0 %v2094, 110
        %v2116 = vpop.permute.xlu0 %2115
        %2117 = vrot.lane.b32.xlu0 %v2095, 110
        %v2118 = vpop.permute.xlu0 %2117
        %2119 = vrot.lane.b32.xlu0 %v2096, 110
        %v2120 = vpop.permute.xlu0 %2119
        %v2121 = vsel %vm997, %v2116, %v2118
        %v2122 = vsel %vm997, %v2118, %v2120
        %v2126 = vsel %vm1563, %v2110, 0
        %v2129 = vsel %vm1563, %v2111, 0
        %2131 = vmatprep.subr.bf16.mxu0 %v2122
        %2132 = vmatpush1.bf16.msra.mxu0 %v2121
        %2133 = vmatprep.subr.bf16.mxu0 0
        %2134 = vmatpush1.bf16.msra.mxu0 0
        %2135 = vmatprep.subr.bf16.mxu0 0
        %2136 = vmatpush1.bf16.msra.mxu0 0
        %2137 = vmatprep.subr.bf16.mxu0 0
        %2138 = vmatpush1.bf16.msra.mxu0 0
        %2139 = vmatprep.subr.bf16.mxu0 0
        %2140 = vmatpush1.bf16.msra.mxu0 0
        %2141 = vmatprep.subr.bf16.mxu0 0
        %2142 = vmatpush1.bf16.msra.mxu0 0
        %2143 = vmatprep.subr.bf16.mxu0 0
        %2144 = vmatpush1.bf16.msra.mxu0 0
        %2145 = vmatprep.subr.bf16.mxu0 0
        %2146 = vmatpush1.bf16.msra.mxu0 0
        %2147 = vmatprep.subr.bf16.mxu0 0
        %2148 = vmatpush1.bf16.msra.mxu0 0
        %2149 = vmatprep.subr.bf16.mxu0 0
        %2150 = vmatpush1.bf16.msra.mxu0 0
        %2151 = vmatprep.subr.bf16.mxu0 0
        %2152 = vmatpush1.bf16.msra.mxu0 0
        %2153 = vmatprep.subr.bf16.mxu0 0
        %2154 = vmatpush1.bf16.msra.mxu0 0
        %2155 = vmatprep.subr.bf16.mxu0 0
        %2156 = vmatpush1.bf16.msra.mxu0 0
        %2157 = vmatprep.subr.bf16.mxu0 0
        %2158 = vmatpush1.bf16.msra.mxu0 0
        %2159 = vmatprep.subr.bf16.mxu0 0
        %2160 = vmatpush1.bf16.msra.mxu0 0
        %2161 = vmatprep.subr.bf16.mxu0 0
        %2162 = vmatpush1.bf16.msra.mxu0 0
        %2163 = vmatprep.mubr.bf16.mxu0 0
        %2164 = vmatmul.mubr.bf16.gmra.mrb[0].mxu0 %v2126
        %v2165 = vpop.f32.mrb[0].mxu0
        %v2166 = vadd.f32 0.0, %v2165
        %v2167 = vpop.f32.mrb[0].mxu0
        %v2168 = vadd.f32 0.0, %v2167
        %v2169 = vpop.f32.mrb[0].mxu0
        %v2170 = vadd.f32 0.0, %v2169
        %v2171 = vpop.f32.mrb[0].mxu0
        %v2172 = vadd.f32 0.0, %v2171
        %2173 = vmatprep.mubr.bf16.mxu0 0
        %2174 = vmatmul.mubr.bf16.gmra.mrb[0].mxu0 %v2129
        %v2175 = vpop.f32.mrb[0].mxu0
        %v2176 = vadd.f32 0.0, %v2175
        %v2177 = vpop.f32.mrb[0].mxu0
        %v2178 = vadd.f32 0.0, %v2177
        %v2179 = vpop.f32.mrb[0].mxu0
        %v2180 = vadd.f32 0.0, %v2179
        %v2181 = vpop.f32.mrb[0].mxu0
        %v2182 = vadd.f32 0.0, %v2181
        %2183 = vdwg.mxu0
        %v2184 = vadd.f32 %v2062, %v2166
        %v2185 = vadd.f32 %v2063, %v2168
        %v2186 = vadd.f32 %v2064, %v2170
        %v2187 = vadd.f32 %v2065, %v2172
        %v2188 = vadd.f32 %v2066, %v2176
        %v2189 = vadd.f32 %v2067, %v2178
        %v2190 = vadd.f32 %v2068, %v2180
        %v2191 = vadd.f32 %v2069, %v2182
        %v2192 = vld [vmem:[#allocation4] sm:$0x88]
        %v2194 = vunpack.c.l.b16 %v2192
        %v2195 = vunpack.c.h.b16 %v2192
        %v2196 = vpack.c.b16 %v2194, %v2194
        %v2197 = vpack.c.b16 %v2195, %v2195
        %v2199 = vpack.i.b16 %v2196, %v2196
        %v2201 = vlaneseq
        %v2202 = vshrl.u32 %v2201, 7
        %v2203 = vsub.s32 3, %v2202
        %v2204 = vrot.slane %v2199, %v2203
        %v2206 = vpack.i.b16 %v2197, %v2197
        %v2208 = vlaneseq
        %v2209 = vshrl.u32 %v2208, 7
        %v2210 = vsub.s32 3, %v2209
        %v2211 = vrot.slane %v2206, %v2210
        %2214 = vrot.lane.b32.xlu0 %v2204, 32
        %v2215 = vpop.permute.xlu0 %2214
        %2216 = vrot.lane.b32.xlu0 %v2211, 32
        %v2217 = vpop.permute.xlu0 %2216
        %v2218 = vsel %vm1090, %v2215, %v2217
        %v2222 = vmul.bf16 %v1479, %v2215
        %v2223 = vmul.bf16 %v1480, %v2218
        %v2224 = vmul.bf16 %v1507, %v2217
        %s2225 = scalar_lea.vmem %s4, 96
        %v2226 = vld [vmem:[%s2225] sm:$0xf]
        %v2227 = vld [vmem:[%s2225 + $0x4] sm:$0xf]
        %v2228 = vld [vmem:[%s2225 + $0x8] sm:$0xf]
        %v2229 = vld [vmem:[%s2225 + $0xc] sm:$0xf]
        %v2234 = vunpack.c.l.b16 %v2226
        %v2235 = vunpack.c.l.b16 %v2227
        %v2236 = vunpack.c.l.b16 %v2228
        %v2237 = vunpack.c.l.b16 %v2229
        %v2238 = vpack.c.b16 %v2235, %v2234
        %v2239 = vpack.c.b16 %v2237, %v2236
        %2243 = vrot.lane.b32.xlu0 %v2222, 96
        %v2244 = vpop.permute.xlu0 %2243
        %2245 = vrot.lane.b32.xlu0 %v2223, 96
        %v2246 = vpop.permute.xlu0 %2245
        %2247 = vrot.lane.b32.xlu0 %v2224, 96
        %v2248 = vpop.permute.xlu0 %2247
        %v2249 = vsel %vm1125, %v2244, %v2246
        %v2250 = vsel %vm1125, %v2246, %v2248
        %v2254 = vsel %vm1563, %v2238, 0
        %v2257 = vsel %vm1563, %v2239, 0
        %2259 = vmatprep.subr.bf16.mxu0 %v2250
        %2260 = vmatpush1.bf16.msra.mxu0 %v2249
        %2261 = vmatprep.subr.bf16.mxu0 0
        %2262 = vmatpush1.bf16.msra.mxu0 0
        %2263 = vmatprep.subr.bf16.mxu0 0
        %2264 = vmatpush1.bf16.msra.mxu0 0
        %2265 = vmatprep.subr.bf16.mxu0 0
        %2266 = vmatpush1.bf16.msra.mxu0 0
        %2267 = vmatprep.subr.bf16.mxu0 0
        %2268 = vmatpush1.bf16.msra.mxu0 0
        %2269 = vmatprep.subr.bf16.mxu0 0
        %2270 = vmatpush1.bf16.msra.mxu0 0
        %2271 = vmatprep.subr.bf16.mxu0 0
        %2272 = vmatpush1.bf16.msra.mxu0 0
        %2273 = vmatprep.subr.bf16.mxu0 0
        %2274 = vmatpush1.bf16.msra.mxu0 0
        %2275 = vmatprep.subr.bf16.mxu0 0
        %2276 = vmatpush1.bf16.msra.mxu0 0
        %2277 = vmatprep.subr.bf16.mxu0 0
        %2278 = vmatpush1.bf16.msra.mxu0 0
        %2279 = vmatprep.subr.bf16.mxu0 0
        %2280 = vmatpush1.bf16.msra.mxu0 0
        %2281 = vmatprep.subr.bf16.mxu0 0
        %2282 = vmatpush1.bf16.msra.mxu0 0
        %2283 = vmatprep.subr.bf16.mxu0 0
        %2284 = vmatpush1.bf16.msra.mxu0 0
        %2285 = vmatprep.subr.bf16.mxu0 0
        %2286 = vmatpush1.bf16.msra.mxu0 0
        %2287 = vmatprep.subr.bf16.mxu0 0
        %2288 = vmatpush1.bf16.msra.mxu0 0
        %2289 = vmatprep.subr.bf16.mxu0 0
        %2290 = vmatpush1.bf16.msra.mxu0 0
        %2291 = vmatprep.mubr.bf16.mxu0 0
        %2292 = vmatmul.mubr.bf16.gmra.mrb[0].mxu0 %v2254
        %v2293 = vpop.f32.mrb[0].mxu0
        %v2294 = vadd.f32 0.0, %v2293
        %v2295 = vpop.f32.mrb[0].mxu0
        %v2296 = vadd.f32 0.0, %v2295
        %v2297 = vpop.f32.mrb[0].mxu0
        %v2298 = vadd.f32 0.0, %v2297
        %v2299 = vpop.f32.mrb[0].mxu0
        %v2300 = vadd.f32 0.0, %v2299
        %2301 = vmatprep.mubr.bf16.mxu0 0
        %2302 = vmatmul.mubr.bf16.gmra.mrb[0].mxu0 %v2257
        %v2303 = vpop.f32.mrb[0].mxu0
        %v2304 = vadd.f32 0.0, %v2303
        %v2305 = vpop.f32.mrb[0].mxu0
        %v2306 = vadd.f32 0.0, %v2305
        %v2307 = vpop.f32.mrb[0].mxu0
        %v2308 = vadd.f32 0.0, %v2307
        %v2309 = vpop.f32.mrb[0].mxu0
        %v2310 = vadd.f32 0.0, %v2309
        %2311 = vdwg.mxu0
        %v2312 = vadd.f32 %v2184, %v2294
        %v2313 = vadd.f32 %v2185, %v2296
        %v2314 = vadd.f32 %v2186, %v2298
        %v2315 = vadd.f32 %v2187, %v2300
        %v2316 = vadd.f32 %v2188, %v2304
        %v2317 = vadd.f32 %v2189, %v2306
        %v2318 = vadd.f32 %v2190, %v2308
        %v2319 = vadd.f32 %v2191, %v2310
        %v2320 = vshrl.u32 %v2196, 16
        %v2321 = vpack.i.b16 %v2320, %v2320
        %v2323 = vlaneseq
        %v2324 = vshrl.u32 %v2323, 7
        %v2325 = vsub.s32 3, %v2324
        %v2326 = vrot.slane %v2321, %v2325
        %v2327 = vshrl.u32 %v2197, 16
        %v2328 = vpack.i.b16 %v2327, %v2327
        %v2330 = vlaneseq
        %v2331 = vshrl.u32 %v2330, 7
        %v2332 = vsub.s32 3, %v2331
        %v2333 = vrot.slane %v2328, %v2332
        %2336 = vrot.lane.b32.xlu0 %v2326, 33
        %v2337 = vpop.permute.xlu0 %2336
        %2338 = vrot.lane.b32.xlu0 %v2333, 33
        %v2339 = vpop.permute.xlu0 %2338
        %v2340 = vsel %vm1220, %v2337, %v2339
        %v2344 = vmul.bf16 %v1479, %v2337
        %v2345 = vmul.bf16 %v1480, %v2340
        %v2346 = vmul.bf16 %v1507, %v2339
        %s2347 = scalar_lea.vmem %s4, 112
        %v2348 = vld [vmem:[%s2347] sm:$0xf]
        %v2349 = vld [vmem:[%s2347 + $0x4] sm:$0xf]
        %v2350 = vld [vmem:[%s2347 + $0x8] sm:$0xf]
        %v2351 = vld [vmem:[%s2347 + $0xc] sm:$0xf]
        %v2356 = vunpack.c.l.b16 %v2348
        %v2357 = vunpack.c.l.b16 %v2349
        %v2358 = vunpack.c.l.b16 %v2350
        %v2359 = vunpack.c.l.b16 %v2351
        %v2360 = vpack.c.b16 %v2357, %v2356
        %v2361 = vpack.c.b16 %v2359, %v2358
        %2365 = vrot.lane.b32.xlu0 %v2344, 95
        %v2366 = vpop.permute.xlu0 %2365
        %2367 = vrot.lane.b32.xlu0 %v2345, 95
        %v2368 = vpop.permute.xlu0 %2367
        %2369 = vrot.lane.b32.xlu0 %v2346, 95
        %v2370 = vpop.permute.xlu0 %2369
        %v2371 = vsel %vm1255, %v2366, %v2368
        %v2372 = vsel %vm1255, %v2368, %v2370
        %v2376 = vsel %vm1563, %v2360, 0
        %v2379 = vsel %vm1563, %v2361, 0
        %2381 = vmatprep.subr.bf16.mxu0 %v2372
        %2382 = vmatpush1.bf16.msra.mxu0 %v2371
        %2383 = vmatprep.subr.bf16.mxu0 0
        %2384 = vmatpush1.bf16.msra.mxu0 0
        %2385 = vmatprep.subr.bf16.mxu0 0
        %2386 = vmatpush1.bf16.msra.mxu0 0
        %2387 = vmatprep.subr.bf16.mxu0 0
        %2388 = vmatpush1.bf16.msra.mxu0 0
        %2389 = vmatprep.subr.bf16.mxu0 0
        %2390 = vmatpush1.bf16.msra.mxu0 0
        %2391 = vmatprep.subr.bf16.mxu0 0
        %2392 = vmatpush1.bf16.msra.mxu0 0
        %2393 = vmatprep.subr.bf16.mxu0 0
        %2394 = vmatpush1.bf16.msra.mxu0 0
        %2395 = vmatprep.subr.bf16.mxu0 0
        %2396 = vmatpush1.bf16.msra.mxu0 0
        %2397 = vmatprep.subr.bf16.mxu0 0
        %2398 = vmatpush1.bf16.msra.mxu0 0
        %2399 = vmatprep.subr.bf16.mxu0 0
        %2400 = vmatpush1.bf16.msra.mxu0 0
        %2401 = vmatprep.subr.bf16.mxu0 0
        %2402 = vmatpush1.bf16.msra.mxu0 0
        %2403 = vmatprep.subr.bf16.mxu0 0
        %2404 = vmatpush1.bf16.msra.mxu0 0
        %2405 = vmatprep.subr.bf16.mxu0 0
        %2406 = vmatpush1.bf16.msra.mxu0 0
        %2407 = vmatprep.subr.bf16.mxu0 0
        %2408 = vmatpush1.bf16.msra.mxu0 0
        %2409 = vmatprep.subr.bf16.mxu0 0
        %2410 = vmatpush1.bf16.msra.mxu0 0
        %2411 = vmatprep.subr.bf16.mxu0 0
        %2412 = vmatpush1.bf16.msra.mxu0 0
        %2413 = vmatprep.mubr.bf16.mxu0 0
        %2414 = vmatmul.mubr.bf16.gmra.mrb[0].mxu0 %v2376
        %v2415 = vpop.f32.mrb[0].mxu0
        %v2416 = vadd.f32 0.0, %v2415
        %v2417 = vpop.f32.mrb[0].mxu0
        %v2418 = vadd.f32 0.0, %v2417
        %v2419 = vpop.f32.mrb[0].mxu0
        %v2420 = vadd.f32 0.0, %v2419
        %v2421 = vpop.f32.mrb[0].mxu0
        %v2422 = vadd.f32 0.0, %v2421
        %2423 = vmatprep.mubr.bf16.mxu0 0
        %2424 = vmatmul.mubr.bf16.gmra.mrb[0].mxu0 %v2379
        %v2425 = vpop.f32.mrb[0].mxu0
        %v2426 = vadd.f32 0.0, %v2425
        %v2427 = vpop.f32.mrb[0].mxu0
        %v2428 = vadd.f32 0.0, %v2427
        %v2429 = vpop.f32.mrb[0].mxu0
        %v2430 = vadd.f32 0.0, %v2429
        %v2431 = vpop.f32.mrb[0].mxu0
        %v2432 = vadd.f32 0.0, %v2431
        %2433 = vdwg.mxu0
        %v2434 = vadd.f32 %v2312, %v2416
        %v2435 = vadd.f32 %v2313, %v2418
        %v2436 = vadd.f32 %v2314, %v2420
        %v2437 = vadd.f32 %v2315, %v2422
        %v2438 = vadd.f32 %v2316, %v2426
        %v2439 = vadd.f32 %v2317, %v2428
        %v2440 = vadd.f32 %v2318, %v2430
        %v2441 = vadd.f32 %v2319, %v2432
        %v2442 = vld [vmem:[#allocation4 + $0x8] sm:$0x11]
        %v2444 = vunpack.c.l.b16 %v2442
        %v2445 = vunpack.c.h.b16 %v2442
        %v2446 = vpack.c.b16 %v2444, %v2444
        %v2447 = vpack.c.b16 %v2445, %v2445
        %v2449 = vpack.i.b16 %v2446, %v2446
        %v2451 = vlaneseq
        %v2452 = vshrl.u32 %v2451, 7
        %v2453 = vsub.s32 0, %v2452
        %v2454 = vrot.slane %v2449, %v2453
        %v2456 = vpack.i.b16 %v2447, %v2447
        %v2458 = vlaneseq
        %v2459 = vshrl.u32 %v2458, 7
        %v2460 = vsub.s32 0, %v2459
        %v2461 = vrot.slane %v2456, %v2460
        %2464 = vrot.lane.b32.xlu0 %v2454, 34
        %v2465 = vpop.permute.xlu0 %2464
        %2466 = vrot.lane.b32.xlu0 %v2461, 34
        %v2467 = vpop.permute.xlu0 %2466
        %v2468 = vsel %vm1348, %v2465, %v2467
        %v2472 = vmul.bf16 %v1479, %v2465
        %v2473 = vmul.bf16 %v1480, %v2468
        %v2474 = vmul.bf16 %v1507, %v2467
        %s2475 = scalar_lea.vmem %s4, 128
        %v2476 = vld [vmem:[%s2475] sm:$0xf]
        %v2477 = vld [vmem:[%s2475 + $0x4] sm:$0xf]
        %v2478 = vld [vmem:[%s2475 + $0x8] sm:$0xf]
        %v2479 = vld [vmem:[%s2475 + $0xc] sm:$0xf]
        %v2484 = vunpack.c.l.b16 %v2476
        %v2485 = vunpack.c.l.b16 %v2477
        %v2486 = vunpack.c.l.b16 %v2478
        %v2487 = vunpack.c.l.b16 %v2479
        %v2488 = vpack.c.b16 %v2485, %v2484
        %v2489 = vpack.c.b16 %v2487, %v2486
        %2493 = vrot.lane.b32.xlu0 %v2472, 94
        %v2494 = vpop.permute.xlu0 %2493
        %2495 = vrot.lane.b32.xlu0 %v2473, 94
        %v2496 = vpop.permute.xlu0 %2495
        %2497 = vrot.lane.b32.xlu0 %v2474, 94
        %v2498 = vpop.permute.xlu0 %2497
        %v2499 = vsel %vm1383, %v2494, %v2496
        %v2500 = vsel %vm1383, %v2496, %v2498
        %v2504 = vsel %vm1563, %v2488, 0
        %v2507 = vsel %vm1563, %v2489, 0
        %2509 = vmatprep.subr.bf16.mxu0 %v2500
        %2510 = vmatpush1.bf16.msra.mxu0 %v2499
        %2511 = vmatprep.subr.bf16.mxu0 0
        %2512 = vmatpush1.bf16.msra.mxu0 0
        %2513 = vmatprep.subr.bf16.mxu0 0
        %2514 = vmatpush1.bf16.msra.mxu0 0
        %2515 = vmatprep.subr.bf16.mxu0 0
        %2516 = vmatpush1.bf16.msra.mxu0 0
        %2517 = vmatprep.subr.bf16.mxu0 0
        %2518 = vmatpush1.bf16.msra.mxu0 0
        %2519 = vmatprep.subr.bf16.mxu0 0
        %2520 = vmatpush1.bf16.msra.mxu0 0
        %2521 = vmatprep.subr.bf16.mxu0 0
        %2522 = vmatpush1.bf16.msra.mxu0 0
        %2523 = vmatprep.subr.bf16.mxu0 0
        %2524 = vmatpush1.bf16.msra.mxu0 0
        %2525 = vmatprep.subr.bf16.mxu0 0
        %2526 = vmatpush1.bf16.msra.mxu0 0
        %2527 = vmatprep.subr.bf16.mxu0 0
        %2528 = vmatpush1.bf16.msra.mxu0 0
        %2529 = vmatprep.subr.bf16.mxu0 0
        %2530 = vmatpush1.bf16.msra.mxu0 0
        %2531 = vmatprep.subr.bf16.mxu0 0
        %2532 = vmatpush1.bf16.msra.mxu0 0
        %2533 = vmatprep.subr.bf16.mxu0 0
        %2534 = vmatpush1.bf16.msra.mxu0 0
        %2535 = vmatprep.subr.bf16.mxu0 0
        %2536 = vmatpush1.bf16.msra.mxu0 0
        %2537 = vmatprep.subr.bf16.mxu0 0
        %2538 = vmatpush1.bf16.msra.mxu0 0
        %2539 = vmatprep.subr.bf16.mxu0 0
        %2540 = vmatpush1.bf16.msra.mxu0 0
        %2541 = vmatprep.mubr.bf16.mxu0 0
        %2542 = vmatmul.mubr.bf16.gmra.mrb[0].mxu0 %v2504
        %v2543 = vpop.f32.mrb[0].mxu0
        %v2544 = vadd.f32 0.0, %v2543
        %v2545 = vpop.f32.mrb[0].mxu0
        %v2546 = vadd.f32 0.0, %v2545
        %v2547 = vpop.f32.mrb[0].mxu0
        %v2548 = vadd.f32 0.0, %v2547
        %v2549 = vpop.f32.mrb[0].mxu0
        %v2550 = vadd.f32 0.0, %v2549
        %2551 = vmatprep.mubr.bf16.mxu0 0
        %2552 = vmatmul.mubr.bf16.gmra.mrb[0].mxu0 %v2507
        %v2553 = vpop.f32.mrb[0].mxu0
        %v2554 = vadd.f32 0.0, %v2553
        %v2555 = vpop.f32.mrb[0].mxu0
        %v2556 = vadd.f32 0.0, %v2555
        %v2557 = vpop.f32.mrb[0].mxu0
        %v2558 = vadd.f32 0.0, %v2557
        %v2559 = vpop.f32.mrb[0].mxu0
        %v2560 = vadd.f32 0.0, %v2559
        %2561 = vdwg.mxu0
        %v2562 = vadd.f32 %v2434, %v2544
        %v2563 = vadd.f32 %v2435, %v2546
        %v2564 = vadd.f32 %v2436, %v2548
        %v2565 = vadd.f32 %v2437, %v2550
        %v2566 = vadd.f32 %v2438, %v2554
        %v2567 = vadd.f32 %v2439, %v2556
        %v2568 = vadd.f32 %v2440, %v2558
        %v2569 = vadd.f32 %v2441, %v2560
        %v2570 = vld [vmem:[%s5] sm:$0xff]
        %v2571 = vld [vmem:[%s5 + $0x8] sm:$0xff]
        %v2572 = vld [vmem:[%s5 + $0x10] sm:$0xff]
        %v2573 = vld [vmem:[%s5 + $0x18] sm:$0xff]
        %2575 = vset.pattern.permute.xlu0 0
        %2576 = vperm.xlu0 %2575, %v2570
        %v2577 = vpop.permute.xlu0 %2576
        %2580 = vset.pattern.permute.xlu0 0
        %2581 = vperm.xlu0 %2580, %v2571
        %v2582 = vpop.permute.xlu0 %2581
        %2585 = vset.pattern.permute.xlu0 0
        %2586 = vperm.xlu0 %2585, %v2572
        %v2587 = vpop.permute.xlu0 %2586
        %2590 = vset.pattern.permute.xlu0 0
        %2591 = vperm.xlu0 %2590, %v2573
        %v2592 = vpop.permute.xlu0 %2591
        %v2594 = vadd.f32 %v2562, %v2577
        %v2595 = vadd.f32 %v2563, %v2577
        %v2596 = vadd.f32 %v2564, %v2582
        %v2597 = vadd.f32 %v2565, %v2582
        %v2598 = vadd.f32 %v2566, %v2587
        %v2599 = vadd.f32 %v2567, %v2587
        %v2600 = vadd.f32 %v2568, %v2592
        %v2601 = vadd.f32 %v2569, %v2592
        %v2602 = vmax.f32 %v2594, 0.0
        %v2603 = vmax.f32 %v2595, 0.0
        %v2604 = vmax.f32 %v2596, 0.0
        %v2605 = vmax.f32 %v2597, 0.0
        %v2606 = vmax.f32 %v2598, 0.0
        %v2607 = vmax.f32 %v2599, 0.0
        %v2608 = vmax.f32 %v2600, 0.0
        %v2609 = vmax.f32 %v2601, 0.0
        %v2610 = vpack.c.bf16 %v2604, %v2602
        %v2611 = vpack.c.bf16 %v2605, %v2603
        %v2612 = vpack.c.bf16 %v2608, %v2606
        %v2613 = vpack.c.bf16 %v2609, %v2607
        %v2618 = vunpack.c.l.b16 %v2610
        %v2619 = vunpack.c.l.b16 %v2611
        %v2620 = vunpack.c.h.b16 %v2610
        %v2621 = vunpack.c.h.b16 %v2611
        %v2622 = vunpack.c.l.b16 %v2612
        %v2623 = vunpack.c.l.b16 %v2613
        %v2624 = vunpack.c.h.b16 %v2612
        %v2625 = vunpack.c.h.b16 %v2613
        %v2626 = vpack.c.b16 %v2619, %v2618
        %v2627 = vpack.c.b16 %v2621, %v2620
        %v2628 = vpack.c.b16 %v2623, %v2622
        %v2629 = vpack.c.b16 %v2625, %v2624
        %2634 = vst [vmem:[%s266] sm:$0xff] %v2626
        %2635 = vst [vmem:[%s266 + $0x8] sm:$0xff] %v2627
        %2636 = vst [vmem:[%s266 + $0x10] sm:$0xff] %v2628
        %2637 = vst [vmem:[%s266 + $0x18] sm:$0xff] %v2629
        %p2638 = scmp.lt.s32.totalorder %s18, 1
        %s2639 = scalar_select %p2638, %s18, 1
        %s2640 = smul.addr %s2639, 8
        %s2641 = smul.addr %s2640, 4
        %s2642 = scalar_lea.vmem %s6, %s2641
        // Predicated region
        $region49: #{ocrnet_forward.2} parent=43 // pred_check
          %p2643 = pneg %p167
        $region50: #{ocrnet_forward.2} parent=43 // pred_check_branch
          %2645 = sbr.rel (%p2643) target = $region52
        $region51: #{ocrnet_forward.2} parent=43 // pred_region
          _
        $region52: #{ocrnet_forward.2} parent=43 // pred_fallthru
          _
      $region44: #{ocrnet_forward.2} parent=5 // pred_fallthru
        _
      %p2646 = scmp.le.s32.totalorder 2, %s13
      // Predicated region
      $region53: #{ocrnet_forward.2} parent=5 // pred_check
        %p2647 = pneg %p2646
      $region54: #{ocrnet_forward.2} parent=5 // pred_check_branch
        %2649 = sbr.rel (%p2647) target = $region56
      $region55: #{ocrnet_forward.2} parent=5 // pred_region
        %s2650 = ssub.s32 %s13, 2
        // Predicated region
        $region57: #{ocrnet_forward.2} parent=55 // pred_check
          %p2651 = pneg %p173
        $region58: #{ocrnet_forward.2} parent=55 // pred_check_branch
          %2653 = sbr.rel (%p2651) target = $region60
        $region59: #{ocrnet_forward.2} parent=55 // pred_region
          %p2654 = scmp.lt.s32.totalorder %s19, 1
          %s2655 = scalar_select %p2654, %s19, 1
          %s2656 = smul.addr %s2655, 8
          %s2657 = smul.addr %s2656, 4
          %s2658 = scalar_lea.vmem %s6, %s2657
        $region60: #{ocrnet_forward.2} parent=55 // pred_fallthru
          _
      $region56: #{ocrnet_forward.2} parent=5 // pred_fallthru
        _
    $region6: #{ocrnet_forward.2} parent=1 // loop_footer
      %s17 = sadd.s32 1, %s13
    $region7: #{ocrnet_forward.2} parent=1 // loop_footer_branch
      %12 = sbr.rel target = $region3
    $region8: #{ocrnet_forward.2} parent=1 // loop_exit
      _
    %2659 = vsyncpa [#allocation5], 1
    %s2660 = scalar_lea.sflag [#allocation5], 1
    %2661 = vsyncpa %s2660, 1

</llo_original>
